<compile_context>
chip_gen: v7x
topology: tpu7x:2x2x1
jax: 0.10.0
libtpu: 0.0.40
codegen_flags: <defaults>
</compile_context>

<pallas_src>
import functools

import jax
import jax.numpy as jnp
from jax import lax
from jax.experimental import pallas as pl
from jax.experimental.pallas import tpu as pltpu


# --------------------------------------------------------------------------
# In-kernel helpers
# --------------------------------------------------------------------------
def _instance_norm_lrelu(y, valid, count):
    """InstanceNorm3d(affine=False, eps=1e-5) + LeakyReLU(0.01) over the `count`
    valid lanes selected by `valid` (0/1 mask, broadcast over channels)."""
    inv = jnp.float32(1.0 / count)
    mean = jnp.sum(y * valid, axis=1, keepdims=True) * inv            # (C, 1)
    xc = y - mean
    xcv = xc * valid
    var = jnp.sum(xcv * xcv, axis=1, keepdims=True) * inv             # biased variance
    out = xc * lax.rsqrt(var + jnp.float32(1e-5))
    out = jnp.where(out >= 0.0, out, jnp.float32(0.01) * out)         # LeakyReLU(0.01)
    return out * valid


def _im2col(dst_ref, src_ref, offs, m):
    """dst[t*C:(t+1)*C, :] = src[:, off_t : off_t + m] for every tap t (static offsets)."""
    c = src_ref.shape[0]
    for t, off in enumerate(offs):                                    # static unroll (<=27)
        dst_ref[pl.ds(t * c, c), :] = src_ref[:, pl.ds(off, m)]


def _down_fused_kernel(x_ref, w0_ref, b0_ref, w1_ref, w2_ref, mi_ref, mc_ref,
                       o_ref, col0, col1, col2, act1, act2,
                       *, offs2, offs3, m, shift, count):
    f32 = jnp.float32
    bf16 = jnp.bfloat16
    interior = mi_ref[...]     # (1,M): down-conv valid region == DoubleConv padded interior
    corner = mc_ref[...]       # (1,M): valid 7x7x7 output corner of the 3x3x3 convs

    # --- layer 0: Conv3d(k=4, s=2) lowered to a k=2/s=1 conv over space-to-depth phases ---
    _im2col(col0, x_ref, offs2, m)                                    # K = 8*Cin*8 = 256
    y0 = jnp.dot(w0_ref[...], col0[...].astype(bf16), preferred_element_type=f32)
    y0 = (y0 + b0_ref[...]) * interior        # keep bias: no norm follows this conv
    act1[...] = jnp.zeros_like(act1)          # zero the padding ring + tail
    act1[:, pl.ds(0, m)] = y0

    # --- layer 1: Conv3d(k=3, p=1) + InstanceNorm3d + LeakyReLU  (bias cancelled) ---
    _im2col(col1, act1, offs3, m)                                     # K = 27*Cin = 108
    y1 = jnp.dot(w1_ref[...], col1[...].astype(bf16), preferred_element_type=f32)
    y1 = _instance_norm_lrelu(y1, corner, count)
    act2[...] = jnp.zeros_like(act2)
    act2[:, pl.ds(shift, m)] = y1             # +(1,1,1) shift: output corner -> padded interior

    # --- layer 2: Conv3d(k=3, p=1) + InstanceNorm3d + LeakyReLU  (bias cancelled) ---
    _im2col(col2, act2, offs3, m)                                     # K = 27*Cout = 216
    y2 = jnp.dot(w2_ref[...], col2[...].astype(bf16), preferred_element_type=f32)
    o_ref[...] = _instance_norm_lrelu(y2, corner, count)


# --------------------------------------------------------------------------
# Host-side layout helpers (cheap XLA reshape/pad glue)
# --------------------------------------------------------------------------
def _space_to_depth2(x):
    # (N, C, D, H, W) -> (N, C*8, D//2, H//2, W//2); channel order (c, qd, qh, qw)
    N, C, D, H, W = x.shape
    x = x[:, :, :2 * (D // 2), :2 * (H // 2), :2 * (W // 2)]
    D2, H2, W2 = D // 2, H // 2, W // 2
    x = x.reshape(N, C, D2, 2, H2, 2, W2, 2)
    x = jnp.transpose(x, (0, 1, 3, 5, 7, 2, 4, 6))
    return x.reshape(N, C * 8, D2, H2, W2)


def _rearrange_w_s2d(w):
    # (Cout, Cin, 4, 4, 4) -> (Cout, Cin*8, 2, 2, 2), matching _space_to_depth2
    Cout, Cin = w.shape[:2]
    w = w.reshape(Cout, Cin, 2, 2, 2, 2, 2, 2)         # (co, ci, kd, qd, kh, qh, kw, qw)
    w = jnp.transpose(w, (0, 1, 3, 5, 7, 2, 4, 6))     # (co, ci, qd, qh, qw, kd, kh, kw)
    return w.reshape(Cout, Cin * 8, 2, 2, 2)


# --------------------------------------------------------------------------
# Down module forward (single fused pallas_call)
# --------------------------------------------------------------------------
def down_forward(x, params):
    """Conv3d(Cin,Cin,4,stride=2) -> [Conv3d(3,p=1)+InstanceNorm3d+LeakyReLU] x2."""
    N, Cin, D, H, W = x.shape
    Cout = params["w1"].shape[0]
    assert D % 2 == 0 and H % 2 == 0 and W % 2 == 0
    Cin8 = Cin * 8

    # geometry: everything after the down-conv lives on one flat (Dg,Hg,Wg) grid
    D2, H2, W2 = D // 2, H // 2, W // 2              # space-to-depth grid
    Do, Ho, Wo = D2 - 1, H2 - 1, W2 - 1              # == (D-4)//2+1 : down-conv output
    Dg, Hg, Wg = Do + 2, Ho + 2, Wo + 2              # padded grid of the 3x3x3 convs
    Mg = Dg * Hg * Wg                                # 729
    M = ((Mg + 127) // 128) * 128                    # 768 : lane-aligned compute width
    SH = Hg * Wg + Wg + 1                            # 91  : flat shift of (+1,+1,+1)
    L0 = ((M + SH + 127) // 128) * 128               # 896 : input lanes  (max read M-1+SH)
    Ls = ((M + 2 * SH + 127) // 128) * 128           # 1024: scratch lanes (max read M-1+2*SH)

    # TODO(synk): the 8-phase space-to-depth transpose could be folded into the kernel via
    # 8 strided DMAs; it is pure XLA glue and negligible at these sizes.
    xs = _space_to_depth2(x)                                          # (N, Cin8, D2, H2, W2)
    xs = jnp.pad(xs, ((0, 0), (0, 0), (0, Dg - D2), (0, Hg - H2), (0, Wg - W2)))
    xs = xs.reshape(N, Cin8, Mg)
    xs = jnp.pad(xs, ((0, 0), (0, 0), (SH, L0 - SH - Mg)))            # pre-shift by +91 lanes

    # stacked-K weight matrices, row order = (tap, cin) to match the im2col buffers
    w0 = _rearrange_w_s2d(params["w0"])                               # (Cin, Cin8, 2, 2, 2)
    w0m = jnp.transpose(w0, (0, 2, 3, 4, 1)).reshape(Cin, 8 * Cin8).astype(jnp.bfloat16)
    w1m = jnp.transpose(params["w1"], (0, 2, 3, 4, 1)).reshape(Cout, 27 * Cin).astype(jnp.bfloat16)
    w2m = jnp.transpose(params["w2"], (0, 2, 3, 4, 1)).reshape(Cout, 27 * Cout).astype(jnp.bfloat16)
    b0 = params["b0"].reshape(Cin, 1).astype(jnp.float32)
    # b1 / b2 are dropped: exactly cancelled by InstanceNorm(affine=False) mean subtraction.

    # 0/1 masks on the flat (Dg,Hg,Wg) grid, zero-padded to M lanes
    def _box_mask(lo):
        md = (jnp.arange(Dg) >= lo) & (jnp.arange(Dg) < lo + Do)
        mh = (jnp.arange(Hg) >= lo) & (jnp.arange(Hg) < lo + Ho)
        mw = (jnp.arange(Wg) >= lo) & (jnp.arange(Wg) < lo + Wo)
        msk = md[:, None, None] & mh[None, :, None] & mw[None, None, :]
        msk = msk.reshape(1, Mg).astype(jnp.float32)
        return jnp.pad(msk, ((0, 0), (0, M - Mg)))

    mask_interior = _box_mask(1)   # down-conv valid region == DoubleConv padded interior
    mask_corner = _box_mask(0)     # valid output region of the two 3x3x3 convs

    offs2 = tuple(kd * Hg * Wg + kh * Wg + kw
                  for kd in range(2) for kh in range(2) for kw in range(2))
    offs3 = tuple(kd * Hg * Wg + kh * Wg + kw
                  for kd in range(3) for kh in range(3) for kw in range(3))

    kernel = functools.partial(_down_fused_kernel, offs2=offs2, offs3=offs3,
                               m=M, shift=SH, count=Do * Ho * Wo)

    flops = 2 * N * M * (Cin * 8 * Cin8 + Cout * 27 * Cin + Cout * 27 * Cout)
    bytes_accessed = (4 * N * Cin8 * L0
                      + 2 * (Cin * 8 * Cin8 + Cout * 27 * Cin + Cout * 27 * Cout)
                      + 4 * (Cin + 2 * M)
                      + 4 * N * Cout * M)

    out = pl.pallas_call(
        kernel,
        out_shape=jax.ShapeDtypeStruct((N, Cout, M), jnp.float32),
        grid=(N,),
        in_specs=[
            pl.BlockSpec((None, Cin8, L0), lambda n: (n, 0, 0)),      # per-batch volume
            pl.BlockSpec((Cin, 8 * Cin8), lambda n: (0, 0)),          # w0  (VMEM-resident)
            pl.BlockSpec((Cin, 1), lambda n: (0, 0)),                 # b0
            pl.BlockSpec((Cout, 27 * Cin), lambda n: (0, 0)),         # w1
            pl.BlockSpec((Cout, 27 * Cout), lambda n: (0, 0)),        # w2
            pl.BlockSpec((1, M), lambda n: (0, 0)),                   # interior mask
            pl.BlockSpec((1, M), lambda n: (0, 0)),                   # corner mask
        ],
        out_specs=pl.BlockSpec((None, Cout, M), lambda n: (n, 0, 0)),
        scratch_shapes=[
            pltpu.VMEM((8 * Cin8, M), jnp.float32),     # col0 (K=256)
            pltpu.VMEM((27 * Cin, M), jnp.float32),     # col1 (K=108)
            pltpu.VMEM((27 * Cout, M), jnp.float32),    # col2 (K=216)
            pltpu.VMEM((Cin, Ls), jnp.float32),         # down-conv out == conv1 padded input
            pltpu.VMEM((Cout, Ls), jnp.float32),        # conv1 out == conv2 padded input
        ],
        compiler_params=pltpu.CompilerParams(dimension_semantics=("parallel",)),
        cost_estimate=pl.CostEstimate(flops=flops, transcendentals=2 * N * Cout,
                                      bytes_accessed=bytes_accessed),
    )(xs, w0m, b0, w1m, w2m, mask_interior, mask_corner)

    # crop the 9-grid back to the valid 7x7x7 region (reshape + static slice only)
    out = out[:, :, :Mg].reshape(N, Cout, Dg, Hg, Wg)
    return out[:, :, :Do, :Ho, :Wo]


# --------------------------------------------------------------------------
# Parameter init (PyTorch Conv3d default: U(-1/sqrt(fan_in), 1/sqrt(fan_in)))
# --------------------------------------------------------------------------
def init_down_params(key, in_ch, out_ch):
    def conv_init(k, cout, cin, ksz):
        kw, kb = jax.random.split(k)
        bound = 1.0 / ((cin * ksz ** 3) ** 0.5)
        w = jax.random.uniform(kw, (cout, cin, ksz, ksz, ksz), jnp.float32, -bound, bound)
        b = jax.random.uniform(kb, (cout,), jnp.float32, -bound, bound)
        return w, b

    k0, k1, k2 = jax.random.split(key, 3)
    w0, b0 = conv_init(k0, in_ch, in_ch, 4)     # Conv3d(in_ch, in_ch, 4, stride=2)
    w1, b1 = conv_init(k1, out_ch, in_ch, 3)    # DoubleConv conv #1
    w2, b2 = conv_init(k2, out_ch, out_ch, 3)   # DoubleConv conv #2
    return {"w0": w0, "b0": b0, "w1": w1, "b1": b1, "w2": w2, "b2": b2}


# --------------------------------------------------------------------------
# Pure-JAX f32 (HIGHEST precision) reference for a sanity check
# --------------------------------------------------------------------------
def _reference_forward(x, params):
    dn = ("NCDHW", "OIDHW", "NCDHW")

    def conv(v, w, b, stride, pad):
        out = lax.conv_general_dilated(v, w, (stride,) * 3, [(pad, pad)] * 3,
                                       dimension_numbers=dn,
                                       precision=lax.Precision.HIGHEST)
        return out + b[None, :, None, None, None]

    def norm_lrelu(v):
        mean = jnp.mean(v, axis=(2, 3, 4), keepdims=True)
        var = jnp.mean((v - mean) ** 2, axis=(2, 3, 4), keepdims=True)
        v = (v - mean) * lax.rsqrt(var + 1e-5)
        return jnp.where(v >= 0, v, 0.01 * v)

    y = conv(x, params["w0"], params["b0"], 2, 0)
    y = norm_lrelu(conv(y, params["w1"], params["b1"], 1, 1))
    y = norm_lrelu(conv(y, params["w2"], params["b2"], 1, 1))
    return y


if __name__ == "__main__":
    in_ch, out_ch = 4, 8
    N, S = 2, 16
    key = jax.random.PRNGKey(0)
    kx, kp = jax.random.split(key)

    x = jax.random.normal(kx, (N, in_ch, S, S, S), dtype=jnp.float32)
    params = init_down_params(kp, in_ch, out_ch)

    out = jax.block_until_ready(jax.jit(down_forward)(x, params))

    So = (S - 4) // 2 + 1  # 7
    assert out.shape == (N, out_ch, So, So, So), out.shape
    assert bool(jnp.all(jnp.isfinite(out)))

    # Loose check against a pure-JAX f32 reference: bf16 MXU inputs stay well within
    # these bounds; any structural bug (taps/shift/masks/weight order) would not.
    ref = jax.block_until_ready(jax.jit(_reference_forward)(x, params))
    max_err = float(jnp.max(jnp.abs(out - ref)))
    mean_err = float(jnp.mean(jnp.abs(out - ref)))
    assert max_err < 0.25 and mean_err < 0.03, (max_err, mean_err)

    print("KERNEL_OK")
</pallas_src>

<mosaic_0001>
module attributes {stable_mosaic.version = 11 : i64} {
  func.func @_down_fused_kernel(%arg0: i32, %arg1: memref<1x32x896xf32, #tpu.memory_space<vmem>>, %arg2: memref<4x256xbf16, #tpu.memory_space<vmem>>, %arg3: memref<4x1xf32, #tpu.memory_space<vmem>>, %arg4: memref<8x108xbf16, #tpu.memory_space<vmem>>, %arg5: memref<8x216xbf16, #tpu.memory_space<vmem>>, %arg6: memref<1x768xf32, #tpu.memory_space<vmem>>, %arg7: memref<1x768xf32, #tpu.memory_space<vmem>>, %arg8: memref<1x8x768xf32, #tpu.memory_space<vmem>>, %arg9: memref<256x768xf32, #tpu.memory_space<vmem>>, %arg10: memref<108x768xf32, #tpu.memory_space<vmem>>, %arg11: memref<216x768xf32, #tpu.memory_space<vmem>>, %arg12: memref<4x1024xf32, #tpu.memory_space<vmem>>, %arg13: memref<8x1024xf32, #tpu.memory_space<vmem>>) attributes {dimension_semantics = [#tpu.dimension_semantics<parallel>], iteration_bounds = array<i64: 2>, scalar_prefetch = 0 : i64, scratch_operands = 5 : i64, tpu.core_type = #tpu.core_type<tc>, window_params = [{transform_indices = @transform_0, window_bounds = array<i64: 1, 32, 896>}, {pipeline_mode = #tpu.pipeline_mode<synchronous>, transform_indices = @transform_1, window_bounds = array<i64: 4, 256>}, {pipeline_mode = #tpu.pipeline_mode<synchronous>, transform_indices = @transform_2, window_bounds = array<i64: 4, 1>}, {pipeline_mode = #tpu.pipeline_mode<synchronous>, transform_indices = @transform_3, window_bounds = array<i64: 8, 108>}, {pipeline_mode = #tpu.pipeline_mode<synchronous>, transform_indices = @transform_4, window_bounds = array<i64: 8, 216>}, {pipeline_mode = #tpu.pipeline_mode<synchronous>, transform_indices = @transform_5, window_bounds = array<i64: 1, 768>}, {pipeline_mode = #tpu.pipeline_mode<synchronous>, transform_indices = @transform_6, window_bounds = array<i64: 1, 768>}, {transform_indices = @transform_7, window_bounds = array<i64: 1, 8, 768>}]} {
    %c0 = arith.constant 0 : index
    %c0_0 = arith.constant 0 : index
    %0 = vector.load %arg6[%c0, %c0_0] : memref<1x768xf32, #tpu.memory_space<vmem>>, vector<1x768xf32>
    %c0_1 = arith.constant 0 : index
    %c0_2 = arith.constant 0 : index
    %1 = vector.load %arg7[%c0_1, %c0_2] : memref<1x768xf32, #tpu.memory_space<vmem>>, vector<1x768xf32>
    %c0_3 = arith.constant 0 : index
    %c0_4 = arith.constant 0 : index
    %c0_5 = arith.constant 0 : index
    %2 = vector.load %arg1[%c0_3, %c0_4, %c0_5] : memref<1x32x896xf32, #tpu.memory_space<vmem>>, vector<1x32x768xf32>
    %3 = vector.shape_cast %2 : vector<1x32x768xf32> to vector<32x768xf32>
    %c0_6 = arith.constant 0 : index
    %c0_7 = arith.constant 0 : index
    %4 = vector.load %arg9[%c0_6, %c0_7] : memref<256x768xf32, #tpu.memory_space<vmem>>, vector<32x768xf32>
    tpu.vector_store %arg9[%c0_6, %c0_7], %3 {strides = array<i32>} : memref<256x768xf32, #tpu.memory_space<vmem>>, vector<32x768xf32>,
    %c0_8 = arith.constant 0 : index
    %c0_9 = arith.constant 0 : index
    %c1 = arith.constant 1 : index
    %5 = vector.load %arg1[%c0_8, %c0_9, %c1] : memref<1x32x896xf32, #tpu.memory_space<vmem>>, vector<1x32x768xf32>
    %6 = vector.shape_cast %5 : vector<1x32x768xf32> to vector<32x768xf32>
    %c32 = arith.constant 32 : index
    %c0_10 = arith.constant 0 : index
    %7 = vector.load %arg9[%c32, %c0_10] : memref<256x768xf32, #tpu.memory_space<vmem>>, vector<32x768xf32>
    tpu.vector_store %arg9[%c32, %c0_10], %6 {strides = array<i32>} : memref<256x768xf32, #tpu.memory_space<vmem>>, vector<32x768xf32>,
    %c0_11 = arith.constant 0 : index
    %c0_12 = arith.constant 0 : index
    %c9 = arith.constant 9 : index
    %8 = vector.load %arg1[%c0_11, %c0_12, %c9] : memref<1x32x896xf32, #tpu.memory_space<vmem>>, vector<1x32x768xf32>
    %9 = vector.shape_cast %8 : vector<1x32x768xf32> to vector<32x768xf32>
    %c64 = arith.constant 64 : index
    %c0_13 = arith.constant 0 : index
    %10 = vector.load %arg9[%c64, %c0_13] : memref<256x768xf32, #tpu.memory_space<vmem>>, vector<32x768xf32>
    tpu.vector_store %arg9[%c64, %c0_13], %9 {strides = array<i32>} : memref<256x768xf32, #tpu.memory_space<vmem>>, vector<32x768xf32>,
    %c0_14 = arith.constant 0 : index
    %c0_15 = arith.constant 0 : index
    %c10 = arith.constant 10 : index
    %11 = vector.load %arg1[%c0_14, %c0_15, %c10] : memref<1x32x896xf32, #tpu.memory_space<vmem>>, vector<1x32x768xf32>
    %12 = vector.shape_cast %11 : vector<1x32x768xf32> to vector<32x768xf32>
    %c96 = arith.constant 96 : index
    %c0_16 = arith.constant 0 : index
    %13 = vector.load %arg9[%c96, %c0_16] : memref<256x768xf32, #tpu.memory_space<vmem>>, vector<32x768xf32>
    tpu.vector_store %arg9[%c96, %c0_16], %12 {strides = array<i32>} : memref<256x768xf32, #tpu.memory_space<vmem>>, vector<32x768xf32>,
    %c0_17 = arith.constant 0 : index
    %c0_18 = arith.constant 0 : index
    %c81 = arith.constant 81 : index
    %14 = vector.load %arg1[%c0_17, %c0_18, %c81] : memref<1x32x896xf32, #tpu.memory_space<vmem>>, vector<1x32x768xf32>
    %15 = vector.shape_cast %14 : vector<1x32x768xf32> to vector<32x768xf32>
    %c128 = arith.constant 128 : index
    %c0_19 = arith.constant 0 : index
    %16 = vector.load %arg9[%c128, %c0_19] : memref<256x768xf32, #tpu.memory_space<vmem>>, vector<32x768xf32>
    tpu.vector_store %arg9[%c128, %c0_19], %15 {strides = array<i32>} : memref<256x768xf32, #tpu.memory_space<vmem>>, vector<32x768xf32>,
    %c0_20 = arith.constant 0 : index
    %c0_21 = arith.constant 0 : index
    %c82 = arith.constant 82 : index
    %17 = vector.load %arg1[%c0_20, %c0_21, %c82] : memref<1x32x896xf32, #tpu.memory_space<vmem>>, vector<1x32x768xf32>
    %18 = vector.shape_cast %17 : vector<1x32x768xf32> to vector<32x768xf32>
    %c160 = arith.constant 160 : index
    %c0_22 = arith.constant 0 : index
    %19 = vector.load %arg9[%c160, %c0_22] : memref<256x768xf32, #tpu.memory_space<vmem>>, vector<32x768xf32>
    tpu.vector_store %arg9[%c160, %c0_22], %18 {strides = array<i32>} : memref<256x768xf32, #tpu.memory_space<vmem>>, vector<32x768xf32>,
    %c0_23 = arith.constant 0 : index
    %c0_24 = arith.constant 0 : index
    %c90 = arith.constant 90 : index
    %20 = vector.load %arg1[%c0_23, %c0_24, %c90] : memref<1x32x896xf32, #tpu.memory_space<vmem>>, vector<1x32x768xf32>
    %21 = vector.shape_cast %20 : vector<1x32x768xf32> to vector<32x768xf32>
    %c192 = arith.constant 192 : index
    %c0_25 = arith.constant 0 : index
    %22 = vector.load %arg9[%c192, %c0_25] : memref<256x768xf32, #tpu.memory_space<vmem>>, vector<32x768xf32>
    tpu.vector_store %arg9[%c192, %c0_25], %21 {strides = array<i32>} : memref<256x768xf32, #tpu.memory_space<vmem>>, vector<32x768xf32>,
    %c0_26 = arith.constant 0 : index
    %c0_27 = arith.constant 0 : index
    %c91 = arith.constant 91 : index
    %23 = vector.load %arg1[%c0_26, %c0_27, %c91] : memref<1x32x896xf32, #tpu.memory_space<vmem>>, vector<1x32x768xf32>
    %24 = vector.shape_cast %23 : vector<1x32x768xf32> to vector<32x768xf32>
    %c224 = arith.constant 224 : index
    %c0_28 = arith.constant 0 : index
    %25 = vector.load %arg9[%c224, %c0_28] : memref<256x768xf32, #tpu.memory_space<vmem>>, vector<32x768xf32>
    tpu.vector_store %arg9[%c224, %c0_28], %24 {strides = array<i32>} : memref<256x768xf32, #tpu.memory_space<vmem>>, vector<32x768xf32>,
    %c0_29 = arith.constant 0 : index
    %c0_30 = arith.constant 0 : index
    %26 = vector.load %arg2[%c0_29, %c0_30] : memref<4x256xbf16, #tpu.memory_space<vmem>>, vector<4x256xbf16>
    %c0_31 = arith.constant 0 : index
    %c0_32 = arith.constant 0 : index
    %27 = vector.load %arg9[%c0_31, %c0_32] : memref<256x768xf32, #tpu.memory_space<vmem>>, vector<256x768xf32>
    %28 = arith.truncf %27 : vector<256x768xf32> to vector<256x768xbf16>
    %cst = arith.constant dense<0.000000e+00> : vector<4x768xf32>
    %29 = tpu.matmul %26, %28, %cst {dimension_numbers = #tpu.dot_dimension_numbers<[1], [0], [0], [1], [0, 0, 1, 1], [], []>} : vector<4x256xbf16>, vector<256x768xbf16>, vector<4x768xf32> -> vector<4x768xf32>
    %c0_33 = arith.constant 0 : index
    %c0_34 = arith.constant 0 : index
    %30 = vector.load %arg3[%c0_33, %c0_34] : memref<4x1xf32, #tpu.memory_space<vmem>>, vector<4x1xf32>
    %31 = vector.broadcast %30 : vector<4x1xf32> to vector<4x768xf32>
    %32 = arith.addf %29, %31 : vector<4x768xf32>
    %33 = vector.broadcast %0 : vector<1x768xf32> to vector<4x768xf32>
    %34 = arith.mulf %32, %33 : vector<4x768xf32>
    %cst_35 = arith.constant 0.000000e+00 : f32
    %35 = vector.broadcast %cst_35 : f32 to vector<4x1024xf32>
    %c0_36 = arith.constant 0 : index
    %c0_37 = arith.constant 0 : index
    %36 = vector.load %arg12[%c0_36, %c0_37] : memref<4x1024xf32, #tpu.memory_space<vmem>>, vector<4x1024xf32>
    tpu.vector_store %arg12[%c0_36, %c0_37], %35 {strides = array<i32>} : memref<4x1024xf32, #tpu.memory_space<vmem>>, vector<4x1024xf32>,
    %c0_38 = arith.constant 0 : index
    %c0_39 = arith.constant 0 : index
    %37 = vector.load %arg12[%c0_38, %c0_39] : memref<4x1024xf32, #tpu.memory_space<vmem>>, vector<4x768xf32>
    tpu.vector_store %arg12[%c0_38, %c0_39], %34 {strides = array<i32>} : memref<4x1024xf32, #tpu.memory_space<vmem>>, vector<4x768xf32>,
    %c0_40 = arith.constant 0 : index
    %c0_41 = arith.constant 0 : index
    %38 = vector.load %arg12[%c0_40, %c0_41] : memref<4x1024xf32, #tpu.memory_space<vmem>>, vector<4x768xf32>
    %c0_42 = arith.constant 0 : index
    %c0_43 = arith.constant 0 : index
    %39 = vector.load %arg10[%c0_42, %c0_43] : memref<108x768xf32, #tpu.memory_space<vmem>>, vector<4x768xf32>
    tpu.vector_store %arg10[%c0_42, %c0_43], %38 {strides = array<i32>} : memref<108x768xf32, #tpu.memory_space<vmem>>, vector<4x768xf32>,
    %c0_44 = arith.constant 0 : index
    %c1_45 = arith.constant 1 : index
    %40 = vector.load %arg12[%c0_44, %c1_45] : memref<4x1024xf32, #tpu.memory_space<vmem>>, vector<4x768xf32>
    %c4 = arith.constant 4 : index
    %c0_46 = arith.constant 0 : index
    %41 = vector.load %arg10[%c4, %c0_46] : memref<108x768xf32, #tpu.memory_space<vmem>>, vector<4x768xf32>
    tpu.vector_store %arg10[%c4, %c0_46], %40 {strides = array<i32>} : memref<108x768xf32, #tpu.memory_space<vmem>>, vector<4x768xf32>,
    %c0_47 = arith.constant 0 : index
    %c2 = arith.constant 2 : index
    %42 = vector.load %arg12[%c0_47, %c2] : memref<4x1024xf32, #tpu.memory_space<vmem>>, vector<4x768xf32>
    %c8 = arith.constant 8 : index
    %c0_48 = arith.constant 0 : index
    %43 = vector.load %arg10[%c8, %c0_48] : memref<108x768xf32, #tpu.memory_space<vmem>>, vector<4x768xf32>
    tpu.vector_store %arg10[%c8, %c0_48], %42 {strides = array<i32>} : memref<108x768xf32, #tpu.memory_space<vmem>>, vector<4x768xf32>,
    %c0_49 = arith.constant 0 : index
    %c9_50 = arith.constant 9 : index
    %44 = vector.load %arg12[%c0_49, %c9_50] : memref<4x1024xf32, #tpu.memory_space<vmem>>, vector<4x768xf32>
    %c12 = arith.constant 12 : index
    %c0_51 = arith.constant 0 : index
    %45 = vector.load %arg10[%c12, %c0_51] : memref<108x768xf32, #tpu.memory_space<vmem>>, vector<4x768xf32>
    tpu.vector_store %arg10[%c12, %c0_51], %44 {strides = array<i32>} : memref<108x768xf32, #tpu.memory_space<vmem>>, vector<4x768xf32>,
    %c0_52 = arith.constant 0 : index
    %c10_53 = arith.constant 10 : index
    %46 = vector.load %arg12[%c0_52, %c10_53] : memref<4x1024xf32, #tpu.memory_space<vmem>>, vector<4x768xf32>
    %c16 = arith.constant 16 : index
    %c0_54 = arith.constant 0 : index
    %47 = vector.load %arg10[%c16, %c0_54] : memref<108x768xf32, #tpu.memory_space<vmem>>, vector<4x768xf32>
    tpu.vector_store %arg10[%c16, %c0_54], %46 {strides = array<i32>} : memref<108x768xf32, #tpu.memory_space<vmem>>, vector<4x768xf32>,
    %c0_55 = arith.constant 0 : index
    %c11 = arith.constant 11 : index
    %48 = vector.load %arg12[%c0_55, %c11] : memref<4x1024xf32, #tpu.memory_space<vmem>>, vector<4x768xf32>
    %c20 = arith.constant 20 : index
    %c0_56 = arith.constant 0 : index
    %49 = vector.load %arg10[%c20, %c0_56] : memref<108x768xf32, #tpu.memory_space<vmem>>, vector<4x768xf32>
    tpu.vector_store %arg10[%c20, %c0_56], %48 {strides = array<i32>} : memref<108x768xf32, #tpu.memory_space<vmem>>, vector<4x768xf32>,
    %c0_57 = arith.constant 0 : index
    %c18 = arith.constant 18 : index
    %50 = vector.load %arg12[%c0_57, %c18] : memref<4x1024xf32, #tpu.memory_space<vmem>>, vector<4x768xf32>
    %c24 = arith.constant 24 : index
    %c0_58 = arith.constant 0 : index
    %51 = vector.load %arg10[%c24, %c0_58] : memref<108x768xf32, #tpu.memory_space<vmem>>, vector<4x768xf32>
    tpu.vector_store %arg10[%c24, %c0_58], %50 {strides = array<i32>} : memref<108x768xf32, #tpu.memory_space<vmem>>, vector<4x768xf32>,
    %c0_59 = arith.constant 0 : index
    %c19 = arith.constant 19 : index
    %52 = vector.load %arg12[%c0_59, %c19] : memref<4x1024xf32, #tpu.memory_space<vmem>>, vector<4x768xf32>
    %c28 = arith.constant 28 : index
    %c0_60 = arith.constant 0 : index
    %53 = vector.load %arg10[%c28, %c0_60] : memref<108x768xf32, #tpu.memory_space<vmem>>, vector<4x768xf32>
    tpu.vector_store %arg10[%c28, %c0_60], %52 {strides = array<i32>} : memref<108x768xf32, #tpu.memory_space<vmem>>, vector<4x768xf32>,
    %c0_61 = arith.constant 0 : index
    %c20_62 = arith.constant 20 : index
    %54 = vector.load %arg12[%c0_61, %c20_62] : memref<4x1024xf32, #tpu.memory_space<vmem>>, vector<4x768xf32>
    %c32_63 = arith.constant 32 : index
    %c0_64 = arith.constant 0 : index
    %55 = vector.load %arg10[%c32_63, %c0_64] : memref<108x768xf32, #tpu.memory_space<vmem>>, vector<4x768xf32>
    tpu.vector_store %arg10[%c32_63, %c0_64], %54 {strides = array<i32>} : memref<108x768xf32, #tpu.memory_space<vmem>>, vector<4x768xf32>,
    %c0_65 = arith.constant 0 : index
    %c81_66 = arith.constant 81 : index
    %56 = vector.load %arg12[%c0_65, %c81_66] : memref<4x1024xf32, #tpu.memory_space<vmem>>, vector<4x768xf32>
    %c36 = arith.constant 36 : index
    %c0_67 = arith.constant 0 : index
    %57 = vector.load %arg10[%c36, %c0_67] : memref<108x768xf32, #tpu.memory_space<vmem>>, vector<4x768xf32>
    tpu.vector_store %arg10[%c36, %c0_67], %56 {strides = array<i32>} : memref<108x768xf32, #tpu.memory_space<vmem>>, vector<4x768xf32>,
    %c0_68 = arith.constant 0 : index
    %c82_69 = arith.constant 82 : index
    %58 = vector.load %arg12[%c0_68, %c82_69] : memref<4x1024xf32, #tpu.memory_space<vmem>>, vector<4x768xf32>
    %c40 = arith.constant 40 : index
    %c0_70 = arith.constant 0 : index
    %59 = vector.load %arg10[%c40, %c0_70] : memref<108x768xf32, #tpu.memory_space<vmem>>, vector<4x768xf32>
    tpu.vector_store %arg10[%c40, %c0_70], %58 {strides = array<i32>} : memref<108x768xf32, #tpu.memory_space<vmem>>, vector<4x768xf32>,
    %c0_71 = arith.constant 0 : index
    %c83 = arith.constant 83 : index
    %60 = vector.load %arg12[%c0_71, %c83] : memref<4x1024xf32, #tpu.memory_space<vmem>>, vector<4x768xf32>
    %c44 = arith.constant 44 : index
    %c0_72 = arith.constant 0 : index
    %61 = vector.load %arg10[%c44, %c0_72] : memref<108x768xf32, #tpu.memory_space<vmem>>, vector<4x768xf32>
    tpu.vector_store %arg10[%c44, %c0_72], %60 {strides = array<i32>} : memref<108x768xf32, #tpu.memory_space<vmem>>, vector<4x768xf32>,
    %c0_73 = arith.constant 0 : index
    %c90_74 = arith.constant 90 : index
    %62 = vector.load %arg12[%c0_73, %c90_74] : memref<4x1024xf32, #tpu.memory_space<vmem>>, vector<4x768xf32>
    %c48 = arith.constant 48 : index
    %c0_75 = arith.constant 0 : index
    %63 = vector.load %arg10[%c48, %c0_75] : memref<108x768xf32, #tpu.memory_space<vmem>>, vector<4x768xf32>
    tpu.vector_store %arg10[%c48, %c0_75], %62 {strides = array<i32>} : memref<108x768xf32, #tpu.memory_space<vmem>>, vector<4x768xf32>,
    %c0_76 = arith.constant 0 : index
    %c91_77 = arith.constant 91 : index
    %64 = vector.load %arg12[%c0_76, %c91_77] : memref<4x1024xf32, #tpu.memory_space<vmem>>, vector<4x768xf32>
    %c52 = arith.constant 52 : index
    %c0_78 = arith.constant 0 : index
    %65 = vector.load %arg10[%c52, %c0_78] : memref<108x768xf32, #tpu.memory_space<vmem>>, vector<4x768xf32>
    tpu.vector_store %arg10[%c52, %c0_78], %64 {strides = array<i32>} : memref<108x768xf32, #tpu.memory_space<vmem>>, vector<4x768xf32>,
    %c0_79 = arith.constant 0 : index
    %c92 = arith.constant 92 : index
    %66 = vector.load %arg12[%c0_79, %c92] : memref<4x1024xf32, #tpu.memory_space<vmem>>, vector<4x768xf32>
    %c56 = arith.constant 56 : index
    %c0_80 = arith.constant 0 : index
    %67 = vector.load %arg10[%c56, %c0_80] : memref<108x768xf32, #tpu.memory_space<vmem>>, vector<4x768xf32>
    tpu.vector_store %arg10[%c56, %c0_80], %66 {strides = array<i32>} : memref<108x768xf32, #tpu.memory_space<vmem>>, vector<4x768xf32>,
    %c0_81 = arith.constant 0 : index
    %c99 = arith.constant 99 : index
    %68 = vector.load %arg12[%c0_81, %c99] : memref<4x1024xf32, #tpu.memory_space<vmem>>, vector<4x768xf32>
    %c60 = arith.constant 60 : index
    %c0_82 = arith.constant 0 : index
    %69 = vector.load %arg10[%c60, %c0_82] : memref<108x768xf32, #tpu.memory_space<vmem>>, vector<4x768xf32>
    tpu.vector_store %arg10[%c60, %c0_82], %68 {strides = array<i32>} : memref<108x768xf32, #tpu.memory_space<vmem>>, vector<4x768xf32>,
    %c0_83 = arith.constant 0 : index
    %c100 = arith.constant 100 : index
    %70 = vector.load %arg12[%c0_83, %c100] : memref<4x1024xf32, #tpu.memory_space<vmem>>, vector<4x768xf32>
    %c64_84 = arith.constant 64 : index
    %c0_85 = arith.constant 0 : index
    %71 = vector.load %arg10[%c64_84, %c0_85] : memref<108x768xf32, #tpu.memory_space<vmem>>, vector<4x768xf32>
    tpu.vector_store %arg10[%c64_84, %c0_85], %70 {strides = array<i32>} : memref<108x768xf32, #tpu.memory_space<vmem>>, vector<4x768xf32>,
    %c0_86 = arith.constant 0 : index
    %c101 = arith.constant 101 : index
    %72 = vector.load %arg12[%c0_86, %c101] : memref<4x1024xf32, #tpu.memory_space<vmem>>, vector<4x768xf32>
    %c68 = arith.constant 68 : index
    %c0_87 = arith.constant 0 : index
    %73 = vector.load %arg10[%c68, %c0_87] : memref<108x768xf32, #tpu.memory_space<vmem>>, vector<4x768xf32>
    tpu.vector_store %arg10[%c68, %c0_87], %72 {strides = array<i32>} : memref<108x768xf32, #tpu.memory_space<vmem>>, vector<4x768xf32>,
    %c0_88 = arith.constant 0 : index
    %c162 = arith.constant 162 : index
    %74 = vector.load %arg12[%c0_88, %c162] : memref<4x1024xf32, #tpu.memory_space<vmem>>, vector<4x768xf32>
    %c72 = arith.constant 72 : index
    %c0_89 = arith.constant 0 : index
    %75 = vector.load %arg10[%c72, %c0_89] : memref<108x768xf32, #tpu.memory_space<vmem>>, vector<4x768xf32>
    tpu.vector_store %arg10[%c72, %c0_89], %74 {strides = array<i32>} : memref<108x768xf32, #tpu.memory_space<vmem>>, vector<4x768xf32>,
    %c0_90 = arith.constant 0 : index
    %c163 = arith.constant 163 : index
    %76 = vector.load %arg12[%c0_90, %c163] : memref<4x1024xf32, #tpu.memory_space<vmem>>, vector<4x768xf32>
    %c76 = arith.constant 76 : index
    %c0_91 = arith.constant 0 : index
    %77 = vector.load %arg10[%c76, %c0_91] : memref<108x768xf32, #tpu.memory_space<vmem>>, vector<4x768xf32>
    tpu.vector_store %arg10[%c76, %c0_91], %76 {strides = array<i32>} : memref<108x768xf32, #tpu.memory_space<vmem>>, vector<4x768xf32>,
    %c0_92 = arith.constant 0 : index
    %c164 = arith.constant 164 : index
    %78 = vector.load %arg12[%c0_92, %c164] : memref<4x1024xf32, #tpu.memory_space<vmem>>, vector<4x768xf32>
    %c80 = arith.constant 80 : index
    %c0_93 = arith.constant 0 : index
    %79 = vector.load %arg10[%c80, %c0_93] : memref<108x768xf32, #tpu.memory_space<vmem>>, vector<4x768xf32>
    tpu.vector_store %arg10[%c80, %c0_93], %78 {strides = array<i32>} : memref<108x768xf32, #tpu.memory_space<vmem>>, vector<4x768xf32>,
    %c0_94 = arith.constant 0 : index
    %c171 = arith.constant 171 : index
    %80 = vector.load %arg12[%c0_94, %c171] : memref<4x1024xf32, #tpu.memory_space<vmem>>, vector<4x768xf32>
    %c84 = arith.constant 84 : index
    %c0_95 = arith.constant 0 : index
    %81 = vector.load %arg10[%c84, %c0_95] : memref<108x768xf32, #tpu.memory_space<vmem>>, vector<4x768xf32>
    tpu.vector_store %arg10[%c84, %c0_95], %80 {strides = array<i32>} : memref<108x768xf32, #tpu.memory_space<vmem>>, vector<4x768xf32>,
    %c0_96 = arith.constant 0 : index
    %c172 = arith.constant 172 : index
    %82 = vector.load %arg12[%c0_96, %c172] : memref<4x1024xf32, #tpu.memory_space<vmem>>, vector<4x768xf32>
    %c88 = arith.constant 88 : index
    %c0_97 = arith.constant 0 : index
    %83 = vector.load %arg10[%c88, %c0_97] : memref<108x768xf32, #tpu.memory_space<vmem>>, vector<4x768xf32>
    tpu.vector_store %arg10[%c88, %c0_97], %82 {strides = array<i32>} : memref<108x768xf32, #tpu.memory_space<vmem>>, vector<4x768xf32>,
    %c0_98 = arith.constant 0 : index
    %c173 = arith.constant 173 : index
    %84 = vector.load %arg12[%c0_98, %c173] : memref<4x1024xf32, #tpu.memory_space<vmem>>, vector<4x768xf32>
    %c92_99 = arith.constant 92 : index
    %c0_100 = arith.constant 0 : index
    %85 = vector.load %arg10[%c92_99, %c0_100] : memref<108x768xf32, #tpu.memory_space<vmem>>, vector<4x768xf32>
    tpu.vector_store %arg10[%c92_99, %c0_100], %84 {strides = array<i32>} : memref<108x768xf32, #tpu.memory_space<vmem>>, vector<4x768xf32>,
    %c0_101 = arith.constant 0 : index
    %c180 = arith.constant 180 : index
    %86 = vector.load %arg12[%c0_101, %c180] : memref<4x1024xf32, #tpu.memory_space<vmem>>, vector<4x768xf32>
    %c96_102 = arith.constant 96 : index
    %c0_103 = arith.constant 0 : index
    %87 = vector.load %arg10[%c96_102, %c0_103] : memref<108x768xf32, #tpu.memory_space<vmem>>, vector<4x768xf32>
    tpu.vector_store %arg10[%c96_102, %c0_103], %86 {strides = array<i32>} : memref<108x768xf32, #tpu.memory_space<vmem>>, vector<4x768xf32>,
    %c0_104 = arith.constant 0 : index
    %c181 = arith.constant 181 : index
    %88 = vector.load %arg12[%c0_104, %c181] : memref<4x1024xf32, #tpu.memory_space<vmem>>, vector<4x768xf32>
    %c100_105 = arith.constant 100 : index
    %c0_106 = arith.constant 0 : index
    %89 = vector.load %arg10[%c100_105, %c0_106] : memref<108x768xf32, #tpu.memory_space<vmem>>, vector<4x768xf32>
    tpu.vector_store %arg10[%c100_105, %c0_106], %88 {strides = array<i32>} : memref<108x768xf32, #tpu.memory_space<vmem>>, vector<4x768xf32>,
    %c0_107 = arith.constant 0 : index
    %c182 = arith.constant 182 : index
    %90 = vector.load %arg12[%c0_107, %c182] : memref<4x1024xf32, #tpu.memory_space<vmem>>, vector<4x768xf32>
    %c104 = arith.constant 104 : index
    %c0_108 = arith.constant 0 : index
    %91 = vector.load %arg10[%c104, %c0_108] : memref<108x768xf32, #tpu.memory_space<vmem>>, vector<4x768xf32>
    tpu.vector_store %arg10[%c104, %c0_108], %90 {strides = array<i32>} : memref<108x768xf32, #tpu.memory_space<vmem>>, vector<4x768xf32>,
    %c0_109 = arith.constant 0 : index
    %c0_110 = arith.constant 0 : index
    %92 = vector.load %arg4[%c0_109, %c0_110] : memref<8x108xbf16, #tpu.memory_space<vmem>>, vector<8x108xbf16>
    %c0_111 = arith.constant 0 : index
    %c0_112 = arith.constant 0 : index
    %93 = vector.load %arg10[%c0_111, %c0_112] : memref<108x768xf32, #tpu.memory_space<vmem>>, vector<108x768xf32>
    %94 = arith.truncf %93 : vector<108x768xf32> to vector<108x768xbf16>
    %cst_113 = arith.constant dense<0.000000e+00> : vector<8x768xf32>
    %95 = tpu.matmul %92, %94, %cst_113 {dimension_numbers = #tpu.dot_dimension_numbers<[1], [0], [0], [1], [0, 0, 1, 1], [], []>} : vector<8x108xbf16>, vector<108x768xbf16>, vector<8x768xf32> -> vector<8x768xf32>
    %96 = vector.broadcast %1 : vector<1x768xf32> to vector<8x768xf32>
    %97 = arith.mulf %95, %96 : vector<8x768xf32>
    %cst_114 = arith.constant dense<0.000000e+00> : vector<8xf32>
    %98 = vector.multi_reduction <add>, %97, %cst_114 [1] : vector<8x768xf32> to vector<8xf32>
    %99 = vector.shape_cast %98 : vector<8xf32> to vector<8x1xf32>
    %cst_115 = arith.constant 0.002915452 : f32
    %100 = vector.broadcast %cst_115 : f32 to vector<8x1xf32>
    %101 = arith.mulf %99, %100 : vector<8x1xf32>
    %102 = vector.broadcast %101 : vector<8x1xf32> to vector<8x768xf32>
    %103 = arith.subf %95, %102 : vector<8x768xf32>
    %104 = vector.broadcast %1 : vector<1x768xf32> to vector<8x768xf32>
    %105 = arith.mulf %103, %104 : vector<8x768xf32>
    %106 = arith.mulf %105, %105 : vector<8x768xf32>
    %cst_116 = arith.constant dense<0.000000e+00> : vector<8xf32>
    %107 = vector.multi_reduction <add>, %106, %cst_116 [1] : vector<8x768xf32> to vector<8xf32>
    %108 = vector.shape_cast %107 : vector<8xf32> to vector<8x1xf32>
    %cst_117 = arith.constant 0.002915452 : f32
    %109 = vector.broadcast %cst_117 : f32 to vector<8x1xf32>
    %110 = arith.mulf %108, %109 : vector<8x1xf32>
    %cst_118 = arith.constant 9.99999974E-6 : f32
    %111 = vector.broadcast %cst_118 : f32 to vector<8x1xf32>
    %112 = arith.addf %110, %111 : vector<8x1xf32>
    %113 = math.rsqrt %112 : vector<8x1xf32>
    %114 = vector.broadcast %113 : vector<8x1xf32> to vector<8x768xf32>
    %115 = arith.mulf %103, %114 : vector<8x768xf32>
    %cst_119 = arith.constant 0.000000e+00 : f32
    %116 = vector.broadcast %cst_119 : f32 to vector<8x768xf32>
    %117 = arith.cmpf oge, %115, %116 : vector<8x768xf32>
    %cst_120 = arith.constant 0.00999999977 : f32
    %118 = vector.broadcast %cst_120 : f32 to vector<8x768xf32>
    %119 = arith.mulf %118, %115 : vector<8x768xf32>
    %120 = arith.select %117, %115, %119 : vector<8x768xi1>, vector<8x768xf32>
    %121 = vector.broadcast %1 : vector<1x768xf32> to vector<8x768xf32>
    %122 = arith.mulf %120, %121 : vector<8x768xf32>
    %cst_121 = arith.constant 0.000000e+00 : f32
    %123 = vector.broadcast %cst_121 : f32 to vector<8x1024xf32>
    %c0_122 = arith.constant 0 : index
    %c0_123 = arith.constant 0 : index
    %124 = vector.load %arg13[%c0_122, %c0_123] : memref<8x1024xf32, #tpu.memory_space<vmem>>, vector<8x1024xf32>
    tpu.vector_store %arg13[%c0_122, %c0_123], %123 {strides = array<i32>} : memref<8x1024xf32, #tpu.memory_space<vmem>>, vector<8x1024xf32>,
    %c0_124 = arith.constant 0 : index
    %c91_125 = arith.constant 91 : index
    %125 = vector.load %arg13[%c0_124, %c91_125] : memref<8x1024xf32, #tpu.memory_space<vmem>>, vector<8x768xf32>
    tpu.vector_store %arg13[%c0_124, %c91_125], %122 {strides = array<i32>} : memref<8x1024xf32, #tpu.memory_space<vmem>>, vector<8x768xf32>,
    %c0_126 = arith.constant 0 : index
    %c0_127 = arith.constant 0 : index
    %126 = vector.load %arg13[%c0_126, %c0_127] : memref<8x1024xf32, #tpu.memory_space<vmem>>, vector<8x768xf32>
    %c0_128 = arith.constant 0 : index
    %c0_129 = arith.constant 0 : index
    %127 = vector.load %arg11[%c0_128, %c0_129] : memref<216x768xf32, #tpu.memory_space<vmem>>, vector<8x768xf32>
    tpu.vector_store %arg11[%c0_128, %c0_129], %126 {strides = array<i32>} : memref<216x768xf32, #tpu.memory_space<vmem>>, vector<8x768xf32>,
    %c0_130 = arith.constant 0 : index
    %c1_131 = arith.constant 1 : index
    %128 = vector.load %arg13[%c0_130, %c1_131] : memref<8x1024xf32, #tpu.memory_space<vmem>>, vector<8x768xf32>
    %c8_132 = arith.constant 8 : index
    %c0_133 = arith.constant 0 : index
    %129 = vector.load %arg11[%c8_132, %c0_133] : memref<216x768xf32, #tpu.memory_space<vmem>>, vector<8x768xf32>
    tpu.vector_store %arg11[%c8_132, %c0_133], %128 {strides = array<i32>} : memref<216x768xf32, #tpu.memory_space<vmem>>, vector<8x768xf32>,
    %c0_134 = arith.constant 0 : index
    %c2_135 = arith.constant 2 : index
    %130 = vector.load %arg13[%c0_134, %c2_135] : memref<8x1024xf32, #tpu.memory_space<vmem>>, vector<8x768xf32>
    %c16_136 = arith.constant 16 : index
    %c0_137 = arith.constant 0 : index
    %131 = vector.load %arg11[%c16_136, %c0_137] : memref<216x768xf32, #tpu.memory_space<vmem>>, vector<8x768xf32>
    tpu.vector_store %arg11[%c16_136, %c0_137], %130 {strides = array<i32>} : memref<216x768xf32, #tpu.memory_space<vmem>>, vector<8x768xf32>,
    %c0_138 = arith.constant 0 : index
    %c9_139 = arith.constant 9 : index
    %132 = vector.load %arg13[%c0_138, %c9_139] : memref<8x1024xf32, #tpu.memory_space<vmem>>, vector<8x768xf32>
    %c24_140 = arith.constant 24 : index
    %c0_141 = arith.constant 0 : index
    %133 = vector.load %arg11[%c24_140, %c0_141] : memref<216x768xf32, #tpu.memory_space<vmem>>, vector<8x768xf32>
    tpu.vector_store %arg11[%c24_140, %c0_141], %132 {strides = array<i32>} : memref<216x768xf32, #tpu.memory_space<vmem>>, vector<8x768xf32>,
    %c0_142 = arith.constant 0 : index
    %c10_143 = arith.constant 10 : index
    %134 = vector.load %arg13[%c0_142, %c10_143] : memref<8x1024xf32, #tpu.memory_space<vmem>>, vector<8x768xf32>
    %c32_144 = arith.constant 32 : index
    %c0_145 = arith.constant 0 : index
    %135 = vector.load %arg11[%c32_144, %c0_145] : memref<216x768xf32, #tpu.memory_space<vmem>>, vector<8x768xf32>
    tpu.vector_store %arg11[%c32_144, %c0_145], %134 {strides = array<i32>} : memref<216x768xf32, #tpu.memory_space<vmem>>, vector<8x768xf32>,
    %c0_146 = arith.constant 0 : index
    %c11_147 = arith.constant 11 : index
    %136 = vector.load %arg13[%c0_146, %c11_147] : memref<8x1024xf32, #tpu.memory_space<vmem>>, vector<8x768xf32>
    %c40_148 = arith.constant 40 : index
    %c0_149 = arith.constant 0 : index
    %137 = vector.load %arg11[%c40_148, %c0_149] : memref<216x768xf32, #tpu.memory_space<vmem>>, vector<8x768xf32>
    tpu.vector_store %arg11[%c40_148, %c0_149], %136 {strides = array<i32>} : memref<216x768xf32, #tpu.memory_space<vmem>>, vector<8x768xf32>,
    %c0_150 = arith.constant 0 : index
    %c18_151 = arith.constant 18 : index
    %138 = vector.load %arg13[%c0_150, %c18_151] : memref<8x1024xf32, #tpu.memory_space<vmem>>, vector<8x768xf32>
    %c48_152 = arith.constant 48 : index
    %c0_153 = arith.constant 0 : index
    %139 = vector.load %arg11[%c48_152, %c0_153] : memref<216x768xf32, #tpu.memory_space<vmem>>, vector<8x768xf32>
    tpu.vector_store %arg11[%c48_152, %c0_153], %138 {strides = array<i32>} : memref<216x768xf32, #tpu.memory_space<vmem>>, vector<8x768xf32>,
    %c0_154 = arith.constant 0 : index
    %c19_155 = arith.constant 19 : index
    %140 = vector.load %arg13[%c0_154, %c19_155] : memref<8x1024xf32, #tpu.memory_space<vmem>>, vector<8x768xf32>
    %c56_156 = arith.constant 56 : index
    %c0_157 = arith.constant 0 : index
    %141 = vector.load %arg11[%c56_156, %c0_157] : memref<216x768xf32, #tpu.memory_space<vmem>>, vector<8x768xf32>
    tpu.vector_store %arg11[%c56_156, %c0_157], %140 {strides = array<i32>} : memref<216x768xf32, #tpu.memory_space<vmem>>, vector<8x768xf32>,
    %c0_158 = arith.constant 0 : index
    %c20_159 = arith.constant 20 : index
    %142 = vector.load %arg13[%c0_158, %c20_159] : memref<8x1024xf32, #tpu.memory_space<vmem>>, vector<8x768xf32>
    %c64_160 = arith.constant 64 : index
    %c0_161 = arith.constant 0 : index
    %143 = vector.load %arg11[%c64_160, %c0_161] : memref<216x768xf32, #tpu.memory_space<vmem>>, vector<8x768xf32>
    tpu.vector_store %arg11[%c64_160, %c0_161], %142 {strides = array<i32>} : memref<216x768xf32, #tpu.memory_space<vmem>>, vector<8x768xf32>,
    %c0_162 = arith.constant 0 : index
    %c81_163 = arith.constant 81 : index
    %144 = vector.load %arg13[%c0_162, %c81_163] : memref<8x1024xf32, #tpu.memory_space<vmem>>, vector<8x768xf32>
    %c72_164 = arith.constant 72 : index
    %c0_165 = arith.constant 0 : index
    %145 = vector.load %arg11[%c72_164, %c0_165] : memref<216x768xf32, #tpu.memory_space<vmem>>, vector<8x768xf32>
    tpu.vector_store %arg11[%c72_164, %c0_165], %144 {strides = array<i32>} : memref<216x768xf32, #tpu.memory_space<vmem>>, vector<8x768xf32>,
    %c0_166 = arith.constant 0 : index
    %c82_167 = arith.constant 82 : index
    %146 = vector.load %arg13[%c0_166, %c82_167] : memref<8x1024xf32, #tpu.memory_space<vmem>>, vector<8x768xf32>
    %c80_168 = arith.constant 80 : index
    %c0_169 = arith.constant 0 : index
    %147 = vector.load %arg11[%c80_168, %c0_169] : memref<216x768xf32, #tpu.memory_space<vmem>>, vector<8x768xf32>
    tpu.vector_store %arg11[%c80_168, %c0_169], %146 {strides = array<i32>} : memref<216x768xf32, #tpu.memory_space<vmem>>, vector<8x768xf32>,
    %c0_170 = arith.constant 0 : index
    %c83_171 = arith.constant 83 : index
    %148 = vector.load %arg13[%c0_170, %c83_171] : memref<8x1024xf32, #tpu.memory_space<vmem>>, vector<8x768xf32>
    %c88_172 = arith.constant 88 : index
    %c0_173 = arith.constant 0 : index
    %149 = vector.load %arg11[%c88_172, %c0_173] : memref<216x768xf32, #tpu.memory_space<vmem>>, vector<8x768xf32>
    tpu.vector_store %arg11[%c88_172, %c0_173], %148 {strides = array<i32>} : memref<216x768xf32, #tpu.memory_space<vmem>>, vector<8x768xf32>,
    %c0_174 = arith.constant 0 : index
    %c90_175 = arith.constant 90 : index
    %150 = vector.load %arg13[%c0_174, %c90_175] : memref<8x1024xf32, #tpu.memory_space<vmem>>, vector<8x768xf32>
    %c96_176 = arith.constant 96 : index
    %c0_177 = arith.constant 0 : index
    %151 = vector.load %arg11[%c96_176, %c0_177] : memref<216x768xf32, #tpu.memory_space<vmem>>, vector<8x768xf32>
    tpu.vector_store %arg11[%c96_176, %c0_177], %150 {strides = array<i32>} : memref<216x768xf32, #tpu.memory_space<vmem>>, vector<8x768xf32>,
    %c0_178 = arith.constant 0 : index
    %c91_179 = arith.constant 91 : index
    %152 = vector.load %arg13[%c0_178, %c91_179] : memref<8x1024xf32, #tpu.memory_space<vmem>>, vector<8x768xf32>
    %c104_180 = arith.constant 104 : index
    %c0_181 = arith.constant 0 : index
    %153 = vector.load %arg11[%c104_180, %c0_181] : memref<216x768xf32, #tpu.memory_space<vmem>>, vector<8x768xf32>
    tpu.vector_store %arg11[%c104_180, %c0_181], %152 {strides = array<i32>} : memref<216x768xf32, #tpu.memory_space<vmem>>, vector<8x768xf32>,
    %c0_182 = arith.constant 0 : index
    %c92_183 = arith.constant 92 : index
    %154 = vector.load %arg13[%c0_182, %c92_183] : memref<8x1024xf32, #tpu.memory_space<vmem>>, vector<8x768xf32>
    %c112 = arith.constant 112 : index
    %c0_184 = arith.constant 0 : index
    %155 = vector.load %arg11[%c112, %c0_184] : memref<216x768xf32, #tpu.memory_space<vmem>>, vector<8x768xf32>
    tpu.vector_store %arg11[%c112, %c0_184], %154 {strides = array<i32>} : memref<216x768xf32, #tpu.memory_space<vmem>>, vector<8x768xf32>,
    %c0_185 = arith.constant 0 : index
    %c99_186 = arith.constant 99 : index
    %156 = vector.load %arg13[%c0_185, %c99_186] : memref<8x1024xf32, #tpu.memory_space<vmem>>, vector<8x768xf32>
    %c120 = arith.constant 120 : index
    %c0_187 = arith.constant 0 : index
    %157 = vector.load %arg11[%c120, %c0_187] : memref<216x768xf32, #tpu.memory_space<vmem>>, vector<8x768xf32>
    tpu.vector_store %arg11[%c120, %c0_187], %156 {strides = array<i32>} : memref<216x768xf32, #tpu.memory_space<vmem>>, vector<8x768xf32>,
    %c0_188 = arith.constant 0 : index
    %c100_189 = arith.constant 100 : index
    %158 = vector.load %arg13[%c0_188, %c100_189] : memref<8x1024xf32, #tpu.memory_space<vmem>>, vector<8x768xf32>
    %c128_190 = arith.constant 128 : index
    %c0_191 = arith.constant 0 : index
    %159 = vector.load %arg11[%c128_190, %c0_191] : memref<216x768xf32, #tpu.memory_space<vmem>>, vector<8x768xf32>
    tpu.vector_store %arg11[%c128_190, %c0_191], %158 {strides = array<i32>} : memref<216x768xf32, #tpu.memory_space<vmem>>, vector<8x768xf32>,
    %c0_192 = arith.constant 0 : index
    %c101_193 = arith.constant 101 : index
    %160 = vector.load %arg13[%c0_192, %c101_193] : memref<8x1024xf32, #tpu.memory_space<vmem>>, vector<8x768xf32>
    %c136 = arith.constant 136 : index
    %c0_194 = arith.constant 0 : index
    %161 = vector.load %arg11[%c136, %c0_194] : memref<216x768xf32, #tpu.memory_space<vmem>>, vector<8x768xf32>
    tpu.vector_store %arg11[%c136, %c0_194], %160 {strides = array<i32>} : memref<216x768xf32, #tpu.memory_space<vmem>>, vector<8x768xf32>,
    %c0_195 = arith.constant 0 : index
    %c162_196 = arith.constant 162 : index
    %162 = vector.load %arg13[%c0_195, %c162_196] : memref<8x1024xf32, #tpu.memory_space<vmem>>, vector<8x768xf32>
    %c144 = arith.constant 144 : index
    %c0_197 = arith.constant 0 : index
    %163 = vector.load %arg11[%c144, %c0_197] : memref<216x768xf32, #tpu.memory_space<vmem>>, vector<8x768xf32>
    tpu.vector_store %arg11[%c144, %c0_197], %162 {strides = array<i32>} : memref<216x768xf32, #tpu.memory_space<vmem>>, vector<8x768xf32>,
    %c0_198 = arith.constant 0 : index
    %c163_199 = arith.constant 163 : index
    %164 = vector.load %arg13[%c0_198, %c163_199] : memref<8x1024xf32, #tpu.memory_space<vmem>>, vector<8x768xf32>
    %c152 = arith.constant 152 : index
    %c0_200 = arith.constant 0 : index
    %165 = vector.load %arg11[%c152, %c0_200] : memref<216x768xf32, #tpu.memory_space<vmem>>, vector<8x768xf32>
    tpu.vector_store %arg11[%c152, %c0_200], %164 {strides = array<i32>} : memref<216x768xf32, #tpu.memory_space<vmem>>, vector<8x768xf32>,
    %c0_201 = arith.constant 0 : index
    %c164_202 = arith.constant 164 : index
    %166 = vector.load %arg13[%c0_201, %c164_202] : memref<8x1024xf32, #tpu.memory_space<vmem>>, vector<8x768xf32>
    %c160_203 = arith.constant 160 : index
    %c0_204 = arith.constant 0 : index
    %167 = vector.load %arg11[%c160_203, %c0_204] : memref<216x768xf32, #tpu.memory_space<vmem>>, vector<8x768xf32>
    tpu.vector_store %arg11[%c160_203, %c0_204], %166 {strides = array<i32>} : memref<216x768xf32, #tpu.memory_space<vmem>>, vector<8x768xf32>,
    %c0_205 = arith.constant 0 : index
    %c171_206 = arith.constant 171 : index
    %168 = vector.load %arg13[%c0_205, %c171_206] : memref<8x1024xf32, #tpu.memory_space<vmem>>, vector<8x768xf32>
    %c168 = arith.constant 168 : index
    %c0_207 = arith.constant 0 : index
    %169 = vector.load %arg11[%c168, %c0_207] : memref<216x768xf32, #tpu.memory_space<vmem>>, vector<8x768xf32>
    tpu.vector_store %arg11[%c168, %c0_207], %168 {strides = array<i32>} : memref<216x768xf32, #tpu.memory_space<vmem>>, vector<8x768xf32>,
    %c0_208 = arith.constant 0 : index
    %c172_209 = arith.constant 172 : index
    %170 = vector.load %arg13[%c0_208, %c172_209] : memref<8x1024xf32, #tpu.memory_space<vmem>>, vector<8x768xf32>
    %c176 = arith.constant 176 : index
    %c0_210 = arith.constant 0 : index
    %171 = vector.load %arg11[%c176, %c0_210] : memref<216x768xf32, #tpu.memory_space<vmem>>, vector<8x768xf32>
    tpu.vector_store %arg11[%c176, %c0_210], %170 {strides = array<i32>} : memref<216x768xf32, #tpu.memory_space<vmem>>, vector<8x768xf32>,
    %c0_211 = arith.constant 0 : index
    %c173_212 = arith.constant 173 : index
    %172 = vector.load %arg13[%c0_211, %c173_212] : memref<8x1024xf32, #tpu.memory_space<vmem>>, vector<8x768xf32>
    %c184 = arith.constant 184 : index
    %c0_213 = arith.constant 0 : index
    %173 = vector.load %arg11[%c184, %c0_213] : memref<216x768xf32, #tpu.memory_space<vmem>>, vector<8x768xf32>
    tpu.vector_store %arg11[%c184, %c0_213], %172 {strides = array<i32>} : memref<216x768xf32, #tpu.memory_space<vmem>>, vector<8x768xf32>,
    %c0_214 = arith.constant 0 : index
    %c180_215 = arith.constant 180 : index
    %174 = vector.load %arg13[%c0_214, %c180_215] : memref<8x1024xf32, #tpu.memory_space<vmem>>, vector<8x768xf32>
    %c192_216 = arith.constant 192 : index
    %c0_217 = arith.constant 0 : index
    %175 = vector.load %arg11[%c192_216, %c0_217] : memref<216x768xf32, #tpu.memory_space<vmem>>, vector<8x768xf32>
    tpu.vector_store %arg11[%c192_216, %c0_217], %174 {strides = array<i32>} : memref<216x768xf32, #tpu.memory_space<vmem>>, vector<8x768xf32>,
    %c0_218 = arith.constant 0 : index
    %c181_219 = arith.constant 181 : index
    %176 = vector.load %arg13[%c0_218, %c181_219] : memref<8x1024xf32, #tpu.memory_space<vmem>>, vector<8x768xf32>
    %c200 = arith.constant 200 : index
    %c0_220 = arith.constant 0 : index
    %177 = vector.load %arg11[%c200, %c0_220] : memref<216x768xf32, #tpu.memory_space<vmem>>, vector<8x768xf32>
    tpu.vector_store %arg11[%c200, %c0_220], %176 {strides = array<i32>} : memref<216x768xf32, #tpu.memory_space<vmem>>, vector<8x768xf32>,
    %c0_221 = arith.constant 0 : index
    %c182_222 = arith.constant 182 : index
    %178 = vector.load %arg13[%c0_221, %c182_222] : memref<8x1024xf32, #tpu.memory_space<vmem>>, vector<8x768xf32>
    %c208 = arith.constant 208 : index
    %c0_223 = arith.constant 0 : index
    %179 = vector.load %arg11[%c208, %c0_223] : memref<216x768xf32, #tpu.memory_space<vmem>>, vector<8x768xf32>
    tpu.vector_store %arg11[%c208, %c0_223], %178 {strides = array<i32>} : memref<216x768xf32, #tpu.memory_space<vmem>>, vector<8x768xf32>,
    %c0_224 = arith.constant 0 : index
    %c0_225 = arith.constant 0 : index
    %180 = vector.load %arg5[%c0_224, %c0_225] : memref<8x216xbf16, #tpu.memory_space<vmem>>, vector<8x216xbf16>
    %c0_226 = arith.constant 0 : index
    %c0_227 = arith.constant 0 : index
    %181 = vector.load %arg11[%c0_226, %c0_227] : memref<216x768xf32, #tpu.memory_space<vmem>>, vector<216x768xf32>
    %182 = arith.truncf %181 : vector<216x768xf32> to vector<216x768xbf16>
    %cst_228 = arith.constant dense<0.000000e+00> : vector<8x768xf32>
    %183 = tpu.matmul %180, %182, %cst_228 {dimension_numbers = #tpu.dot_dimension_numbers<[1], [0], [0], [1], [0, 0, 1, 1], [], []>} : vector<8x216xbf16>, vector<216x768xbf16>, vector<8x768xf32> -> vector<8x768xf32>
    %184 = vector.broadcast %1 : vector<1x768xf32> to vector<8x768xf32>
    %185 = arith.mulf %183, %184 : vector<8x768xf32>
    %cst_229 = arith.constant dense<0.000000e+00> : vector<8xf32>
    %186 = vector.multi_reduction <add>, %185, %cst_229 [1] : vector<8x768xf32> to vector<8xf32>
    %187 = vector.shape_cast %186 : vector<8xf32> to vector<8x1xf32>
    %cst_230 = arith.constant 0.002915452 : f32
    %188 = vector.broadcast %cst_230 : f32 to vector<8x1xf32>
    %189 = arith.mulf %187, %188 : vector<8x1xf32>
    %190 = vector.broadcast %189 : vector<8x1xf32> to vector<8x768xf32>
    %191 = arith.subf %183, %190 : vector<8x768xf32>
    %192 = vector.broadcast %1 : vector<1x768xf32> to vector<8x768xf32>
    %193 = arith.mulf %191, %192 : vector<8x768xf32>
    %194 = arith.mulf %193, %193 : vector<8x768xf32>
    %cst_231 = arith.constant dense<0.000000e+00> : vector<8xf32>
    %195 = vector.multi_reduction <add>, %194, %cst_231 [1] : vector<8x768xf32> to vector<8xf32>
    %196 = vector.shape_cast %195 : vector<8xf32> to vector<8x1xf32>
    %cst_232 = arith.constant 0.002915452 : f32
    %197 = vector.broadcast %cst_232 : f32 to vector<8x1xf32>
    %198 = arith.mulf %196, %197 : vector<8x1xf32>
    %cst_233 = arith.constant 9.99999974E-6 : f32
    %199 = vector.broadcast %cst_233 : f32 to vector<8x1xf32>
    %200 = arith.addf %198, %199 : vector<8x1xf32>
    %201 = math.rsqrt %200 : vector<8x1xf32>
    %202 = vector.broadcast %201 : vector<8x1xf32> to vector<8x768xf32>
    %203 = arith.mulf %191, %202 : vector<8x768xf32>
    %cst_234 = arith.constant 0.000000e+00 : f32
    %204 = vector.broadcast %cst_234 : f32 to vector<8x768xf32>
    %205 = arith.cmpf oge, %203, %204 : vector<8x768xf32>
    %cst_235 = arith.constant 0.00999999977 : f32
    %206 = vector.broadcast %cst_235 : f32 to vector<8x768xf32>
    %207 = arith.mulf %206, %203 : vector<8x768xf32>
    %208 = arith.select %205, %203, %207 : vector<8x768xi1>, vector<8x768xf32>
    %209 = vector.broadcast %1 : vector<1x768xf32> to vector<8x768xf32>
    %210 = arith.mulf %208, %209 : vector<8x768xf32>
    %c0_236 = arith.constant 0 : index
    %c0_237 = arith.constant 0 : index
    %c0_238 = arith.constant 0 : index
    %211 = vector.load %arg8[%c0_236, %c0_237, %c0_238] : memref<1x8x768xf32, #tpu.memory_space<vmem>>, vector<1x8x768xf32>
    %212 = vector.shape_cast %211 : vector<1x8x768xf32> to vector<8x768xf32>
    %213 = vector.shape_cast %210 : vector<8x768xf32> to vector<1x8x768xf32>
    tpu.vector_store %arg8[%c0_236, %c0_237, %c0_238], %213 {strides = array<i32>} : memref<1x8x768xf32, #tpu.memory_space<vmem>>, vector<1x8x768xf32>,
    return
  }
  func.func @transform_0(%arg0: i32) -> (i32, i32, i32) {
    %c0_i32 = arith.constant 0 : i32
    %c0_i32_0 = arith.constant 0 : i32
    %c0_i32_1 = arith.constant 0 : i32
    return %arg0, %c0_i32, %c0_i32_0 : i32, i32, i32
  }
  func.func @transform_1(%arg0: i32) -> (i32, i32) {
    %c0_i32 = arith.constant 0 : i32
    %c0_i32_0 = arith.constant 0 : i32
    %c0_i32_1 = arith.constant 0 : i32
    return %c0_i32, %c0_i32_0 : i32, i32
  }
  func.func @transform_2(%arg0: i32) -> (i32, i32) {
    %c0_i32 = arith.constant 0 : i32
    %c0_i32_0 = arith.constant 0 : i32
    %c0_i32_1 = arith.constant 0 : i32
    return %c0_i32, %c0_i32_0 : i32, i32
  }
  func.func @transform_3(%arg0: i32) -> (i32, i32) {
    %c0_i32 = arith.constant 0 : i32
    %c0_i32_0 = arith.constant 0 : i32
    %c0_i32_1 = arith.constant 0 : i32
    return %c0_i32, %c0_i32_0 : i32, i32
  }
  func.func @transform_4(%arg0: i32) -> (i32, i32) {
    %c0_i32 = arith.constant 0 : i32
    %c0_i32_0 = arith.constant 0 : i32
    %c0_i32_1 = arith.constant 0 : i32
    return %c0_i32, %c0_i32_0 : i32, i32
  }
  func.func @transform_5(%arg0: i32) -> (i32, i32) {
    %c0_i32 = arith.constant 0 : i32
    %c0_i32_0 = arith.constant 0 : i32
    %c0_i32_1 = arith.constant 0 : i32
    return %c0_i32, %c0_i32_0 : i32, i32
  }
  func.func @transform_6(%arg0: i32) -> (i32, i32) {
    %c0_i32 = arith.constant 0 : i32
    %c0_i32_0 = arith.constant 0 : i32
    %c0_i32_1 = arith.constant 0 : i32
    return %c0_i32, %c0_i32_0 : i32, i32
  }
  func.func @transform_7(%arg0: i32) -> (i32, i32, i32) {
    %c0_i32 = arith.constant 0 : i32
    %c0_i32_0 = arith.constant 0 : i32
    %c0_i32_1 = arith.constant 0 : i32
    return %arg0, %c0_i32, %c0_i32_0 : i32, i32, i32
  }
}

</mosaic_0001>

<llo_original>
// kernel: down_forward.1
$region0: #{down_forward.1}
  #allocation0 [shape = 'u32[]', space=smem, size = 0x4, offset = 0x4, fixed_abs, tag = 'smem constant byte address 0x4 - core index']
  #allocation1 [shape = 'u32[144,128]{1,0:T(1,128)}', space=vmem, size = 0x12000, scoped, tag = 'internal scratch']
  #allocation2 [shape = 'f32[256,768]{1,0:T(8,128)}', space=vmem, size = 0xc0000, scoped, tag = 'scratch operand']
  #allocation3 [shape = 'f32[108,768]{1,0:T(8,128)}', space=vmem, size = 0x54000, scoped, tag = 'scratch operand']
  #allocation4 [shape = 'f32[216,768]{1,0:T(8,128)}', space=vmem, size = 0xa2000, scoped, tag = 'scratch operand']
  #allocation5 [shape = 'f32[4,1024]{1,0:T(4,128)}', space=vmem, size = 0x4000, scoped, tag = 'scratch operand']
  #allocation6 [shape = 'f32[8,1024]{1,0:T(8,128)}', space=vmem, size = 0x8000, scoped, tag = 'scratch operand']
  %s0 = inlined_call_operand.vmem [shape: f32[2,32,896], index: 0, kind: input, shape index: {}]
  %s1 = inlined_call_operand.vmem [shape: bf16[4,256], index: 1, kind: input, shape index: {}]
  %s2 = inlined_call_operand.vmem [shape: f32[4,1], index: 2, kind: input, shape index: {}]
  %s3 = inlined_call_operand.vmem [shape: bf16[8,108], index: 3, kind: input, shape index: {}]
  %s4 = inlined_call_operand.vmem [shape: bf16[8,216], index: 4, kind: input, shape index: {}]
  %s5 = inlined_call_operand.vmem [shape: f32[1,768], index: 5, kind: input, shape index: {}]
  %s6 = inlined_call_operand.vmem [shape: f32[1,768], index: 6, kind: input, shape index: {}]
  %s7 = inlined_call_operand.vmem [shape: f32[2,8,768], index: 7, kind: output, shape index: {}]
  %s8 = sld [smem:[#allocation0]]
  $region61: #{down_forward.1} parent=0
    _
  %s10 = ssub.s32 1, %s8
  %s11 = scalar_select 0, %s10, %s8
  loop: start=0, step=1, limit=4
  $region2: #{down_forward.1} parent=0 // loop_pre_header
    _
  $region3: #{down_forward.1} parent=0 // loop_header
    %s13 = sphi 0, %s17
    %p14 = scmp.ge.s32.totalorder %s13, 4
    %s23 = sphi 0, %s25
    %s26 = sphi 0, %s23
    %s27 = sphi 0, %s26
    %s43 = sphi 0, %s27
    %s47 = sphi 0, %s47
    %s49 = sphi 0, %s47
    %s50 = sphi 0, %s49
    %s64 = sphi 0, %s50
    %s68 = sphi 0, %s68
    %s70 = sphi 0, %s68
    %s71 = sphi 0, %s70
    %s85 = sphi 0, %s71
    %s89 = sphi 0, %s89
    %s91 = sphi 0, %s89
    %s92 = sphi 0, %s91
    %s106 = sphi 0, %s92
    %s110 = sphi 0, %s110
    %s112 = sphi 0, %s110
    %s113 = sphi 0, %s112
    %s127 = sphi 0, %s113
    %s131 = sphi 0, %s131
    %s133 = sphi 0, %s131
    %s134 = sphi 0, %s133
    %s148 = sphi 0, %s134
    %s152 = sphi 0, %s152
    %s154 = sphi 0, %s152
    %s155 = sphi 0, %s154
    %s169 = sphi 0, %s155
    %s175 = sphi 0, %s177
    %s178 = sphi 0, %s175
    %s179 = sphi 0, %s178
    %s195 = sphi 0, %s179
  $region4: #{down_forward.1} parent=0 // loop_header_branch
    %16 = sbr.rel (%p14) target = $region8
  $region5: #{down_forward.1} parent=0 // loop_body
    %s18 = ssub.s32 %s13, 1
    %s19 = ssub.s32 %s13, 2
    %s20 = sadd.s32 %s13, 1
    %s21 = ssub.s32 %s13, %s20
    %p22 = scmp.eq.s32.totalorder %s21, 0
    %s24 = sadd.s32 %s23, 1
    %s25 = scalar_select %p22, %s23, %s24
    %p28 = pneg %p22
    %p29 = scmp.eq.s32.totalorder %s13, 1
    %p30 = por %p28, %p29
    %p31 = scmp.ne.s32.totalorder %s23, %s26
    %p32 = scmp.eq.s32.totalorder %s13, 0
    %p33 = por %p31, %p32
    %p34 = scmp.ne.s32.totalorder %s23, %s26
    %p35 = scmp.eq.s32.totalorder %s18, 1
    %p36 = por %p34, %p35
    %p37 = scmp.ne.s32.totalorder %s26, %s27
    %p38 = scmp.eq.s32.totalorder %s18, 0
    %p39 = por %p37, %p38
    %p40 = scmp.ne.s32.totalorder %s26, %s27
    %p41 = scmp.eq.s32.totalorder %s19, 1
    %p42 = por %p40, %p41
    %p44 = scmp.ne.s32.totalorder %s27, %s43
    %p45 = scmp.eq.s32.totalorder %s19, 0
    %p46 = por %p44, %p45
    %s48 = sadd.s32 %s47, 1
    %p51 = scmp.eq.s32.totalorder %s13, 1
    %p52 = scmp.ne.s32.totalorder %s47, %s49
    %p53 = scmp.eq.s32.totalorder %s13, 0
    %p54 = por %p52, %p53
    %p55 = scmp.ne.s32.totalorder %s47, %s49
    %p56 = scmp.eq.s32.totalorder %s18, 1
    %p57 = por %p55, %p56
    %p58 = scmp.ne.s32.totalorder %s49, %s50
    %p59 = scmp.eq.s32.totalorder %s18, 0
    %p60 = por %p58, %p59
    %p61 = scmp.ne.s32.totalorder %s49, %s50
    %p62 = scmp.eq.s32.totalorder %s19, 1
    %p63 = por %p61, %p62
    %p65 = scmp.ne.s32.totalorder %s50, %s64
    %p66 = scmp.eq.s32.totalorder %s19, 0
    %p67 = por %p65, %p66
    %s69 = sadd.s32 %s68, 1
    %p72 = scmp.eq.s32.totalorder %s13, 1
    %p73 = scmp.ne.s32.totalorder %s68, %s70
    %p74 = scmp.eq.s32.totalorder %s13, 0
    %p75 = por %p73, %p74
    %p76 = scmp.ne.s32.totalorder %s68, %s70
    %p77 = scmp.eq.s32.totalorder %s18, 1
    %p78 = por %p76, %p77
    %p79 = scmp.ne.s32.totalorder %s70, %s71
    %p80 = scmp.eq.s32.totalorder %s18, 0
    %p81 = por %p79, %p80
    %p82 = scmp.ne.s32.totalorder %s70, %s71
    %p83 = scmp.eq.s32.totalorder %s19, 1
    %p84 = por %p82, %p83
    %p86 = scmp.ne.s32.totalorder %s71, %s85
    %p87 = scmp.eq.s32.totalorder %s19, 0
    %p88 = por %p86, %p87
    %s90 = sadd.s32 %s89, 1
    %p93 = scmp.eq.s32.totalorder %s13, 1
    %p94 = scmp.ne.s32.totalorder %s89, %s91
    %p95 = scmp.eq.s32.totalorder %s13, 0
    %p96 = por %p94, %p95
    %p97 = scmp.ne.s32.totalorder %s89, %s91
    %p98 = scmp.eq.s32.totalorder %s18, 1
    %p99 = por %p97, %p98
    %p100 = scmp.ne.s32.totalorder %s91, %s92
    %p101 = scmp.eq.s32.totalorder %s18, 0
    %p102 = por %p100, %p101
    %p103 = scmp.ne.s32.totalorder %s91, %s92
    %p104 = scmp.eq.s32.totalorder %s19, 1
    %p105 = por %p103, %p104
    %p107 = scmp.ne.s32.totalorder %s92, %s106
    %p108 = scmp.eq.s32.totalorder %s19, 0
    %p109 = por %p107, %p108
    %s111 = sadd.s32 %s110, 1
    %p114 = scmp.eq.s32.totalorder %s13, 1
    %p115 = scmp.ne.s32.totalorder %s110, %s112
    %p116 = scmp.eq.s32.totalorder %s13, 0
    %p117 = por %p115, %p116
    %p118 = scmp.ne.s32.totalorder %s110, %s112
    %p119 = scmp.eq.s32.totalorder %s18, 1
    %p120 = por %p118, %p119
    %p121 = scmp.ne.s32.totalorder %s112, %s113
    %p122 = scmp.eq.s32.totalorder %s18, 0
    %p123 = por %p121, %p122
    %p124 = scmp.ne.s32.totalorder %s112, %s113
    %p125 = scmp.eq.s32.totalorder %s19, 1
    %p126 = por %p124, %p125
    %p128 = scmp.ne.s32.totalorder %s113, %s127
    %p129 = scmp.eq.s32.totalorder %s19, 0
    %p130 = por %p128, %p129
    %s132 = sadd.s32 %s131, 1
    %p135 = scmp.eq.s32.totalorder %s13, 1
    %p136 = scmp.ne.s32.totalorder %s131, %s133
    %p137 = scmp.eq.s32.totalorder %s13, 0
    %p138 = por %p136, %p137
    %p139 = scmp.ne.s32.totalorder %s131, %s133
    %p140 = scmp.eq.s32.totalorder %s18, 1
    %p141 = por %p139, %p140
    %p142 = scmp.ne.s32.totalorder %s133, %s134
    %p143 = scmp.eq.s32.totalorder %s18, 0
    %p144 = por %p142, %p143
    %p145 = scmp.ne.s32.totalorder %s133, %s134
    %p146 = scmp.eq.s32.totalorder %s19, 1
    %p147 = por %p145, %p146
    %p149 = scmp.ne.s32.totalorder %s134, %s148
    %p150 = scmp.eq.s32.totalorder %s19, 0
    %p151 = por %p149, %p150
    %s153 = sadd.s32 %s152, 1
    %p156 = scmp.eq.s32.totalorder %s13, 1
    %p157 = scmp.ne.s32.totalorder %s152, %s154
    %p158 = scmp.eq.s32.totalorder %s13, 0
    %p159 = por %p157, %p158
    %p160 = scmp.ne.s32.totalorder %s152, %s154
    %p161 = scmp.eq.s32.totalorder %s18, 1
    %p162 = por %p160, %p161
    %p163 = scmp.ne.s32.totalorder %s154, %s155
    %p164 = scmp.eq.s32.totalorder %s18, 0
    %p165 = por %p163, %p164
    %p166 = scmp.ne.s32.totalorder %s154, %s155
    %p167 = scmp.eq.s32.totalorder %s19, 1
    %p168 = por %p166, %p167
    %p170 = scmp.ne.s32.totalorder %s155, %s169
    %p171 = scmp.eq.s32.totalorder %s19, 0
    %p172 = por %p170, %p171
    %s173 = ssub.s32 %s13, %s20
    %p174 = scmp.eq.s32.totalorder %s173, 0
    %s176 = sadd.s32 %s175, 1
    %s177 = scalar_select %p174, %s175, %s176
    %p180 = pneg %p174
    %p181 = scmp.eq.s32.totalorder %s13, 1
    %p182 = por %p180, %p181
    %p183 = scmp.ne.s32.totalorder %s175, %s178
    %p184 = scmp.eq.s32.totalorder %s13, 0
    %p185 = por %p183, %p184
    %p186 = scmp.ne.s32.totalorder %s175, %s178
    %p187 = scmp.eq.s32.totalorder %s18, 1
    %p188 = por %p186, %p187
    %p189 = scmp.ne.s32.totalorder %s178, %s179
    %p190 = scmp.eq.s32.totalorder %s18, 0
    %p191 = por %p189, %p190
    %p192 = scmp.ne.s32.totalorder %s178, %s179
    %p193 = scmp.eq.s32.totalorder %s19, 1
    %p194 = por %p192, %p193
    %p196 = scmp.ne.s32.totalorder %s179, %s195
    %p197 = scmp.eq.s32.totalorder %s19, 0
    %p198 = por %p196, %p197
    %p199 = scmp.le.s32.totalorder 1, %s13
    %p200 = scmp.lt.s32.totalorder %s13, 3
    %p201 = pnand %p199, %p200
    %p202 = pneg %p201
    // Predicated region
    $region9: #{down_forward.1} parent=5 // pred_check
      _
    $region10: #{down_forward.1} parent=5 // pred_check_branch
      %204 = sbr.rel (%p201) target = $region12
    $region11: #{down_forward.1} parent=5 // pred_region
      %s205 = ssub.s32 %s13, 1
      // Predicated region
      $region13: #{down_forward.1} parent=11 // pred_check
        %p206 = pneg %p60
      $region14: #{down_forward.1} parent=11 // pred_check_branch
        %208 = sbr.rel (%p206) target = $region16
      $region15: #{down_forward.1} parent=11 // pred_region
        _
      $region16: #{down_forward.1} parent=11 // pred_fallthru
        _
      // Predicated region
      $region17: #{down_forward.1} parent=11 // pred_check
        %p209 = pneg %p81
      $region18: #{down_forward.1} parent=11 // pred_check_branch
        %211 = sbr.rel (%p209) target = $region20
      $region19: #{down_forward.1} parent=11 // pred_region
        _
      $region20: #{down_forward.1} parent=11 // pred_fallthru
        _
      // Predicated region
      $region21: #{down_forward.1} parent=11 // pred_check
        %p212 = pneg %p102
      $region22: #{down_forward.1} parent=11 // pred_check_branch
        %214 = sbr.rel (%p212) target = $region24
      $region23: #{down_forward.1} parent=11 // pred_region
        _
      $region24: #{down_forward.1} parent=11 // pred_fallthru
        _
      // Predicated region
      $region25: #{down_forward.1} parent=11 // pred_check
        %p215 = pneg %p123
      $region26: #{down_forward.1} parent=11 // pred_check_branch
        %217 = sbr.rel (%p215) target = $region28
      $region27: #{down_forward.1} parent=11 // pred_region
        _
      $region28: #{down_forward.1} parent=11 // pred_fallthru
        _
      // Predicated region
      $region29: #{down_forward.1} parent=11 // pred_check
        %p218 = pneg %p144
      $region30: #{down_forward.1} parent=11 // pred_check_branch
        %220 = sbr.rel (%p218) target = $region32
      $region31: #{down_forward.1} parent=11 // pred_region
        _
      $region32: #{down_forward.1} parent=11 // pred_fallthru
        _
      // Predicated region
      $region33: #{down_forward.1} parent=11 // pred_check
        %p221 = pneg %p165
      $region34: #{down_forward.1} parent=11 // pred_check_branch
        %223 = sbr.rel (%p221) target = $region36
      $region35: #{down_forward.1} parent=11 // pred_region
        _
      $region36: #{down_forward.1} parent=11 // pred_fallthru
        _
    $region12: #{down_forward.1} parent=5 // pred_fallthru
      _
    %p224 = scmp.lt.s32.totalorder %s13, 2
    // Predicated region
    $region37: #{down_forward.1} parent=5 // pred_check
      %p225 = pneg %p224
    $region38: #{down_forward.1} parent=5 // pred_check_branch
      %227 = sbr.rel (%p225) target = $region40
    $region39: #{down_forward.1} parent=5 // pred_region
      // Predicated region
      $region41: #{down_forward.1} parent=39 // pred_check
        %p228 = pneg %p33
      $region42: #{down_forward.1} parent=39 // pred_check_branch
        %230 = sbr.rel (%p228) target = $region44
      $region43: #{down_forward.1} parent=39 // pred_region
        %p231 = scmp.lt.s32.totalorder %s13, 1
        %s232 = scalar_select %p231, %s13, 1
        %s233 = smul.addr %s232, 28
        %s234 = smul.addr %s233, 8
        %s235 = scalar_lea.vmem %s0, %s234
      $region44: #{down_forward.1} parent=39 // pred_fallthru
        _
    $region40: #{down_forward.1} parent=5 // pred_fallthru
      _
    %p236 = scmp.le.s32.totalorder 1, %s13
    %p237 = scmp.lt.s32.totalorder %s13, 3
    %p238 = pnand %p236, %p237
    %p239 = pneg %p238
    // Predicated region
    $region45: #{down_forward.1} parent=5 // pred_check
      _
    $region46: #{down_forward.1} parent=5 // pred_check_branch
      %241 = sbr.rel (%p238) target = $region48
    $region47: #{down_forward.1} parent=5 // pred_region
      %s242 = ssub.s32 %s13, 1
      %p243 = scmp.lt.s32.totalorder %s18, 1
      %s244 = scalar_select %p243, %s18, 1
      %s245 = smul.addr %s244, 28
      %s246 = smul.addr %s245, 8
      %s247 = scalar_lea.vmem %s0, %s246
      %p248 = pneg %p39
      %p249 = pneg %p36
      %p250 = pneg %p60
      %p251 = pneg %p57
      %p252 = pneg %p81
      %p253 = pneg %p78
      %p254 = pneg %p102
      %p255 = pneg %p99
      %p256 = pneg %p123
      %p257 = pneg %p120
      %p258 = pneg %p144
      %p259 = pneg %p141
      %p260 = pneg %p165
      %p261 = pneg %p162
      %p262 = pneg %p191
      %p263 = pneg %p188
      %p264 = scmp.lt.s32.totalorder %s18, 1
      %s265 = scalar_select %p264, %s18, 1
      %s266 = smul.addr %s265, 6
      %s267 = smul.addr %s266, 8
      %s268 = scalar_lea.vmem %s7, %s267
      %p269 = scmp.lt.s32.totalorder %s18, 1
      %s270 = scalar_select %p269, %s18, 1
      %s271 = smul.addr %s270, 28
      %s272 = smul.addr %s271, 8
      %s273 = scalar_lea.vmem %s0, %s272
      %p274 = scmp.lt.s32.totalorder %s18, 1
      %s275 = scalar_select %p274, %s18, 1
      %s276 = smul.addr %s275, 6
      %s277 = smul.addr %s276, 8
      %s278 = scalar_lea.vmem %s7, %s277
      %v280 = vld [vmem:[%s5] sm:$0x3f]
      %v281 = vld [vmem:[%s6] sm:$0x3f]
      %v282 = vld [vmem:[%s273] sm:$0xff]
      %v283 = vld [vmem:[%s273 + $0x8] sm:$0xff]
      %v284 = vld [vmem:[%s273 + $0x10] sm:$0xff]
      %v285 = vld [vmem:[%s273 + $0x18] sm:$0xff]
      %v286 = vld [vmem:[%s273 + $0x20] sm:$0xff]
      %v287 = vld [vmem:[%s273 + $0x28] sm:$0xff]
      %v288 = vld [vmem:[%s273 + $0x38] sm:$0xff]
      %v289 = vld [vmem:[%s273 + $0x40] sm:$0xff]
      %v290 = vld [vmem:[%s273 + $0x48] sm:$0xff]
      %v291 = vld [vmem:[%s273 + $0x50] sm:$0xff]
      %v292 = vld [vmem:[%s273 + $0x58] sm:$0xff]
      %v293 = vld [vmem:[%s273 + $0x60] sm:$0xff]
      %v294 = vld [vmem:[%s273 + $0x70] sm:$0xff]
      %v295 = vld [vmem:[%s273 + $0x78] sm:$0xff]
      %v296 = vld [vmem:[%s273 + $0x80] sm:$0xff]
      %v297 = vld [vmem:[%s273 + $0x88] sm:$0xff]
      %v298 = vld [vmem:[%s273 + $0x90] sm:$0xff]
      %v299 = vld [vmem:[%s273 + $0x98] sm:$0xff]
      %v300 = vld [vmem:[%s273 + $0xa8] sm:$0xff]
      %v301 = vld [vmem:[%s273 + $0xb0] sm:$0xff]
      %v302 = vld [vmem:[%s273 + $0xb8] sm:$0xff]
      %v303 = vld [vmem:[%s273 + $0xc0] sm:$0xff]
      %v304 = vld [vmem:[%s273 + $0xc8] sm:$0xff]
      %v305 = vld [vmem:[%s273 + $0xd0] sm:$0xff]
      %306 = vst [vmem:[#allocation2] sm:$0xff] %v282
      %307 = vst [vmem:[#allocation2 + $0x8] sm:$0xff] %v283
      %308 = vst [vmem:[#allocation2 + $0x10] sm:$0xff] %v284
      %309 = vst [vmem:[#allocation2 + $0x18] sm:$0xff] %v285
      %310 = vst [vmem:[#allocation2 + $0x20] sm:$0xff] %v286
      %311 = vst [vmem:[#allocation2 + $0x28] sm:$0xff] %v287
      %312 = vst [vmem:[#allocation2 + $0x30] sm:$0xff] %v288
      %313 = vst [vmem:[#allocation2 + $0x38] sm:$0xff] %v289
      %314 = vst [vmem:[#allocation2 + $0x40] sm:$0xff] %v290
      %315 = vst [vmem:[#allocation2 + $0x48] sm:$0xff] %v291
      %316 = vst [vmem:[#allocation2 + $0x50] sm:$0xff] %v292
      %317 = vst [vmem:[#allocation2 + $0x58] sm:$0xff] %v293
      %318 = vst [vmem:[#allocation2 + $0x60] sm:$0xff] %v294
      %319 = vst [vmem:[#allocation2 + $0x68] sm:$0xff] %v295
      %320 = vst [vmem:[#allocation2 + $0x70] sm:$0xff] %v296
      %321 = vst [vmem:[#allocation2 + $0x78] sm:$0xff] %v297
      %322 = vst [vmem:[#allocation2 + $0x80] sm:$0xff] %v298
      %323 = vst [vmem:[#allocation2 + $0x88] sm:$0xff] %v299
      %324 = vst [vmem:[#allocation2 + $0x90] sm:$0xff] %v300
      %325 = vst [vmem:[#allocation2 + $0x98] sm:$0xff] %v301
      %326 = vst [vmem:[#allocation2 + $0xa0] sm:$0xff] %v302
      %327 = vst [vmem:[#allocation2 + $0xa8] sm:$0xff] %v303
      %328 = vst [vmem:[#allocation2 + $0xb0] sm:$0xff] %v304
      %329 = vst [vmem:[#allocation2 + $0xb8] sm:$0xff] %v305
      %v330 = vld [vmem:[%s273] sm:$0xff]
      %v331 = vld [vmem:[%s273 + $0x8] sm:$0xff]
      %v332 = vld [vmem:[%s273 + $0x10] sm:$0xff]
      %v333 = vld [vmem:[%s273 + $0x18] sm:$0xff]
      %v334 = vld [vmem:[%s273 + $0x20] sm:$0xff]
      %v335 = vld [vmem:[%s273 + $0x28] sm:$0xff]
      %v336 = vld [vmem:[%s273 + $0x30] sm:$0xff]
      %v337 = vld [vmem:[%s273 + $0x38] sm:$0xff]
      %v338 = vld [vmem:[%s273 + $0x40] sm:$0xff]
      %v339 = vld [vmem:[%s273 + $0x48] sm:$0xff]
      %v340 = vld [vmem:[%s273 + $0x50] sm:$0xff]
      %v341 = vld [vmem:[%s273 + $0x58] sm:$0xff]
      %v342 = vld [vmem:[%s273 + $0x60] sm:$0xff]
      %v343 = vld [vmem:[%s273 + $0x68] sm:$0xff]
      %v344 = vld [vmem:[%s273 + $0x70] sm:$0xff]
      %v345 = vld [vmem:[%s273 + $0x78] sm:$0xff]
      %v346 = vld [vmem:[%s273 + $0x80] sm:$0xff]
      %v347 = vld [vmem:[%s273 + $0x88] sm:$0xff]
      %v348 = vld [vmem:[%s273 + $0x90] sm:$0xff]
      %v349 = vld [vmem:[%s273 + $0x98] sm:$0xff]
      %v350 = vld [vmem:[%s273 + $0xa0] sm:$0xff]
      %v351 = vld [vmem:[%s273 + $0xa8] sm:$0xff]
      %v352 = vld [vmem:[%s273 + $0xb0] sm:$0xff]
      %v353 = vld [vmem:[%s273 + $0xb8] sm:$0xff]
      %v354 = vld [vmem:[%s273 + $0xc0] sm:$0xff]
      %v355 = vld [vmem:[%s273 + $0xc8] sm:$0xff]
      %v356 = vld [vmem:[%s273 + $0xd0] sm:$0xff]
      %v357 = vld [vmem:[%s273 + $0xd8] sm:$0xff]
      %386 = vrot.lane.b32.xlu0 %v330, 127
      %v387 = vpop.permute.xlu0 %386
      %388 = vrot.lane.b32.xlu0 %v331, 127
      %v389 = vpop.permute.xlu0 %388
      %390 = vrot.lane.b32.xlu0 %v332, 127
      %v391 = vpop.permute.xlu0 %390
      %392 = vrot.lane.b32.xlu0 %v333, 127
      %v393 = vpop.permute.xlu0 %392
      %394 = vrot.lane.b32.xlu0 %v334, 127
      %v395 = vpop.permute.xlu0 %394
      %396 = vrot.lane.b32.xlu0 %v335, 127
      %v397 = vpop.permute.xlu0 %396
      %398 = vrot.lane.b32.xlu0 %v336, 127
      %v399 = vpop.permute.xlu0 %398
      %400 = vrot.lane.b32.xlu0 %v337, 127
      %v401 = vpop.permute.xlu0 %400
      %402 = vrot.lane.b32.xlu0 %v338, 127
      %v403 = vpop.permute.xlu0 %402
      %404 = vrot.lane.b32.xlu0 %v339, 127
      %v405 = vpop.permute.xlu0 %404
      %406 = vrot.lane.b32.xlu0 %v340, 127
      %v407 = vpop.permute.xlu0 %406
      %408 = vrot.lane.b32.xlu0 %v341, 127
      %v409 = vpop.permute.xlu0 %408
      %410 = vrot.lane.b32.xlu0 %v342, 127
      %v411 = vpop.permute.xlu0 %410
      %412 = vrot.lane.b32.xlu0 %v343, 127
      %v413 = vpop.permute.xlu0 %412
      %414 = vrot.lane.b32.xlu0 %v344, 127
      %v415 = vpop.permute.xlu0 %414
      %416 = vrot.lane.b32.xlu0 %v345, 127
      %v417 = vpop.permute.xlu0 %416
      %418 = vrot.lane.b32.xlu0 %v346, 127
      %v419 = vpop.permute.xlu0 %418
      %420 = vrot.lane.b32.xlu0 %v347, 127
      %v421 = vpop.permute.xlu0 %420
      %422 = vrot.lane.b32.xlu0 %v348, 127
      %v423 = vpop.permute.xlu0 %422
      %424 = vrot.lane.b32.xlu0 %v349, 127
      %v425 = vpop.permute.xlu0 %424
      %426 = vrot.lane.b32.xlu0 %v350, 127
      %v427 = vpop.permute.xlu0 %426
      %428 = vrot.lane.b32.xlu0 %v351, 127
      %v429 = vpop.permute.xlu0 %428
      %430 = vrot.lane.b32.xlu0 %v352, 127
      %v431 = vpop.permute.xlu0 %430
      %432 = vrot.lane.b32.xlu0 %v353, 127
      %v433 = vpop.permute.xlu0 %432
      %434 = vrot.lane.b32.xlu0 %v354, 127
      %v435 = vpop.permute.xlu0 %434
      %436 = vrot.lane.b32.xlu0 %v355, 127
      %v437 = vpop.permute.xlu0 %436
      %438 = vrot.lane.b32.xlu0 %v356, 127
      %v439 = vpop.permute.xlu0 %438
      %440 = vrot.lane.b32.xlu0 %v357, 127
      %v441 = vpop.permute.xlu0 %440
      %vm442 = vcmask 1039360
      %v443 = vsel %vm442, %v387, %v389
      %v444 = vsel %vm442, %v389, %v391
      %v445 = vsel %vm442, %v391, %v393
      %v446 = vsel %vm442, %v393, %v395
      %v447 = vsel %vm442, %v395, %v397
      %v448 = vsel %vm442, %v397, %v399
      %v449 = vsel %vm442, %v401, %v403
      %v450 = vsel %vm442, %v403, %v405
      %v451 = vsel %vm442, %v405, %v407
      %v452 = vsel %vm442, %v407, %v409
      %v453 = vsel %vm442, %v409, %v411
      %v454 = vsel %vm442, %v411, %v413
      %v455 = vsel %vm442, %v415, %v417
      %v456 = vsel %vm442, %v417, %v419
      %v457 = vsel %vm442, %v419, %v421
      %v458 = vsel %vm442, %v421, %v423
      %v459 = vsel %vm442, %v423, %v425
      %v460 = vsel %vm442, %v425, %v427
      %v461 = vsel %vm442, %v429, %v431
      %v462 = vsel %vm442, %v431, %v433
      %v463 = vsel %vm442, %v433, %v435
      %v464 = vsel %vm442, %v435, %v437
      %v465 = vsel %vm442, %v437, %v439
      %v466 = vsel %vm442, %v439, %v441
      %491 = vst [vmem:[#allocation2 + $0xc0] sm:$0xff] %v443
      %492 = vst [vmem:[#allocation2 + $0xc8] sm:$0xff] %v444
      %493 = vst [vmem:[#allocation2 + $0xd0] sm:$0xff] %v445
      %494 = vst [vmem:[#allocation2 + $0xd8] sm:$0xff] %v446
      %495 = vst [vmem:[#allocation2 + $0xe0] sm:$0xff] %v447
      %496 = vst [vmem:[#allocation2 + $0xe8] sm:$0xff] %v448
      %497 = vst [vmem:[#allocation2 + $0xf0] sm:$0xff] %v449
      %498 = vst [vmem:[#allocation2 + $0xf8] sm:$0xff] %v450
      %499 = vst [vmem:[#allocation2 + $0x100] sm:$0xff] %v451
      %500 = vst [vmem:[#allocation2 + $0x108] sm:$0xff] %v452
      %501 = vst [vmem:[#allocation2 + $0x110] sm:$0xff] %v453
      %502 = vst [vmem:[#allocation2 + $0x118] sm:$0xff] %v454
      %503 = vst [vmem:[#allocation2 + $0x120] sm:$0xff] %v455
      %504 = vst [vmem:[#allocation2 + $0x128] sm:$0xff] %v456
      %505 = vst [vmem:[#allocation2 + $0x130] sm:$0xff] %v457
      %506 = vst [vmem:[#allocation2 + $0x138] sm:$0xff] %v458
      %507 = vst [vmem:[#allocation2 + $0x140] sm:$0xff] %v459
      %508 = vst [vmem:[#allocation2 + $0x148] sm:$0xff] %v460
      %509 = vst [vmem:[#allocation2 + $0x150] sm:$0xff] %v461
      %510 = vst [vmem:[#allocation2 + $0x158] sm:$0xff] %v462
      %511 = vst [vmem:[#allocation2 + $0x160] sm:$0xff] %v463
      %512 = vst [vmem:[#allocation2 + $0x168] sm:$0xff] %v464
      %513 = vst [vmem:[#allocation2 + $0x170] sm:$0xff] %v465
      %514 = vst [vmem:[#allocation2 + $0x178] sm:$0xff] %v466
      %v515 = vld [vmem:[%s273] sm:$0xff]
      %v516 = vld [vmem:[%s273 + $0x8] sm:$0xff]
      %v517 = vld [vmem:[%s273 + $0x10] sm:$0xff]
      %v518 = vld [vmem:[%s273 + $0x18] sm:$0xff]
      %v519 = vld [vmem:[%s273 + $0x20] sm:$0xff]
      %v520 = vld [vmem:[%s273 + $0x28] sm:$0xff]
      %v521 = vld [vmem:[%s273 + $0x30] sm:$0xff]
      %v522 = vld [vmem:[%s273 + $0x38] sm:$0xff]
      %v523 = vld [vmem:[%s273 + $0x40] sm:$0xff]
      %v524 = vld [vmem:[%s273 + $0x48] sm:$0xff]
      %v525 = vld [vmem:[%s273 + $0x50] sm:$0xff]
      %v526 = vld [vmem:[%s273 + $0x58] sm:$0xff]
      %v527 = vld [vmem:[%s273 + $0x60] sm:$0xff]
      %v528 = vld [vmem:[%s273 + $0x68] sm:$0xff]
      %v529 = vld [vmem:[%s273 + $0x70] sm:$0xff]
      %v530 = vld [vmem:[%s273 + $0x78] sm:$0xff]
      %v531 = vld [vmem:[%s273 + $0x80] sm:$0xff]
      %v532 = vld [vmem:[%s273 + $0x88] sm:$0xff]
      %v533 = vld [vmem:[%s273 + $0x90] sm:$0xff]
      %v534 = vld [vmem:[%s273 + $0x98] sm:$0xff]
      %v535 = vld [vmem:[%s273 + $0xa0] sm:$0xff]
      %v536 = vld [vmem:[%s273 + $0xa8] sm:$0xff]
      %v537 = vld [vmem:[%s273 + $0xb0] sm:$0xff]
      %v538 = vld [vmem:[%s273 + $0xb8] sm:$0xff]
      %v539 = vld [vmem:[%s273 + $0xc0] sm:$0xff]
      %v540 = vld [vmem:[%s273 + $0xc8] sm:$0xff]
      %v541 = vld [vmem:[%s273 + $0xd0] sm:$0xff]
      %v542 = vld [vmem:[%s273 + $0xd8] sm:$0xff]
      %571 = vrot.lane.b32.xlu0 %v515, 119
      %v572 = vpop.permute.xlu0 %571
      %573 = vrot.lane.b32.xlu0 %v516, 119
      %v574 = vpop.permute.xlu0 %573
      %575 = vrot.lane.b32.xlu0 %v517, 119
      %v576 = vpop.permute.xlu0 %575
      %577 = vrot.lane.b32.xlu0 %v518, 119
      %v578 = vpop.permute.xlu0 %577
      %579 = vrot.lane.b32.xlu0 %v519, 119
      %v580 = vpop.permute.xlu0 %579
      %581 = vrot.lane.b32.xlu0 %v520, 119
      %v582 = vpop.permute.xlu0 %581
      %583 = vrot.lane.b32.xlu0 %v521, 119
      %v584 = vpop.permute.xlu0 %583
      %585 = vrot.lane.b32.xlu0 %v522, 119
      %v586 = vpop.permute.xlu0 %585
      %587 = vrot.lane.b32.xlu0 %v523, 119
      %v588 = vpop.permute.xlu0 %587
      %589 = vrot.lane.b32.xlu0 %v524, 119
      %v590 = vpop.permute.xlu0 %589
      %591 = vrot.lane.b32.xlu0 %v525, 119
      %v592 = vpop.permute.xlu0 %591
      %593 = vrot.lane.b32.xlu0 %v526, 119
      %v594 = vpop.permute.xlu0 %593
      %595 = vrot.lane.b32.xlu0 %v527, 119
      %v596 = vpop.permute.xlu0 %595
      %597 = vrot.lane.b32.xlu0 %v528, 119
      %v598 = vpop.permute.xlu0 %597
      %599 = vrot.lane.b32.xlu0 %v529, 119
      %v600 = vpop.permute.xlu0 %599
      %601 = vrot.lane.b32.xlu0 %v530, 119
      %v602 = vpop.permute.xlu0 %601
      %603 = vrot.lane.b32.xlu0 %v531, 119
      %v604 = vpop.permute.xlu0 %603
      %605 = vrot.lane.b32.xlu0 %v532, 119
      %v606 = vpop.permute.xlu0 %605
      %607 = vrot.lane.b32.xlu0 %v533, 119
      %v608 = vpop.permute.xlu0 %607
      %609 = vrot.lane.b32.xlu0 %v534, 119
      %v610 = vpop.permute.xlu0 %609
      %611 = vrot.lane.b32.xlu0 %v535, 119
      %v612 = vpop.permute.xlu0 %611
      %613 = vrot.lane.b32.xlu0 %v536, 119
      %v614 = vpop.permute.xlu0 %613
      %615 = vrot.lane.b32.xlu0 %v537, 119
      %v616 = vpop.permute.xlu0 %615
      %617 = vrot.lane.b32.xlu0 %v538, 119
      %v618 = vpop.permute.xlu0 %617
      %619 = vrot.lane.b32.xlu0 %v539, 119
      %v620 = vpop.permute.xlu0 %619
      %621 = vrot.lane.b32.xlu0 %v540, 119
      %v622 = vpop.permute.xlu0 %621
      %623 = vrot.lane.b32.xlu0 %v541, 119
      %v624 = vpop.permute.xlu0 %623
      %625 = vrot.lane.b32.xlu0 %v542, 119
      %v626 = vpop.permute.xlu0 %625
      %vm627 = vcmask 973824
      %v628 = vsel %vm627, %v572, %v574
      %v629 = vsel %vm627, %v574, %v576
      %v630 = vsel %vm627, %v576, %v578
      %v631 = vsel %vm627, %v578, %v580
      %v632 = vsel %vm627, %v580, %v582
      %v633 = vsel %vm627, %v582, %v584
      %v634 = vsel %vm627, %v586, %v588
      %v635 = vsel %vm627, %v588, %v590
      %v636 = vsel %vm627, %v590, %v592
      %v637 = vsel %vm627, %v592, %v594
      %v638 = vsel %vm627, %v594, %v596
      %v639 = vsel %vm627, %v596, %v598
      %v640 = vsel %vm627, %v600, %v602
      %v641 = vsel %vm627, %v602, %v604
      %v642 = vsel %vm627, %v604, %v606
      %v643 = vsel %vm627, %v606, %v608
      %v644 = vsel %vm627, %v608, %v610
      %v645 = vsel %vm627, %v610, %v612
      %v646 = vsel %vm627, %v614, %v616
      %v647 = vsel %vm627, %v616, %v618
      %v648 = vsel %vm627, %v618, %v620
      %v649 = vsel %vm627, %v620, %v622
      %v650 = vsel %vm627, %v622, %v624
      %v651 = vsel %vm627, %v624, %v626
      %676 = vst [vmem:[#allocation2 + $0x180] sm:$0xff] %v628
      %677 = vst [vmem:[#allocation2 + $0x188] sm:$0xff] %v629
      %678 = vst [vmem:[#allocation2 + $0x190] sm:$0xff] %v630
      %679 = vst [vmem:[#allocation2 + $0x198] sm:$0xff] %v631
      %680 = vst [vmem:[#allocation2 + $0x1a0] sm:$0xff] %v632
      %681 = vst [vmem:[#allocation2 + $0x1a8] sm:$0xff] %v633
      %682 = vst [vmem:[#allocation2 + $0x1b0] sm:$0xff] %v634
      %683 = vst [vmem:[#allocation2 + $0x1b8] sm:$0xff] %v635
      %684 = vst [vmem:[#allocation2 + $0x1c0] sm:$0xff] %v636
      %685 = vst [vmem:[#allocation2 + $0x1c8] sm:$0xff] %v637
      %686 = vst [vmem:[#allocation2 + $0x1d0] sm:$0xff] %v638
      %687 = vst [vmem:[#allocation2 + $0x1d8] sm:$0xff] %v639
      %688 = vst [vmem:[#allocation2 + $0x1e0] sm:$0xff] %v640
      %689 = vst [vmem:[#allocation2 + $0x1e8] sm:$0xff] %v641
      %690 = vst [vmem:[#allocation2 + $0x1f0] sm:$0xff] %v642
      %691 = vst [vmem:[#allocation2 + $0x1f8] sm:$0xff] %v643
      %692 = vst [vmem:[#allocation2 + $0x200] sm:$0xff] %v644
      %693 = vst [vmem:[#allocation2 + $0x208] sm:$0xff] %v645
      %694 = vst [vmem:[#allocation2 + $0x210] sm:$0xff] %v646
      %695 = vst [vmem:[#allocation2 + $0x218] sm:$0xff] %v647
      %696 = vst [vmem:[#allocation2 + $0x220] sm:$0xff] %v648
      %697 = vst [vmem:[#allocation2 + $0x228] sm:$0xff] %v649
      %698 = vst [vmem:[#allocation2 + $0x230] sm:$0xff] %v650
      %699 = vst [vmem:[#allocation2 + $0x238] sm:$0xff] %v651
      %v700 = vld [vmem:[%s273] sm:$0xff]
      %v701 = vld [vmem:[%s273 + $0x8] sm:$0xff]
      %v702 = vld [vmem:[%s273 + $0x10] sm:$0xff]
      %v703 = vld [vmem:[%s273 + $0x18] sm:$0xff]
      %v704 = vld [vmem:[%s273 + $0x20] sm:$0xff]
      %v705 = vld [vmem:[%s273 + $0x28] sm:$0xff]
      %v706 = vld [vmem:[%s273 + $0x30] sm:$0xff]
      %v707 = vld [vmem:[%s273 + $0x38] sm:$0xff]
      %v708 = vld [vmem:[%s273 + $0x40] sm:$0xff]
      %v709 = vld [vmem:[%s273 + $0x48] sm:$0xff]
      %v710 = vld [vmem:[%s273 + $0x50] sm:$0xff]
      %v711 = vld [vmem:[%s273 + $0x58] sm:$0xff]
      %v712 = vld [vmem:[%s273 + $0x60] sm:$0xff]
      %v713 = vld [vmem:[%s273 + $0x68] sm:$0xff]
      %v714 = vld [vmem:[%s273 + $0x70] sm:$0xff]
      %v715 = vld [vmem:[%s273 + $0x78] sm:$0xff]
      %v716 = vld [vmem:[%s273 + $0x80] sm:$0xff]
      %v717 = vld [vmem:[%s273 + $0x88] sm:$0xff]
      %v718 = vld [vmem:[%s273 + $0x90] sm:$0xff]
      %v719 = vld [vmem:[%s273 + $0x98] sm:$0xff]
      %v720 = vld [vmem:[%s273 + $0xa0] sm:$0xff]
      %v721 = vld [vmem:[%s273 + $0xa8] sm:$0xff]
      %v722 = vld [vmem:[%s273 + $0xb0] sm:$0xff]
      %v723 = vld [vmem:[%s273 + $0xb8] sm:$0xff]
      %v724 = vld [vmem:[%s273 + $0xc0] sm:$0xff]
      %v725 = vld [vmem:[%s273 + $0xc8] sm:$0xff]
      %v726 = vld [vmem:[%s273 + $0xd0] sm:$0xff]
      %v727 = vld [vmem:[%s273 + $0xd8] sm:$0xff]
      %756 = vrot.lane.b32.xlu0 %v700, 118
      %v757 = vpop.permute.xlu0 %756
      %758 = vrot.lane.b32.xlu0 %v701, 118
      %v759 = vpop.permute.xlu0 %758
      %760 = vrot.lane.b32.xlu0 %v702, 118
      %v761 = vpop.permute.xlu0 %760
      %762 = vrot.lane.b32.xlu0 %v703, 118
      %v763 = vpop.permute.xlu0 %762
      %764 = vrot.lane.b32.xlu0 %v704, 118
      %v765 = vpop.permute.xlu0 %764
      %766 = vrot.lane.b32.xlu0 %v705, 118
      %v767 = vpop.permute.xlu0 %766
      %768 = vrot.lane.b32.xlu0 %v706, 118
      %v769 = vpop.permute.xlu0 %768
      %770 = vrot.lane.b32.xlu0 %v707, 118
      %v771 = vpop.permute.xlu0 %770
      %772 = vrot.lane.b32.xlu0 %v708, 118
      %v773 = vpop.permute.xlu0 %772
      %774 = vrot.lane.b32.xlu0 %v709, 118
      %v775 = vpop.permute.xlu0 %774
      %776 = vrot.lane.b32.xlu0 %v710, 118
      %v777 = vpop.permute.xlu0 %776
      %778 = vrot.lane.b32.xlu0 %v711, 118
      %v779 = vpop.permute.xlu0 %778
      %780 = vrot.lane.b32.xlu0 %v712, 118
      %v781 = vpop.permute.xlu0 %780
      %782 = vrot.lane.b32.xlu0 %v713, 118
      %v783 = vpop.permute.xlu0 %782
      %784 = vrot.lane.b32.xlu0 %v714, 118
      %v785 = vpop.permute.xlu0 %784
      %786 = vrot.lane.b32.xlu0 %v715, 118
      %v787 = vpop.permute.xlu0 %786
      %788 = vrot.lane.b32.xlu0 %v716, 118
      %v789 = vpop.permute.xlu0 %788
      %790 = vrot.lane.b32.xlu0 %v717, 118
      %v791 = vpop.permute.xlu0 %790
      %792 = vrot.lane.b32.xlu0 %v718, 118
      %v793 = vpop.permute.xlu0 %792
      %794 = vrot.lane.b32.xlu0 %v719, 118
      %v795 = vpop.permute.xlu0 %794
      %796 = vrot.lane.b32.xlu0 %v720, 118
      %v797 = vpop.permute.xlu0 %796
      %798 = vrot.lane.b32.xlu0 %v721, 118
      %v799 = vpop.permute.xlu0 %798
      %800 = vrot.lane.b32.xlu0 %v722, 118
      %v801 = vpop.permute.xlu0 %800
      %802 = vrot.lane.b32.xlu0 %v723, 118
      %v803 = vpop.permute.xlu0 %802
      %804 = vrot.lane.b32.xlu0 %v724, 118
      %v805 = vpop.permute.xlu0 %804
      %806 = vrot.lane.b32.xlu0 %v725, 118
      %v807 = vpop.permute.xlu0 %806
      %808 = vrot.lane.b32.xlu0 %v726, 118
      %v809 = vpop.permute.xlu0 %808
      %810 = vrot.lane.b32.xlu0 %v727, 118
      %v811 = vpop.permute.xlu0 %810
      %vm812 = vcmask 965632
      %v813 = vsel %vm812, %v757, %v759
      %v814 = vsel %vm812, %v759, %v761
      %v815 = vsel %vm812, %v761, %v763
      %v816 = vsel %vm812, %v763, %v765
      %v817 = vsel %vm812, %v765, %v767
      %v818 = vsel %vm812, %v767, %v769
      %v819 = vsel %vm812, %v771, %v773
      %v820 = vsel %vm812, %v773, %v775
      %v821 = vsel %vm812, %v775, %v777
      %v822 = vsel %vm812, %v777, %v779
      %v823 = vsel %vm812, %v779, %v781
      %v824 = vsel %vm812, %v781, %v783
      %v825 = vsel %vm812, %v785, %v787
      %v826 = vsel %vm812, %v787, %v789
      %v827 = vsel %vm812, %v789, %v791
      %v828 = vsel %vm812, %v791, %v793
      %v829 = vsel %vm812, %v793, %v795
      %v830 = vsel %vm812, %v795, %v797
      %v831 = vsel %vm812, %v799, %v801
      %v832 = vsel %vm812, %v801, %v803
      %v833 = vsel %vm812, %v803, %v805
      %v834 = vsel %vm812, %v805, %v807
      %v835 = vsel %vm812, %v807, %v809
      %v836 = vsel %vm812, %v809, %v811
      %861 = vst [vmem:[#allocation2 + $0x240] sm:$0xff] %v813
      %862 = vst [vmem:[#allocation2 + $0x248] sm:$0xff] %v814
      %863 = vst [vmem:[#allocation2 + $0x250] sm:$0xff] %v815
      %864 = vst [vmem:[#allocation2 + $0x258] sm:$0xff] %v816
      %865 = vst [vmem:[#allocation2 + $0x260] sm:$0xff] %v817
      %866 = vst [vmem:[#allocation2 + $0x268] sm:$0xff] %v818
      %867 = vst [vmem:[#allocation2 + $0x270] sm:$0xff] %v819
      %868 = vst [vmem:[#allocation2 + $0x278] sm:$0xff] %v820
      %869 = vst [vmem:[#allocation2 + $0x280] sm:$0xff] %v821
      %870 = vst [vmem:[#allocation2 + $0x288] sm:$0xff] %v822
      %871 = vst [vmem:[#allocation2 + $0x290] sm:$0xff] %v823
      %872 = vst [vmem:[#allocation2 + $0x298] sm:$0xff] %v824
      %873 = vst [vmem:[#allocation2 + $0x2a0] sm:$0xff] %v825
      %874 = vst [vmem:[#allocation2 + $0x2a8] sm:$0xff] %v826
      %875 = vst [vmem:[#allocation2 + $0x2b0] sm:$0xff] %v827
      %876 = vst [vmem:[#allocation2 + $0x2b8] sm:$0xff] %v828
      %877 = vst [vmem:[#allocation2 + $0x2c0] sm:$0xff] %v829
      %878 = vst [vmem:[#allocation2 + $0x2c8] sm:$0xff] %v830
      %879 = vst [vmem:[#allocation2 + $0x2d0] sm:$0xff] %v831
      %880 = vst [vmem:[#allocation2 + $0x2d8] sm:$0xff] %v832
      %881 = vst [vmem:[#allocation2 + $0x2e0] sm:$0xff] %v833
      %882 = vst [vmem:[#allocation2 + $0x2e8] sm:$0xff] %v834
      %883 = vst [vmem:[#allocation2 + $0x2f0] sm:$0xff] %v835
      %884 = vst [vmem:[#allocation2 + $0x2f8] sm:$0xff] %v836
      %v885 = vld [vmem:[%s273] sm:$0xff]
      %v886 = vld [vmem:[%s273 + $0x8] sm:$0xff]
      %v887 = vld [vmem:[%s273 + $0x10] sm:$0xff]
      %v888 = vld [vmem:[%s273 + $0x18] sm:$0xff]
      %v889 = vld [vmem:[%s273 + $0x20] sm:$0xff]
      %v890 = vld [vmem:[%s273 + $0x28] sm:$0xff]
      %v891 = vld [vmem:[%s273 + $0x30] sm:$0xff]
      %v892 = vld [vmem:[%s273 + $0x38] sm:$0xff]
      %v893 = vld [vmem:[%s273 + $0x40] sm:$0xff]
      %v894 = vld [vmem:[%s273 + $0x48] sm:$0xff]
      %v895 = vld [vmem:[%s273 + $0x50] sm:$0xff]
      %v896 = vld [vmem:[%s273 + $0x58] sm:$0xff]
      %v897 = vld [vmem:[%s273 + $0x60] sm:$0xff]
      %v898 = vld [vmem:[%s273 + $0x68] sm:$0xff]
      %v899 = vld [vmem:[%s273 + $0x70] sm:$0xff]
      %v900 = vld [vmem:[%s273 + $0x78] sm:$0xff]
      %v901 = vld [vmem:[%s273 + $0x80] sm:$0xff]
      %v902 = vld [vmem:[%s273 + $0x88] sm:$0xff]
      %v903 = vld [vmem:[%s273 + $0x90] sm:$0xff]
      %v904 = vld [vmem:[%s273 + $0x98] sm:$0xff]
      %v905 = vld [vmem:[%s273 + $0xa0] sm:$0xff]
      %v906 = vld [vmem:[%s273 + $0xa8] sm:$0xff]
      %v907 = vld [vmem:[%s273 + $0xb0] sm:$0xff]
      %v908 = vld [vmem:[%s273 + $0xb8] sm:$0xff]
      %v909 = vld [vmem:[%s273 + $0xc0] sm:$0xff]
      %v910 = vld [vmem:[%s273 + $0xc8] sm:$0xff]
      %v911 = vld [vmem:[%s273 + $0xd0] sm:$0xff]
      %v912 = vld [vmem:[%s273 + $0xd8] sm:$0xff]
      %941 = vrot.lane.b32.xlu0 %v885, 47
      %v942 = vpop.permute.xlu0 %941
      %943 = vrot.lane.b32.xlu0 %v886, 47
      %v944 = vpop.permute.xlu0 %943
      %945 = vrot.lane.b32.xlu0 %v887, 47
      %v946 = vpop.permute.xlu0 %945
      %947 = vrot.lane.b32.xlu0 %v888, 47
      %v948 = vpop.permute.xlu0 %947
      %949 = vrot.lane.b32.xlu0 %v889, 47
      %v950 = vpop.permute.xlu0 %949
      %951 = vrot.lane.b32.xlu0 %v890, 47
      %v952 = vpop.permute.xlu0 %951
      %953 = vrot.lane.b32.xlu0 %v891, 47
      %v954 = vpop.permute.xlu0 %953
      %955 = vrot.lane.b32.xlu0 %v892, 47
      %v956 = vpop.permute.xlu0 %955
      %957 = vrot.lane.b32.xlu0 %v893, 47
      %v958 = vpop.permute.xlu0 %957
      %959 = vrot.lane.b32.xlu0 %v894, 47
      %v960 = vpop.permute.xlu0 %959
      %961 = vrot.lane.b32.xlu0 %v895, 47
      %v962 = vpop.permute.xlu0 %961
      %963 = vrot.lane.b32.xlu0 %v896, 47
      %v964 = vpop.permute.xlu0 %963
      %965 = vrot.lane.b32.xlu0 %v897, 47
      %v966 = vpop.permute.xlu0 %965
      %967 = vrot.lane.b32.xlu0 %v898, 47
      %v968 = vpop.permute.xlu0 %967
      %969 = vrot.lane.b32.xlu0 %v899, 47
      %v970 = vpop.permute.xlu0 %969
      %971 = vrot.lane.b32.xlu0 %v900, 47
      %v972 = vpop.permute.xlu0 %971
      %973 = vrot.lane.b32.xlu0 %v901, 47
      %v974 = vpop.permute.xlu0 %973
      %975 = vrot.lane.b32.xlu0 %v902, 47
      %v976 = vpop.permute.xlu0 %975
      %977 = vrot.lane.b32.xlu0 %v903, 47
      %v978 = vpop.permute.xlu0 %977
      %979 = vrot.lane.b32.xlu0 %v904, 47
      %v980 = vpop.permute.xlu0 %979
      %981 = vrot.lane.b32.xlu0 %v905, 47
      %v982 = vpop.permute.xlu0 %981
      %983 = vrot.lane.b32.xlu0 %v906, 47
      %v984 = vpop.permute.xlu0 %983
      %985 = vrot.lane.b32.xlu0 %v907, 47
      %v986 = vpop.permute.xlu0 %985
      %987 = vrot.lane.b32.xlu0 %v908, 47
      %v988 = vpop.permute.xlu0 %987
      %989 = vrot.lane.b32.xlu0 %v909, 47
      %v990 = vpop.permute.xlu0 %989
      %991 = vrot.lane.b32.xlu0 %v910, 47
      %v992 = vpop.permute.xlu0 %991
      %993 = vrot.lane.b32.xlu0 %v911, 47
      %v994 = vpop.permute.xlu0 %993
      %995 = vrot.lane.b32.xlu0 %v912, 47
      %v996 = vpop.permute.xlu0 %995
      %vm997 = vcmask 384000
      %v998 = vsel %vm997, %v942, %v944
      %v999 = vsel %vm997, %v944, %v946
      %v1000 = vsel %vm997, %v946, %v948
      %v1001 = vsel %vm997, %v948, %v950
      %v1002 = vsel %vm997, %v950, %v952
      %v1003 = vsel %vm997, %v952, %v954
      %v1004 = vsel %vm997, %v956, %v958
      %v1005 = vsel %vm997, %v958, %v960
      %v1006 = vsel %vm997, %v960, %v962
      %v1007 = vsel %vm997, %v962, %v964
      %v1008 = vsel %vm997, %v964, %v966
      %v1009 = vsel %vm997, %v966, %v968
      %v1010 = vsel %vm997, %v970, %v972
      %v1011 = vsel %vm997, %v972, %v974
      %v1012 = vsel %vm997, %v974, %v976
      %v1013 = vsel %vm997, %v976, %v978
      %v1014 = vsel %vm997, %v978, %v980
      %v1015 = vsel %vm997, %v980, %v982
      %v1016 = vsel %vm997, %v984, %v986
      %v1017 = vsel %vm997, %v986, %v988
      %v1018 = vsel %vm997, %v988, %v990
      %v1019 = vsel %vm997, %v990, %v992
      %v1020 = vsel %vm997, %v992, %v994
      %v1021 = vsel %vm997, %v994, %v996
      %1046 = vst [vmem:[#allocation2 + $0x300] sm:$0xff] %v998
      %1047 = vst [vmem:[#allocation2 + $0x308] sm:$0xff] %v999
      %1048 = vst [vmem:[#allocation2 + $0x310] sm:$0xff] %v1000
      %1049 = vst [vmem:[#allocation2 + $0x318] sm:$0xff] %v1001
      %1050 = vst [vmem:[#allocation2 + $0x320] sm:$0xff] %v1002
      %1051 = vst [vmem:[#allocation2 + $0x328] sm:$0xff] %v1003
      %1052 = vst [vmem:[#allocation2 + $0x330] sm:$0xff] %v1004
      %1053 = vst [vmem:[#allocation2 + $0x338] sm:$0xff] %v1005
      %1054 = vst [vmem:[#allocation2 + $0x340] sm:$0xff] %v1006
      %1055 = vst [vmem:[#allocation2 + $0x348] sm:$0xff] %v1007
      %1056 = vst [vmem:[#allocation2 + $0x350] sm:$0xff] %v1008
      %1057 = vst [vmem:[#allocation2 + $0x358] sm:$0xff] %v1009
      %1058 = vst [vmem:[#allocation2 + $0x360] sm:$0xff] %v1010
      %1059 = vst [vmem:[#allocation2 + $0x368] sm:$0xff] %v1011
      %1060 = vst [vmem:[#allocation2 + $0x370] sm:$0xff] %v1012
      %1061 = vst [vmem:[#allocation2 + $0x378] sm:$0xff] %v1013
      %1062 = vst [vmem:[#allocation2 + $0x380] sm:$0xff] %v1014
      %1063 = vst [vmem:[#allocation2 + $0x388] sm:$0xff] %v1015
      %1064 = vst [vmem:[#allocation2 + $0x390] sm:$0xff] %v1016
      %1065 = vst [vmem:[#allocation2 + $0x398] sm:$0xff] %v1017
      %1066 = vst [vmem:[#allocation2 + $0x3a0] sm:$0xff] %v1018
      %1067 = vst [vmem:[#allocation2 + $0x3a8] sm:$0xff] %v1019
      %1068 = vst [vmem:[#allocation2 + $0x3b0] sm:$0xff] %v1020
      %1069 = vst [vmem:[#allocation2 + $0x3b8] sm:$0xff] %v1021
      %v1070 = vld [vmem:[%s273] sm:$0xff]
      %v1071 = vld [vmem:[%s273 + $0x8] sm:$0xff]
      %v1072 = vld [vmem:[%s273 + $0x10] sm:$0xff]
      %v1073 = vld [vmem:[%s273 + $0x18] sm:$0xff]
      %v1074 = vld [vmem:[%s273 + $0x20] sm:$0xff]
      %v1075 = vld [vmem:[%s273 + $0x28] sm:$0xff]
      %v1076 = vld [vmem:[%s273 + $0x30] sm:$0xff]
      %v1077 = vld [vmem:[%s273 + $0x38] sm:$0xff]
      %v1078 = vld [vmem:[%s273 + $0x40] sm:$0xff]
      %v1079 = vld [vmem:[%s273 + $0x48] sm:$0xff]
      %v1080 = vld [vmem:[%s273 + $0x50] sm:$0xff]
      %v1081 = vld [vmem:[%s273 + $0x58] sm:$0xff]
      %v1082 = vld [vmem:[%s273 + $0x60] sm:$0xff]
      %v1083 = vld [vmem:[%s273 + $0x68] sm:$0xff]
      %v1084 = vld [vmem:[%s273 + $0x70] sm:$0xff]
      %v1085 = vld [vmem:[%s273 + $0x78] sm:$0xff]
      %v1086 = vld [vmem:[%s273 + $0x80] sm:$0xff]
      %v1087 = vld [vmem:[%s273 + $0x88] sm:$0xff]
      %v1088 = vld [vmem:[%s273 + $0x90] sm:$0xff]
      %v1089 = vld [vmem:[%s273 + $0x98] sm:$0xff]
      %v1090 = vld [vmem:[%s273 + $0xa0] sm:$0xff]
      %v1091 = vld [vmem:[%s273 + $0xa8] sm:$0xff]
      %v1092 = vld [vmem:[%s273 + $0xb0] sm:$0xff]
      %v1093 = vld [vmem:[%s273 + $0xb8] sm:$0xff]
      %v1094 = vld [vmem:[%s273 + $0xc0] sm:$0xff]
      %v1095 = vld [vmem:[%s273 + $0xc8] sm:$0xff]
      %v1096 = vld [vmem:[%s273 + $0xd0] sm:$0xff]
      %v1097 = vld [vmem:[%s273 + $0xd8] sm:$0xff]
      %1126 = vrot.lane.b32.xlu0 %v1070, 46
      %v1127 = vpop.permute.xlu0 %1126
      %1128 = vrot.lane.b32.xlu0 %v1071, 46
      %v1129 = vpop.permute.xlu0 %1128
      %1130 = vrot.lane.b32.xlu0 %v1072, 46
      %v1131 = vpop.permute.xlu0 %1130
      %1132 = vrot.lane.b32.xlu0 %v1073, 46
      %v1133 = vpop.permute.xlu0 %1132
      %1134 = vrot.lane.b32.xlu0 %v1074, 46
      %v1135 = vpop.permute.xlu0 %1134
      %1136 = vrot.lane.b32.xlu0 %v1075, 46
      %v1137 = vpop.permute.xlu0 %1136
      %1138 = vrot.lane.b32.xlu0 %v1076, 46
      %v1139 = vpop.permute.xlu0 %1138
      %1140 = vrot.lane.b32.xlu0 %v1077, 46
      %v1141 = vpop.permute.xlu0 %1140
      %1142 = vrot.lane.b32.xlu0 %v1078, 46
      %v1143 = vpop.permute.xlu0 %1142
      %1144 = vrot.lane.b32.xlu0 %v1079, 46
      %v1145 = vpop.permute.xlu0 %1144
      %1146 = vrot.lane.b32.xlu0 %v1080, 46
      %v1147 = vpop.permute.xlu0 %1146
      %1148 = vrot.lane.b32.xlu0 %v1081, 46
      %v1149 = vpop.permute.xlu0 %1148
      %1150 = vrot.lane.b32.xlu0 %v1082, 46
      %v1151 = vpop.permute.xlu0 %1150
      %1152 = vrot.lane.b32.xlu0 %v1083, 46
      %v1153 = vpop.permute.xlu0 %1152
      %1154 = vrot.lane.b32.xlu0 %v1084, 46
      %v1155 = vpop.permute.xlu0 %1154
      %1156 = vrot.lane.b32.xlu0 %v1085, 46
      %v1157 = vpop.permute.xlu0 %1156
      %1158 = vrot.lane.b32.xlu0 %v1086, 46
      %v1159 = vpop.permute.xlu0 %1158
      %1160 = vrot.lane.b32.xlu0 %v1087, 46
      %v1161 = vpop.permute.xlu0 %1160
      %1162 = vrot.lane.b32.xlu0 %v1088, 46
      %v1163 = vpop.permute.xlu0 %1162
      %1164 = vrot.lane.b32.xlu0 %v1089, 46
      %v1165 = vpop.permute.xlu0 %1164
      %1166 = vrot.lane.b32.xlu0 %v1090, 46
      %v1167 = vpop.permute.xlu0 %1166
      %1168 = vrot.lane.b32.xlu0 %v1091, 46
      %v1169 = vpop.permute.xlu0 %1168
      %1170 = vrot.lane.b32.xlu0 %v1092, 46
      %v1171 = vpop.permute.xlu0 %1170
      %1172 = vrot.lane.b32.xlu0 %v1093, 46
      %v1173 = vpop.permute.xlu0 %1172
      %1174 = vrot.lane.b32.xlu0 %v1094, 46
      %v1175 = vpop.permute.xlu0 %1174
      %1176 = vrot.lane.b32.xlu0 %v1095, 46
      %v1177 = vpop.permute.xlu0 %1176
      %1178 = vrot.lane.b32.xlu0 %v1096, 46
      %v1179 = vpop.permute.xlu0 %1178
      %1180 = vrot.lane.b32.xlu0 %v1097, 46
      %v1181 = vpop.permute.xlu0 %1180
      %vm1182 = vcmask 375808
      %v1183 = vsel %vm1182, %v1127, %v1129
      %v1184 = vsel %vm1182, %v1129, %v1131
      %v1185 = vsel %vm1182, %v1131, %v1133
      %v1186 = vsel %vm1182, %v1133, %v1135
      %v1187 = vsel %vm1182, %v1135, %v1137
      %v1188 = vsel %vm1182, %v1137, %v1139
      %v1189 = vsel %vm1182, %v1141, %v1143
      %v1190 = vsel %vm1182, %v1143, %v1145
      %v1191 = vsel %vm1182, %v1145, %v1147
      %v1192 = vsel %vm1182, %v1147, %v1149
      %v1193 = vsel %vm1182, %v1149, %v1151
      %v1194 = vsel %vm1182, %v1151, %v1153
      %v1195 = vsel %vm1182, %v1155, %v1157
      %v1196 = vsel %vm1182, %v1157, %v1159
      %v1197 = vsel %vm1182, %v1159, %v1161
      %v1198 = vsel %vm1182, %v1161, %v1163
      %v1199 = vsel %vm1182, %v1163, %v1165
      %v1200 = vsel %vm1182, %v1165, %v1167
      %v1201 = vsel %vm1182, %v1169, %v1171
      %v1202 = vsel %vm1182, %v1171, %v1173
      %v1203 = vsel %vm1182, %v1173, %v1175
      %v1204 = vsel %vm1182, %v1175, %v1177
      %v1205 = vsel %vm1182, %v1177, %v1179
      %v1206 = vsel %vm1182, %v1179, %v1181
      %1231 = vst [vmem:[#allocation2 + $0x3c0] sm:$0xff] %v1183
      %1232 = vst [vmem:[#allocation2 + $0x3c8] sm:$0xff] %v1184
      %1233 = vst [vmem:[#allocation2 + $0x3d0] sm:$0xff] %v1185
      %1234 = vst [vmem:[#allocation2 + $0x3d8] sm:$0xff] %v1186
      %1235 = vst [vmem:[#allocation2 + $0x3e0] sm:$0xff] %v1187
      %1236 = vst [vmem:[#allocation2 + $0x3e8] sm:$0xff] %v1188
      %1237 = vst [vmem:[#allocation2 + $0x3f0] sm:$0xff] %v1189
      %1238 = vst [vmem:[#allocation2 + $0x3f8] sm:$0xff] %v1190
      %1239 = vst [vmem:[#allocation2 + $0x400] sm:$0xff] %v1191
      %1240 = vst [vmem:[#allocation2 + $0x408] sm:$0xff] %v1192
      %1241 = vst [vmem:[#allocation2 + $0x410] sm:$0xff] %v1193
      %1242 = vst [vmem:[#allocation2 + $0x418] sm:$0xff] %v1194
      %1243 = vst [vmem:[#allocation2 + $0x420] sm:$0xff] %v1195
      %1244 = vst [vmem:[#allocation2 + $0x428] sm:$0xff] %v1196
      %1245 = vst [vmem:[#allocation2 + $0x430] sm:$0xff] %v1197
      %1246 = vst [vmem:[#allocation2 + $0x438] sm:$0xff] %v1198
      %1247 = vst [vmem:[#allocation2 + $0x440] sm:$0xff] %v1199
      %1248 = vst [vmem:[#allocation2 + $0x448] sm:$0xff] %v1200
      %1249 = vst [vmem:[#allocation2 + $0x450] sm:$0xff] %v1201
      %1250 = vst [vmem:[#allocation2 + $0x458] sm:$0xff] %v1202
      %1251 = vst [vmem:[#allocation2 + $0x460] sm:$0xff] %v1203
      %1252 = vst [vmem:[#allocation2 + $0x468] sm:$0xff] %v1204
      %1253 = vst [vmem:[#allocation2 + $0x470] sm:$0xff] %v1205
      %1254 = vst [vmem:[#allocation2 + $0x478] sm:$0xff] %v1206
      %v1255 = vld [vmem:[%s273] sm:$0xff]
      %v1256 = vld [vmem:[%s273 + $0x8] sm:$0xff]
      %v1257 = vld [vmem:[%s273 + $0x10] sm:$0xff]
      %v1258 = vld [vmem:[%s273 + $0x18] sm:$0xff]
      %v1259 = vld [vmem:[%s273 + $0x20] sm:$0xff]
      %v1260 = vld [vmem:[%s273 + $0x28] sm:$0xff]
      %v1261 = vld [vmem:[%s273 + $0x30] sm:$0xff]
      %v1262 = vld [vmem:[%s273 + $0x38] sm:$0xff]
      %v1263 = vld [vmem:[%s273 + $0x40] sm:$0xff]
      %v1264 = vld [vmem:[%s273 + $0x48] sm:$0xff]
      %v1265 = vld [vmem:[%s273 + $0x50] sm:$0xff]
      %v1266 = vld [vmem:[%s273 + $0x58] sm:$0xff]
      %v1267 = vld [vmem:[%s273 + $0x60] sm:$0xff]
      %v1268 = vld [vmem:[%s273 + $0x68] sm:$0xff]
      %v1269 = vld [vmem:[%s273 + $0x70] sm:$0xff]
      %v1270 = vld [vmem:[%s273 + $0x78] sm:$0xff]
      %v1271 = vld [vmem:[%s273 + $0x80] sm:$0xff]
      %v1272 = vld [vmem:[%s273 + $0x88] sm:$0xff]
      %v1273 = vld [vmem:[%s273 + $0x90] sm:$0xff]
      %v1274 = vld [vmem:[%s273 + $0x98] sm:$0xff]
      %v1275 = vld [vmem:[%s273 + $0xa0] sm:$0xff]
      %v1276 = vld [vmem:[%s273 + $0xa8] sm:$0xff]
      %v1277 = vld [vmem:[%s273 + $0xb0] sm:$0xff]
      %v1278 = vld [vmem:[%s273 + $0xb8] sm:$0xff]
      %v1279 = vld [vmem:[%s273 + $0xc0] sm:$0xff]
      %v1280 = vld [vmem:[%s273 + $0xc8] sm:$0xff]
      %v1281 = vld [vmem:[%s273 + $0xd0] sm:$0xff]
      %v1282 = vld [vmem:[%s273 + $0xd8] sm:$0xff]
      %1311 = vrot.lane.b32.xlu0 %v1255, 38
      %v1312 = vpop.permute.xlu0 %1311
      %1313 = vrot.lane.b32.xlu0 %v1256, 38
      %v1314 = vpop.permute.xlu0 %1313
      %1315 = vrot.lane.b32.xlu0 %v1257, 38
      %v1316 = vpop.permute.xlu0 %1315
      %1317 = vrot.lane.b32.xlu0 %v1258, 38
      %v1318 = vpop.permute.xlu0 %1317
      %1319 = vrot.lane.b32.xlu0 %v1259, 38
      %v1320 = vpop.permute.xlu0 %1319
      %1321 = vrot.lane.b32.xlu0 %v1260, 38
      %v1322 = vpop.permute.xlu0 %1321
      %1323 = vrot.lane.b32.xlu0 %v1261, 38
      %v1324 = vpop.permute.xlu0 %1323
      %1325 = vrot.lane.b32.xlu0 %v1262, 38
      %v1326 = vpop.permute.xlu0 %1325
      %1327 = vrot.lane.b32.xlu0 %v1263, 38
      %v1328 = vpop.permute.xlu0 %1327
      %1329 = vrot.lane.b32.xlu0 %v1264, 38
      %v1330 = vpop.permute.xlu0 %1329
      %1331 = vrot.lane.b32.xlu0 %v1265, 38
      %v1332 = vpop.permute.xlu0 %1331
      %1333 = vrot.lane.b32.xlu0 %v1266, 38
      %v1334 = vpop.permute.xlu0 %1333
      %1335 = vrot.lane.b32.xlu0 %v1267, 38
      %v1336 = vpop.permute.xlu0 %1335
      %1337 = vrot.lane.b32.xlu0 %v1268, 38
      %v1338 = vpop.permute.xlu0 %1337
      %1339 = vrot.lane.b32.xlu0 %v1269, 38
      %v1340 = vpop.permute.xlu0 %1339
      %1341 = vrot.lane.b32.xlu0 %v1270, 38
      %v1342 = vpop.permute.xlu0 %1341
      %1343 = vrot.lane.b32.xlu0 %v1271, 38
      %v1344 = vpop.permute.xlu0 %1343
      %1345 = vrot.lane.b32.xlu0 %v1272, 38
      %v1346 = vpop.permute.xlu0 %1345
      %1347 = vrot.lane.b32.xlu0 %v1273, 38
      %v1348 = vpop.permute.xlu0 %1347
      %1349 = vrot.lane.b32.xlu0 %v1274, 38
      %v1350 = vpop.permute.xlu0 %1349
      %1351 = vrot.lane.b32.xlu0 %v1275, 38
      %v1352 = vpop.permute.xlu0 %1351
      %1353 = vrot.lane.b32.xlu0 %v1276, 38
      %v1354 = vpop.permute.xlu0 %1353
      %1355 = vrot.lane.b32.xlu0 %v1277, 38
      %v1356 = vpop.permute.xlu0 %1355
      %1357 = vrot.lane.b32.xlu0 %v1278, 38
      %v1358 = vpop.permute.xlu0 %1357
      %1359 = vrot.lane.b32.xlu0 %v1279, 38
      %v1360 = vpop.permute.xlu0 %1359
      %1361 = vrot.lane.b32.xlu0 %v1280, 38
      %v1362 = vpop.permute.xlu0 %1361
      %1363 = vrot.lane.b32.xlu0 %v1281, 38
      %v1364 = vpop.permute.xlu0 %1363
      %1365 = vrot.lane.b32.xlu0 %v1282, 38
      %v1366 = vpop.permute.xlu0 %1365
      %vm1367 = vcmask 310272
      %v1368 = vsel %vm1367, %v1312, %v1314
      %v1369 = vsel %vm1367, %v1314, %v1316
      %v1370 = vsel %vm1367, %v1316, %v1318
      %v1371 = vsel %vm1367, %v1318, %v1320
      %v1372 = vsel %vm1367, %v1320, %v1322
      %v1373 = vsel %vm1367, %v1322, %v1324
      %v1374 = vsel %vm1367, %v1326, %v1328
      %v1375 = vsel %vm1367, %v1328, %v1330
      %v1376 = vsel %vm1367, %v1330, %v1332
      %v1377 = vsel %vm1367, %v1332, %v1334
      %v1378 = vsel %vm1367, %v1334, %v1336
      %v1379 = vsel %vm1367, %v1336, %v1338
      %v1380 = vsel %vm1367, %v1340, %v1342
      %v1381 = vsel %vm1367, %v1342, %v1344
      %v1382 = vsel %vm1367, %v1344, %v1346
      %v1383 = vsel %vm1367, %v1346, %v1348
      %v1384 = vsel %vm1367, %v1348, %v1350
      %v1385 = vsel %vm1367, %v1350, %v1352
      %v1386 = vsel %vm1367, %v1354, %v1356
      %v1387 = vsel %vm1367, %v1356, %v1358
      %v1388 = vsel %vm1367, %v1358, %v1360
      %v1389 = vsel %vm1367, %v1360, %v1362
      %v1390 = vsel %vm1367, %v1362, %v1364
      %v1391 = vsel %vm1367, %v1364, %v1366
      %1416 = vst [vmem:[#allocation2 + $0x480] sm:$0xff] %v1368
      %1417 = vst [vmem:[#allocation2 + $0x488] sm:$0xff] %v1369
      %1418 = vst [vmem:[#allocation2 + $0x490] sm:$0xff] %v1370
      %1419 = vst [vmem:[#allocation2 + $0x498] sm:$0xff] %v1371
      %1420 = vst [vmem:[#allocation2 + $0x4a0] sm:$0xff] %v1372
      %1421 = vst [vmem:[#allocation2 + $0x4a8] sm:$0xff] %v1373
      %1422 = vst [vmem:[#allocation2 + $0x4b0] sm:$0xff] %v1374
      %1423 = vst [vmem:[#allocation2 + $0x4b8] sm:$0xff] %v1375
      %1424 = vst [vmem:[#allocation2 + $0x4c0] sm:$0xff] %v1376
      %1425 = vst [vmem:[#allocation2 + $0x4c8] sm:$0xff] %v1377
      %1426 = vst [vmem:[#allocation2 + $0x4d0] sm:$0xff] %v1378
      %1427 = vst [vmem:[#allocation2 + $0x4d8] sm:$0xff] %v1379
      %1428 = vst [vmem:[#allocation2 + $0x4e0] sm:$0xff] %v1380
      %1429 = vst [vmem:[#allocation2 + $0x4e8] sm:$0xff] %v1381
      %1430 = vst [vmem:[#allocation2 + $0x4f0] sm:$0xff] %v1382
      %1431 = vst [vmem:[#allocation2 + $0x4f8] sm:$0xff] %v1383
      %1432 = vst [vmem:[#allocation2 + $0x500] sm:$0xff] %v1384
      %1433 = vst [vmem:[#allocation2 + $0x508] sm:$0xff] %v1385
      %1434 = vst [vmem:[#allocation2 + $0x510] sm:$0xff] %v1386
      %1435 = vst [vmem:[#allocation2 + $0x518] sm:$0xff] %v1387
      %1436 = vst [vmem:[#allocation2 + $0x520] sm:$0xff] %v1388
      %1437 = vst [vmem:[#allocation2 + $0x528] sm:$0xff] %v1389
      %1438 = vst [vmem:[#allocation2 + $0x530] sm:$0xff] %v1390
      %1439 = vst [vmem:[#allocation2 + $0x538] sm:$0xff] %v1391
      %v1440 = vld [vmem:[%s273] sm:$0xff]
      %v1441 = vld [vmem:[%s273 + $0x8] sm:$0xff]
      %v1442 = vld [vmem:[%s273 + $0x10] sm:$0xff]
      %v1443 = vld [vmem:[%s273 + $0x18] sm:$0xff]
      %v1444 = vld [vmem:[%s273 + $0x20] sm:$0xff]
      %v1445 = vld [vmem:[%s273 + $0x28] sm:$0xff]
      %v1446 = vld [vmem:[%s273 + $0x30] sm:$0xff]
      %v1447 = vld [vmem:[%s273 + $0x38] sm:$0xff]
      %v1448 = vld [vmem:[%s273 + $0x40] sm:$0xff]
      %v1449 = vld [vmem:[%s273 + $0x48] sm:$0xff]
      %v1450 = vld [vmem:[%s273 + $0x50] sm:$0xff]
      %v1451 = vld [vmem:[%s273 + $0x58] sm:$0xff]
      %v1452 = vld [vmem:[%s273 + $0x60] sm:$0xff]
      %v1453 = vld [vmem:[%s273 + $0x68] sm:$0xff]
      %v1454 = vld [vmem:[%s273 + $0x70] sm:$0xff]
      %v1455 = vld [vmem:[%s273 + $0x78] sm:$0xff]
      %v1456 = vld [vmem:[%s273 + $0x80] sm:$0xff]
      %v1457 = vld [vmem:[%s273 + $0x88] sm:$0xff]
      %v1458 = vld [vmem:[%s273 + $0x90] sm:$0xff]
      %v1459 = vld [vmem:[%s273 + $0x98] sm:$0xff]
      %v1460 = vld [vmem:[%s273 + $0xa0] sm:$0xff]
      %v1461 = vld [vmem:[%s273 + $0xa8] sm:$0xff]
      %v1462 = vld [vmem:[%s273 + $0xb0] sm:$0xff]
      %v1463 = vld [vmem:[%s273 + $0xb8] sm:$0xff]
      %v1464 = vld [vmem:[%s273 + $0xc0] sm:$0xff]
      %v1465 = vld [vmem:[%s273 + $0xc8] sm:$0xff]
      %v1466 = vld [vmem:[%s273 + $0xd0] sm:$0xff]
      %v1467 = vld [vmem:[%s273 + $0xd8] sm:$0xff]
      %1496 = vrot.lane.b32.xlu0 %v1440, 37
      %v1497 = vpop.permute.xlu0 %1496
      %1498 = vrot.lane.b32.xlu0 %v1441, 37
      %v1499 = vpop.permute.xlu0 %1498
      %1500 = vrot.lane.b32.xlu0 %v1442, 37
      %v1501 = vpop.permute.xlu0 %1500
      %1502 = vrot.lane.b32.xlu0 %v1443, 37
      %v1503 = vpop.permute.xlu0 %1502
      %1504 = vrot.lane.b32.xlu0 %v1444, 37
      %v1505 = vpop.permute.xlu0 %1504
      %1506 = vrot.lane.b32.xlu0 %v1445, 37
      %v1507 = vpop.permute.xlu0 %1506
      %1508 = vrot.lane.b32.xlu0 %v1446, 37
      %v1509 = vpop.permute.xlu0 %1508
      %1510 = vrot.lane.b32.xlu0 %v1447, 37
      %v1511 = vpop.permute.xlu0 %1510
      %1512 = vrot.lane.b32.xlu0 %v1448, 37
      %v1513 = vpop.permute.xlu0 %1512
      %1514 = vrot.lane.b32.xlu0 %v1449, 37
      %v1515 = vpop.permute.xlu0 %1514
      %1516 = vrot.lane.b32.xlu0 %v1450, 37
      %v1517 = vpop.permute.xlu0 %1516
      %1518 = vrot.lane.b32.xlu0 %v1451, 37
      %v1519 = vpop.permute.xlu0 %1518
      %1520 = vrot.lane.b32.xlu0 %v1452, 37
      %v1521 = vpop.permute.xlu0 %1520
      %1522 = vrot.lane.b32.xlu0 %v1453, 37
      %v1523 = vpop.permute.xlu0 %1522
      %1524 = vrot.lane.b32.xlu0 %v1454, 37
      %v1525 = vpop.permute.xlu0 %1524
      %1526 = vrot.lane.b32.xlu0 %v1455, 37
      %v1527 = vpop.permute.xlu0 %1526
      %1528 = vrot.lane.b32.xlu0 %v1456, 37
      %v1529 = vpop.permute.xlu0 %1528
      %1530 = vrot.lane.b32.xlu0 %v1457, 37
      %v1531 = vpop.permute.xlu0 %1530
      %1532 = vrot.lane.b32.xlu0 %v1458, 37
      %v1533 = vpop.permute.xlu0 %1532
      %1534 = vrot.lane.b32.xlu0 %v1459, 37
      %v1535 = vpop.permute.xlu0 %1534
      %1536 = vrot.lane.b32.xlu0 %v1460, 37
      %v1537 = vpop.permute.xlu0 %1536
      %1538 = vrot.lane.b32.xlu0 %v1461, 37
      %v1539 = vpop.permute.xlu0 %1538
      %1540 = vrot.lane.b32.xlu0 %v1462, 37
      %v1541 = vpop.permute.xlu0 %1540
      %1542 = vrot.lane.b32.xlu0 %v1463, 37
      %v1543 = vpop.permute.xlu0 %1542
      %1544 = vrot.lane.b32.xlu0 %v1464, 37
      %v1545 = vpop.permute.xlu0 %1544
      %1546 = vrot.lane.b32.xlu0 %v1465, 37
      %v1547 = vpop.permute.xlu0 %1546
      %1548 = vrot.lane.b32.xlu0 %v1466, 37
      %v1549 = vpop.permute.xlu0 %1548
      %1550 = vrot.lane.b32.xlu0 %v1467, 37
      %v1551 = vpop.permute.xlu0 %1550
      %vm1552 = vcmask 302080
      %v1553 = vsel %vm1552, %v1497, %v1499
      %v1554 = vsel %vm1552, %v1499, %v1501
      %v1555 = vsel %vm1552, %v1501, %v1503
      %v1556 = vsel %vm1552, %v1503, %v1505
      %v1557 = vsel %vm1552, %v1505, %v1507
      %v1558 = vsel %vm1552, %v1507, %v1509
      %v1559 = vsel %vm1552, %v1511, %v1513
      %v1560 = vsel %vm1552, %v1513, %v1515
      %v1561 = vsel %vm1552, %v1515, %v1517
      %v1562 = vsel %vm1552, %v1517, %v1519
      %v1563 = vsel %vm1552, %v1519, %v1521
      %v1564 = vsel %vm1552, %v1521, %v1523
      %v1565 = vsel %vm1552, %v1525, %v1527
      %v1566 = vsel %vm1552, %v1527, %v1529
      %v1567 = vsel %vm1552, %v1529, %v1531
      %v1568 = vsel %vm1552, %v1531, %v1533
      %v1569 = vsel %vm1552, %v1533, %v1535
      %v1570 = vsel %vm1552, %v1535, %v1537
      %v1571 = vsel %vm1552, %v1539, %v1541
      %v1572 = vsel %vm1552, %v1541, %v1543
      %v1573 = vsel %vm1552, %v1543, %v1545
      %v1574 = vsel %vm1552, %v1545, %v1547
      %v1575 = vsel %vm1552, %v1547, %v1549
      %v1576 = vsel %vm1552, %v1549, %v1551
      %1601 = vst [vmem:[#allocation2 + $0x540] sm:$0xff] %v1553
      %1602 = vst [vmem:[#allocation2 + $0x548] sm:$0xff] %v1554
      %1603 = vst [vmem:[#allocation2 + $0x550] sm:$0xff] %v1555
      %1604 = vst [vmem:[#allocation2 + $0x558] sm:$0xff] %v1556
      %1605 = vst [vmem:[#allocation2 + $0x560] sm:$0xff] %v1557
      %1606 = vst [vmem:[#allocation2 + $0x568] sm:$0xff] %v1558
      %1607 = vst [vmem:[#allocation2 + $0x570] sm:$0xff] %v1559
      %1608 = vst [vmem:[#allocation2 + $0x578] sm:$0xff] %v1560
      %1609 = vst [vmem:[#allocation2 + $0x580] sm:$0xff] %v1561
      %1610 = vst [vmem:[#allocation2 + $0x588] sm:$0xff] %v1562
      %1611 = vst [vmem:[#allocation2 + $0x590] sm:$0xff] %v1563
      %1612 = vst [vmem:[#allocation2 + $0x598] sm:$0xff] %v1564
      %1613 = vst [vmem:[#allocation2 + $0x5a0] sm:$0xff] %v1565
      %1614 = vst [vmem:[#allocation2 + $0x5a8] sm:$0xff] %v1566
      %1615 = vst [vmem:[#allocation2 + $0x5b0] sm:$0xff] %v1567
      %1616 = vst [vmem:[#allocation2 + $0x5b8] sm:$0xff] %v1568
      %1617 = vst [vmem:[#allocation2 + $0x5c0] sm:$0xff] %v1569
      %1618 = vst [vmem:[#allocation2 + $0x5c8] sm:$0xff] %v1570
      %1619 = vst [vmem:[#allocation2 + $0x5d0] sm:$0xff] %v1571
      %1620 = vst [vmem:[#allocation2 + $0x5d8] sm:$0xff] %v1572
      %1621 = vst [vmem:[#allocation2 + $0x5e0] sm:$0xff] %v1573
      %1622 = vst [vmem:[#allocation2 + $0x5e8] sm:$0xff] %v1574
      %1623 = vst [vmem:[#allocation2 + $0x5f0] sm:$0xff] %v1575
      %1624 = vst [vmem:[#allocation2 + $0x5f8] sm:$0xff] %v1576
      %v1625 = vld [vmem:[%s1] sm:$0xf]
      %v1626 = vld [vmem:[#allocation2] sm:$0xff]
      %v1627 = vld [vmem:[#allocation2 + $0x8] sm:$0xff]
      %v1628 = vld [vmem:[#allocation2 + $0x10] sm:$0xff]
      %v1629 = vld [vmem:[#allocation2 + $0x18] sm:$0xff]
      %v1630 = vld [vmem:[#allocation2 + $0x20] sm:$0xff]
      %v1631 = vld [vmem:[#allocation2 + $0x28] sm:$0xff]
      %v1632 = vld [vmem:[#allocation2 + $0x30] sm:$0xff]
      %v1633 = vld [vmem:[#allocation2 + $0x38] sm:$0xff]
      %v1634 = vld [vmem:[#allocation2 + $0x40] sm:$0xff]
      %v1635 = vld [vmem:[#allocation2 + $0x48] sm:$0xff]
      %v1636 = vld [vmem:[#allocation2 + $0x50] sm:$0xff]
      %v1637 = vld [vmem:[#allocation2 + $0x58] sm:$0xff]
      %v1638 = vld [vmem:[#allocation2 + $0x60] sm:$0xff]
      %v1639 = vld [vmem:[#allocation2 + $0x68] sm:$0xff]
      %v1640 = vld [vmem:[#allocation2 + $0x70] sm:$0xff]
      %v1641 = vld [vmem:[#allocation2 + $0x78] sm:$0xff]
      %v1642 = vld [vmem:[#allocation2 + $0x80] sm:$0xff]
      %v1643 = vld [vmem:[#allocation2 + $0x88] sm:$0xff]
      %v1644 = vld [vmem:[#allocation2 + $0x90] sm:$0xff]
      %v1645 = vld [vmem:[#allocation2 + $0x98] sm:$0xff]
      %v1646 = vld [vmem:[#allocation2 + $0xa0] sm:$0xff]
      %v1647 = vld [vmem:[#allocation2 + $0xa8] sm:$0xff]
      %v1648 = vld [vmem:[#allocation2 + $0xb0] sm:$0xff]
      %v1649 = vld [vmem:[#allocation2 + $0xb8] sm:$0xff]
      %v1650 = vld [vmem:[#allocation2 + $0xc0] sm:$0xff]
      %v1651 = vld [vmem:[#allocation2 + $0xc8] sm:$0xff]
      %v1652 = vld [vmem:[#allocation2 + $0xd0] sm:$0xff]
      %v1653 = vld [vmem:[#allocation2 + $0xd8] sm:$0xff]
      %v1654 = vld [vmem:[#allocation2 + $0xe0] sm:$0xff]
      %v1655 = vld [vmem:[#allocation2 + $0xe8] sm:$0xff]
      %v1656 = vld [vmem:[#allocation2 + $0xf0] sm:$0xff]
      %v1657 = vld [vmem:[#allocation2 + $0xf8] sm:$0xff]
      %v1658 = vld [vmem:[#allocation2 + $0x100] sm:$0xff]
      %v1659 = vld [vmem:[#allocation2 + $0x108] sm:$0xff]
      %v1660 = vld [vmem:[#allocation2 + $0x110] sm:$0xff]
      %v1661 = vld [vmem:[#allocation2 + $0x118] sm:$0xff]
      %v1662 = vld [vmem:[#allocation2 + $0x120] sm:$0xff]
      %v1663 = vld [vmem:[#allocation2 + $0x128] sm:$0xff]
      %v1664 = vld [vmem:[#allocation2 + $0x130] sm:$0xff]
      %v1665 = vld [vmem:[#allocation2 + $0x138] sm:$0xff]
      %v1666 = vld [vmem:[#allocation2 + $0x140] sm:$0xff]
      %v1667 = vld [vmem:[#allocation2 + $0x148] sm:$0xff]
      %v1668 = vld [vmem:[#allocation2 + $0x150] sm:$0xff]
      %v1669 = vld [vmem:[#allocation2 + $0x158] sm:$0xff]
      %v1670 = vld [vmem:[#allocation2 + $0x160] sm:$0xff]
      %v1671 = vld [vmem:[#allocation2 + $0x168] sm:$0xff]
      %v1672 = vld [vmem:[#allocation2 + $0x170] sm:$0xff]
      %v1673 = vld [vmem:[#allocation2 + $0x178] sm:$0xff]
      %v1674 = vld [vmem:[#allocation2 + $0x180] sm:$0xff]
      %v1675 = vld [vmem:[#allocation2 + $0x188] sm:$0xff]
      %v1676 = vld [vmem:[#allocation2 + $0x190] sm:$0xff]
      %v1677 = vld [vmem:[#allocation2 + $0x198] sm:$0xff]
      %v1678 = vld [vmem:[#allocation2 + $0x1a0] sm:$0xff]
      %v1679 = vld [vmem:[#allocation2 + $0x1a8] sm:$0xff]
      %v1680 = vld [vmem:[#allocation2 + $0x1b0] sm:$0xff]
      %v1681 = vld [vmem:[#allocation2 + $0x1b8] sm:$0xff]
      %v1682 = vld [vmem:[#allocation2 + $0x1c0] sm:$0xff]
      %v1683 = vld [vmem:[#allocation2 + $0x1c8] sm:$0xff]
      %v1684 = vld [vmem:[#allocation2 + $0x1d0] sm:$0xff]
      %v1685 = vld [vmem:[#allocation2 + $0x1d8] sm:$0xff]
      %v1686 = vld [vmem:[#allocation2 + $0x1e0] sm:$0xff]
      %v1687 = vld [vmem:[#allocation2 + $0x1e8] sm:$0xff]
      %v1688 = vld [vmem:[#allocation2 + $0x1f0] sm:$0xff]
      %v1689 = vld [vmem:[#allocation2 + $0x1f8] sm:$0xff]
      %v1690 = vld [vmem:[#allocation2 + $0x200] sm:$0xff]
      %v1691 = vld [vmem:[#allocation2 + $0x208] sm:$0xff]
      %v1692 = vld [vmem:[#allocation2 + $0x210] sm:$0xff]
      %v1693 = vld [vmem:[#allocation2 + $0x218] sm:$0xff]
      %v1694 = vld [vmem:[#allocation2 + $0x220] sm:$0xff]
      %v1695 = vld [vmem:[#allocation2 + $0x228] sm:$0xff]
      %v1696 = vld [vmem:[#allocation2 + $0x230] sm:$0xff]
      %v1697 = vld [vmem:[#allocation2 + $0x238] sm:$0xff]
      %v1698 = vld [vmem:[#allocation2 + $0x240] sm:$0xff]
      %v1699 = vld [vmem:[#allocation2 + $0x248] sm:$0xff]
      %v1700 = vld [vmem:[#allocation2 + $0x250] sm:$0xff]
      %v1701 = vld [vmem:[#allocation2 + $0x258] sm:$0xff]
      %v1702 = vld [vmem:[#allocation2 + $0x260] sm:$0xff]
      %v1703 = vld [vmem:[#allocation2 + $0x268] sm:$0xff]
      %v1704 = vld [vmem:[#allocation2 + $0x270] sm:$0xff]
      %v1705 = vld [vmem:[#allocation2 + $0x278] sm:$0xff]
      %v1706 = vld [vmem:[#allocation2 + $0x280] sm:$0xff]
      %v1707 = vld [vmem:[#allocation2 + $0x288] sm:$0xff]
      %v1708 = vld [vmem:[#allocation2 + $0x290] sm:$0xff]
      %v1709 = vld [vmem:[#allocation2 + $0x298] sm:$0xff]
      %v1710 = vld [vmem:[#allocation2 + $0x2a0] sm:$0xff]
      %v1711 = vld [vmem:[#allocation2 + $0x2a8] sm:$0xff]
      %v1712 = vld [vmem:[#allocation2 + $0x2b0] sm:$0xff]
      %v1713 = vld [vmem:[#allocation2 + $0x2b8] sm:$0xff]
      %v1714 = vld [vmem:[#allocation2 + $0x2c0] sm:$0xff]
      %v1715 = vld [vmem:[#allocation2 + $0x2c8] sm:$0xff]
      %v1716 = vld [vmem:[#allocation2 + $0x2d0] sm:$0xff]
      %v1717 = vld [vmem:[#allocation2 + $0x2d8] sm:$0xff]
      %v1718 = vld [vmem:[#allocation2 + $0x2e0] sm:$0xff]
      %v1719 = vld [vmem:[#allocation2 + $0x2e8] sm:$0xff]
      %v1720 = vld [vmem:[#allocation2 + $0x2f0] sm:$0xff]
      %v1721 = vld [vmem:[#allocation2 + $0x2f8] sm:$0xff]
      %v1722 = vld [vmem:[#allocation2 + $0x300] sm:$0xff]
      %v1723 = vld [vmem:[#allocation2 + $0x308] sm:$0xff]
      %v1724 = vld [vmem:[#allocation2 + $0x310] sm:$0xff]
      %v1725 = vld [vmem:[#allocation2 + $0x318] sm:$0xff]
      %v1726 = vld [vmem:[#allocation2 + $0x320] sm:$0xff]
      %v1727 = vld [vmem:[#allocation2 + $0x328] sm:$0xff]
      %v1728 = vld [vmem:[#allocation2 + $0x330] sm:$0xff]
      %v1729 = vld [vmem:[#allocation2 + $0x338] sm:$0xff]
      %v1730 = vld [vmem:[#allocation2 + $0x340] sm:$0xff]
      %v1731 = vld [vmem:[#allocation2 + $0x348] sm:$0xff]
      %v1732 = vld [vmem:[#allocation2 + $0x350] sm:$0xff]
      %v1733 = vld [vmem:[#allocation2 + $0x358] sm:$0xff]
      %v1734 = vld [vmem:[#allocation2 + $0x360] sm:$0xff]
      %v1735 = vld [vmem:[#allocation2 + $0x368] sm:$0xff]
      %v1736 = vld [vmem:[#allocation2 + $0x370] sm:$0xff]
      %v1737 = vld [vmem:[#allocation2 + $0x378] sm:$0xff]
      %v1738 = vld [vmem:[#allocation2 + $0x380] sm:$0xff]
      %v1739 = vld [vmem:[#allocation2 + $0x388] sm:$0xff]
      %v1740 = vld [vmem:[#allocation2 + $0x390] sm:$0xff]
      %v1741 = vld [vmem:[#allocation2 + $0x398] sm:$0xff]
      %v1742 = vld [vmem:[#allocation2 + $0x3a0] sm:$0xff]
      %v1743 = vld [vmem:[#allocation2 + $0x3a8] sm:$0xff]
      %v1744 = vld [vmem:[#allocation2 + $0x3b0] sm:$0xff]
      %v1745 = vld [vmem:[#allocation2 + $0x3b8] sm:$0xff]
      %v1746 = vld [vmem:[#allocation2 + $0x3c0] sm:$0xff]
      %v1747 = vld [vmem:[#allocation2 + $0x3c8] sm:$0xff]
      %v1748 = vld [vmem:[#allocation2 + $0x3d0] sm:$0xff]
      %v1749 = vld [vmem:[#allocation2 + $0x3d8] sm:$0xff]
      %v1750 = vld [vmem:[#allocation2 + $0x3e0] sm:$0xff]
      %v1751 = vld [vmem:[#allocation2 + $0x3e8] sm:$0xff]
      %v1752 = vld [vmem:[#allocation2 + $0x3f0] sm:$0xff]
      %v1753 = vld [vmem:[#allocation2 + $0x3f8] sm:$0xff]
      %v1754 = vld [vmem:[#allocation2 + $0x400] sm:$0xff]
      %v1755 = vld [vmem:[#allocation2 + $0x408] sm:$0xff]
      %v1756 = vld [vmem:[#allocation2 + $0x410] sm:$0xff]
      %v1757 = vld [vmem:[#allocation2 + $0x418] sm:$0xff]
      %v1758 = vld [vmem:[#allocation2 + $0x420] sm:$0xff]
      %v1759 = vld [vmem:[#allocation2 + $0x428] sm:$0xff]
      %v1760 = vld [vmem:[#allocation2 + $0x430] sm:$0xff]
      %v1761 = vld [vmem:[#allocation2 + $0x438] sm:$0xff]
      %v1762 = vld [vmem:[#allocation2 + $0x440] sm:$0xff]
      %v1763 = vld [vmem:[#allocation2 + $0x448] sm:$0xff]
      %v1764 = vld [vmem:[#allocation2 + $0x450] sm:$0xff]
      %v1765 = vld [vmem:[#allocation2 + $0x458] sm:$0xff]
      %v1766 = vld [vmem:[#allocation2 + $0x460] sm:$0xff]
      %v1767 = vld [vmem:[#allocation2 + $0x468] sm:$0xff]
      %v1768 = vld [vmem:[#allocation2 + $0x470] sm:$0xff]
      %v1769 = vld [vmem:[#allocation2 + $0x478] sm:$0xff]
      %v1770 = vld [vmem:[#allocation2 + $0x480] sm:$0xff]
      %v1771 = vld [vmem:[#allocation2 + $0x488] sm:$0xff]
      %v1772 = vld [vmem:[#allocation2 + $0x490] sm:$0xff]
      %v1773 = vld [vmem:[#allocation2 + $0x498] sm:$0xff]
      %v1774 = vld [vmem:[#allocation2 + $0x4a0] sm:$0xff]
      %v1775 = vld [vmem:[#allocation2 + $0x4a8] sm:$0xff]
      %v1776 = vld [vmem:[#allocation2 + $0x4b0] sm:$0xff]
      %v1777 = vld [vmem:[#allocation2 + $0x4b8] sm:$0xff]
      %v1778 = vld [vmem:[#allocation2 + $0x4c0] sm:$0xff]
      %v1779 = vld [vmem:[#allocation2 + $0x4c8] sm:$0xff]
      %v1780 = vld [vmem:[#allocation2 + $0x4d0] sm:$0xff]
      %v1781 = vld [vmem:[#allocation2 + $0x4d8] sm:$0xff]
      %v1782 = vld [vmem:[#allocation2 + $0x4e0] sm:$0xff]
      %v1783 = vld [vmem:[#allocation2 + $0x4e8] sm:$0xff]
      %v1784 = vld [vmem:[#allocation2 + $0x4f0] sm:$0xff]
      %v1785 = vld [vmem:[#allocation2 + $0x4f8] sm:$0xff]
      %v1786 = vld [vmem:[#allocation2 + $0x500] sm:$0xff]
      %v1787 = vld [vmem:[#allocation2 + $0x508] sm:$0xff]
      %v1788 = vld [vmem:[#allocation2 + $0x510] sm:$0xff]
      %v1789 = vld [vmem:[#allocation2 + $0x518] sm:$0xff]
      %v1790 = vld [vmem:[#allocation2 + $0x520] sm:$0xff]
      %v1791 = vld [vmem:[#allocation2 + $0x528] sm:$0xff]
      %v1792 = vld [vmem:[#allocation2 + $0x530] sm:$0xff]
      %v1793 = vld [vmem:[#allocation2 + $0x538] sm:$0xff]
      %v1794 = vld [vmem:[#allocation2 + $0x540] sm:$0xff]
      %v1795 = vld [vmem:[#allocation2 + $0x548] sm:$0xff]
      %v1796 = vld [vmem:[#allocation2 + $0x550] sm:$0xff]
      %v1797 = vld [vmem:[#allocation2 + $0x558] sm:$0xff]
      %v1798 = vld [vmem:[#allocation2 + $0x560] sm:$0xff]
      %v1799 = vld [vmem:[#allocation2 + $0x568] sm:$0xff]
      %v1800 = vld [vmem:[#allocation2 + $0x570] sm:$0xff]
      %v1801 = vld [vmem:[#allocation2 + $0x578] sm:$0xff]
      %v1802 = vld [vmem:[#allocation2 + $0x580] sm:$0xff]
      %v1803 = vld [vmem:[#allocation2 + $0x588] sm:$0xff]
      %v1804 = vld [vmem:[#allocation2 + $0x590] sm:$0xff]
      %v1805 = vld [vmem:[#allocation2 + $0x598] sm:$0xff]
      %v1806 = vld [vmem:[#allocation2 + $0x5a0] sm:$0xff]
      %v1807 = vld [vmem:[#allocation2 + $0x5a8] sm:$0xff]
      %v1808 = vld [vmem:[#allocation2 + $0x5b0] sm:$0xff]
      %v1809 = vld [vmem:[#allocation2 + $0x5b8] sm:$0xff]
      %v1810 = vld [vmem:[#allocation2 + $0x5c0] sm:$0xff]
      %v1811 = vld [vmem:[#allocation2 + $0x5c8] sm:$0xff]
      %v1812 = vld [vmem:[#allocation2 + $0x5d0] sm:$0xff]
      %v1813 = vld [vmem:[#allocation2 + $0x5d8] sm:$0xff]
      %v1814 = vld [vmem:[#allocation2 + $0x5e0] sm:$0xff]
      %v1815 = vld [vmem:[#allocation2 + $0x5e8] sm:$0xff]
      %v1816 = vld [vmem:[#allocation2 + $0x5f0] sm:$0xff]
      %v1817 = vld [vmem:[#allocation2 + $0x5f8] sm:$0xff]
      %v1818 = vpack.c.bf16 %v1632, %v1626
      %v1819 = vpack.c.bf16 %v1633, %v1627
      %v1820 = vpack.c.bf16 %v1634, %v1628
      %v1821 = vpack.c.bf16 %v1635, %v1629
      %v1822 = vpack.c.bf16 %v1636, %v1630
      %v1823 = vpack.c.bf16 %v1637, %v1631
      %v1824 = vpack.c.bf16 %v1644, %v1638
      %v1825 = vpack.c.bf16 %v1645, %v1639
      %v1826 = vpack.c.bf16 %v1646, %v1640
      %v1827 = vpack.c.bf16 %v1647, %v1641
      %v1828 = vpack.c.bf16 %v1648, %v1642
      %v1829 = vpack.c.bf16 %v1649, %v1643
      %v1830 = vpack.c.bf16 %v1656, %v1650
      %v1831 = vpack.c.bf16 %v1657, %v1651
      %v1832 = vpack.c.bf16 %v1658, %v1652
      %v1833 = vpack.c.bf16 %v1659, %v1653
      %v1834 = vpack.c.bf16 %v1660, %v1654
      %v1835 = vpack.c.bf16 %v1661, %v1655
      %v1836 = vpack.c.bf16 %v1668, %v1662
      %v1837 = vpack.c.bf16 %v1669, %v1663
      %v1838 = vpack.c.bf16 %v1670, %v1664
      %v1839 = vpack.c.bf16 %v1671, %v1665
      %v1840 = vpack.c.bf16 %v1672, %v1666
      %v1841 = vpack.c.bf16 %v1673, %v1667
      %v1842 = vpack.c.bf16 %v1680, %v1674
      %v1843 = vpack.c.bf16 %v1681, %v1675
      %v1844 = vpack.c.bf16 %v1682, %v1676
      %v1845 = vpack.c.bf16 %v1683, %v1677
      %v1846 = vpack.c.bf16 %v1684, %v1678
      %v1847 = vpack.c.bf16 %v1685, %v1679
      %v1848 = vpack.c.bf16 %v1692, %v1686
      %v1849 = vpack.c.bf16 %v1693, %v1687
      %v1850 = vpack.c.bf16 %v1694, %v1688
      %v1851 = vpack.c.bf16 %v1695, %v1689
      %v1852 = vpack.c.bf16 %v1696, %v1690
      %v1853 = vpack.c.bf16 %v1697, %v1691
      %v1854 = vpack.c.bf16 %v1704, %v1698
      %v1855 = vpack.c.bf16 %v1705, %v1699
      %v1856 = vpack.c.bf16 %v1706, %v1700
      %v1857 = vpack.c.bf16 %v1707, %v1701
      %v1858 = vpack.c.bf16 %v1708, %v1702
      %v1859 = vpack.c.bf16 %v1709, %v1703
      %v1860 = vpack.c.bf16 %v1716, %v1710
      %v1861 = vpack.c.bf16 %v1717, %v1711
      %v1862 = vpack.c.bf16 %v1718, %v1712
      %v1863 = vpack.c.bf16 %v1719, %v1713
      %v1864 = vpack.c.bf16 %v1720, %v1714
      %v1865 = vpack.c.bf16 %v1721, %v1715
      %v1866 = vpack.c.bf16 %v1728, %v1722
      %v1867 = vpack.c.bf16 %v1729, %v1723
      %v1868 = vpack.c.bf16 %v1730, %v1724
      %v1869 = vpack.c.bf16 %v1731, %v1725
      %v1870 = vpack.c.bf16 %v1732, %v1726
      %v1871 = vpack.c.bf16 %v1733, %v1727
      %v1872 = vpack.c.bf16 %v1740, %v1734
      %v1873 = vpack.c.bf16 %v1741, %v1735
      %v1874 = vpack.c.bf16 %v1742, %v1736
      %v1875 = vpack.c.bf16 %v1743, %v1737
      %v1876 = vpack.c.bf16 %v1744, %v1738
      %v1877 = vpack.c.bf16 %v1745, %v1739
      %v1878 = vpack.c.bf16 %v1752, %v1746
      %v1879 = vpack.c.bf16 %v1753, %v1747
      %v1880 = vpack.c.bf16 %v1754, %v1748
      %v1881 = vpack.c.bf16 %v1755, %v1749
      %v1882 = vpack.c.bf16 %v1756, %v1750
      %v1883 = vpack.c.bf16 %v1757, %v1751
      %v1884 = vpack.c.bf16 %v1764, %v1758
      %v1885 = vpack.c.bf16 %v1765, %v1759
      %v1886 = vpack.c.bf16 %v1766, %v1760
      %v1887 = vpack.c.bf16 %v1767, %v1761
      %v1888 = vpack.c.bf16 %v1768, %v1762
      %v1889 = vpack.c.bf16 %v1769, %v1763
      %v1890 = vpack.c.bf16 %v1776, %v1770
      %v1891 = vpack.c.bf16 %v1777, %v1771
      %v1892 = vpack.c.bf16 %v1778, %v1772
      %v1893 = vpack.c.bf16 %v1779, %v1773
      %v1894 = vpack.c.bf16 %v1780, %v1774
      %v1895 = vpack.c.bf16 %v1781, %v1775
      %v1896 = vpack.c.bf16 %v1788, %v1782
      %v1897 = vpack.c.bf16 %v1789, %v1783
      %v1898 = vpack.c.bf16 %v1790, %v1784
      %v1899 = vpack.c.bf16 %v1791, %v1785
      %v1900 = vpack.c.bf16 %v1792, %v1786
      %v1901 = vpack.c.bf16 %v1793, %v1787
      %v1902 = vpack.c.bf16 %v1800, %v1794
      %v1903 = vpack.c.bf16 %v1801, %v1795
      %v1904 = vpack.c.bf16 %v1802, %v1796
      %v1905 = vpack.c.bf16 %v1803, %v1797
      %v1906 = vpack.c.bf16 %v1804, %v1798
      %v1907 = vpack.c.bf16 %v1805, %v1799
      %v1908 = vpack.c.bf16 %v1812, %v1806
      %v1909 = vpack.c.bf16 %v1813, %v1807
      %v1910 = vpack.c.bf16 %v1814, %v1808
      %v1911 = vpack.c.bf16 %v1815, %v1809
      %v1912 = vpack.c.bf16 %v1816, %v1810
      %v1913 = vpack.c.bf16 %v1817, %v1811
      %v1914 = vld [vmem:[%s2] sm:$0xf]
      %1916 = vset.pattern.permute.xlu0 0
      %1917 = vperm.xlu0 %1916, %v1914
      %v1918 = vpop.permute.xlu0 %1917
      %v1922 = vunpack.c.l.s4 1983009808
      %v1923 = vunpack.c.0.s8 %v1922
      %v1924 = vlaneseq
      %v1925 = vshrl.u32 %v1924, 7
      %v1926 = vsub.s32 %v1923, %v1925
      %v1927 = vrot.slane %v1625, %v1926
      %v1928 = vcombine.high %v1927, %v1927
      %1931 = vmatprep.subr.bf16.mxu0 %v1819
      %1932 = vmatpush1.bf16.msra.mxu0 %v1818
      %1933 = vmatprep.subr.bf16.mxu0 %v1825
      %1934 = vmatpush1.bf16.msra.mxu0 %v1824
      %1935 = vmatprep.subr.bf16.mxu0 %v1831
      %1936 = vmatpush1.bf16.msra.mxu0 %v1830
      %1937 = vmatprep.subr.bf16.mxu0 %v1837
      %1938 = vmatpush1.bf16.msra.mxu0 %v1836
      %1939 = vmatprep.subr.bf16.mxu0 %v1843
      %1940 = vmatpush1.bf16.msra.mxu0 %v1842
      %1941 = vmatprep.subr.bf16.mxu0 %v1849
      %1942 = vmatpush1.bf16.msra.mxu0 %v1848
      %1943 = vmatprep.subr.bf16.mxu0 %v1855
      %1944 = vmatpush1.bf16.msra.mxu0 %v1854
      %1945 = vmatprep.subr.bf16.mxu0 %v1861
      %1946 = vmatpush1.bf16.msra.mxu0 %v1860
      %1947 = vmatprep.subr.bf16.mxu0 %v1867
      %1948 = vmatpush1.bf16.msra.mxu0 %v1866
      %1949 = vmatprep.subr.bf16.mxu0 %v1873
      %1950 = vmatpush1.bf16.msra.mxu0 %v1872
      %1951 = vmatprep.subr.bf16.mxu0 %v1879
      %1952 = vmatpush1.bf16.msra.mxu0 %v1878
      %1953 = vmatprep.subr.bf16.mxu0 %v1885
      %1954 = vmatpush1.bf16.msra.mxu0 %v1884
      %1955 = vmatprep.subr.bf16.mxu0 %v1891
      %1956 = vmatpush1.bf16.msra.mxu0 %v1890
      %1957 = vmatprep.subr.bf16.mxu0 %v1897
      %1958 = vmatpush1.bf16.msra.mxu0 %v1896
      %1959 = vmatprep.subr.bf16.mxu0 %v1903
      %1960 = vmatpush1.bf16.msra.mxu0 %v1902
      %1961 = vmatprep.subr.bf16.mxu0 %v1909
      %1962 = vmatpush1.bf16.msra.mxu0 %v1908
      %1963 = vmatprep.mubr.bf16.mxu0 %v1928
      %1964 = vmatmul.mubr.bf16.gmra.mrb[0].mxu0 %v1927
      %v1965 = vpop.f32.mrb[0].mxu0
      %v1966 = vadd.f32 %v1918, %v1965
      %v1967 = vpop.f32.mrb[0].mxu0
      %v1968 = vadd.f32 %v1918, %v1967
      %v1969 = vpop.f32.mrb[0].mxu0
      %v1970 = vpop.f32.mrb[0].mxu0
      %1971 = vdwg.mxu0
      %1972 = vmatprep.subr.bf16.mxu0 %v1821
      %1973 = vmatpush1.bf16.msra.mxu0 %v1820
      %1974 = vmatprep.subr.bf16.mxu0 %v1827
      %1975 = vmatpush1.bf16.msra.mxu0 %v1826
      %1976 = vmatprep.subr.bf16.mxu0 %v1833
      %1977 = vmatpush1.bf16.msra.mxu0 %v1832
      %1978 = vmatprep.subr.bf16.mxu0 %v1839
      %1979 = vmatpush1.bf16.msra.mxu0 %v1838
      %1980 = vmatprep.subr.bf16.mxu0 %v1845
      %1981 = vmatpush1.bf16.msra.mxu0 %v1844
      %1982 = vmatprep.subr.bf16.mxu0 %v1851
      %1983 = vmatpush1.bf16.msra.mxu0 %v1850
      %1984 = vmatprep.subr.bf16.mxu0 %v1857
      %1985 = vmatpush1.bf16.msra.mxu0 %v1856
      %1986 = vmatprep.subr.bf16.mxu0 %v1863
      %1987 = vmatpush1.bf16.msra.mxu0 %v1862
      %1988 = vmatprep.subr.bf16.mxu0 %v1869
      %1989 = vmatpush1.bf16.msra.mxu0 %v1868
      %1990 = vmatprep.subr.bf16.mxu0 %v1875
      %1991 = vmatpush1.bf16.msra.mxu0 %v1874
      %1992 = vmatprep.subr.bf16.mxu0 %v1881
      %1993 = vmatpush1.bf16.msra.mxu0 %v1880
      %1994 = vmatprep.subr.bf16.mxu0 %v1887
      %1995 = vmatpush1.bf16.msra.mxu0 %v1886
      %1996 = vmatprep.subr.bf16.mxu0 %v1893
      %1997 = vmatpush1.bf16.msra.mxu0 %v1892
      %1998 = vmatprep.subr.bf16.mxu0 %v1899
      %1999 = vmatpush1.bf16.msra.mxu0 %v1898
      %2000 = vmatprep.subr.bf16.mxu0 %v1905
      %2001 = vmatpush1.bf16.msra.mxu0 %v1904
      %2002 = vmatprep.subr.bf16.mxu0 %v1911
      %2003 = vmatpush1.bf16.msra.mxu0 %v1910
      %2004 = vmatprep.mubr.bf16.mxu0 %v1928
      %2005 = vmatmul.mubr.bf16.gmra.mrb[0].mxu0 %v1927
      %v2006 = vpop.f32.mrb[0].mxu0
      %v2007 = vadd.f32 %v1918, %v2006
      %v2008 = vpop.f32.mrb[0].mxu0
      %v2009 = vadd.f32 %v1918, %v2008
      %v2010 = vpop.f32.mrb[0].mxu0
      %v2011 = vpop.f32.mrb[0].mxu0
      %2012 = vdwg.mxu0
      %2013 = vmatprep.subr.bf16.mxu0 %v1823
      %2014 = vmatpush1.bf16.msra.mxu0 %v1822
      %2015 = vmatprep.subr.bf16.mxu0 %v1829
      %2016 = vmatpush1.bf16.msra.mxu0 %v1828
      %2017 = vmatprep.subr.bf16.mxu0 %v1835
      %2018 = vmatpush1.bf16.msra.mxu0 %v1834
      %2019 = vmatprep.subr.bf16.mxu0 %v1841
      %2020 = vmatpush1.bf16.msra.mxu0 %v1840
      %2021 = vmatprep.subr.bf16.mxu0 %v1847
      %2022 = vmatpush1.bf16.msra.mxu0 %v1846
      %2023 = vmatprep.subr.bf16.mxu0 %v1853
      %2024 = vmatpush1.bf16.msra.mxu0 %v1852
      %2025 = vmatprep.subr.bf16.mxu0 %v1859
      %2026 = vmatpush1.bf16.msra.mxu0 %v1858
      %2027 = vmatprep.subr.bf16.mxu0 %v1865
      %2028 = vmatpush1.bf16.msra.mxu0 %v1864
      %2029 = vmatprep.subr.bf16.mxu0 %v1871
      %2030 = vmatpush1.bf16.msra.mxu0 %v1870
      %2031 = vmatprep.subr.bf16.mxu0 %v1877
      %2032 = vmatpush1.bf16.msra.mxu0 %v1876
      %2033 = vmatprep.subr.bf16.mxu0 %v1883
      %2034 = vmatpush1.bf16.msra.mxu0 %v1882
      %2035 = vmatprep.subr.bf16.mxu0 %v1889
      %2036 = vmatpush1.bf16.msra.mxu0 %v1888
      %2037 = vmatprep.subr.bf16.mxu0 %v1895
      %2038 = vmatpush1.bf16.msra.mxu0 %v1894
      %2039 = vmatprep.subr.bf16.mxu0 %v1901
      %2040 = vmatpush1.bf16.msra.mxu0 %v1900
      %2041 = vmatprep.subr.bf16.mxu0 %v1907
      %2042 = vmatpush1.bf16.msra.mxu0 %v1906
      %2043 = vmatprep.subr.bf16.mxu0 %v1913
      %2044 = vmatpush1.bf16.msra.mxu0 %v1912
      %2045 = vmatprep.mubr.bf16.mxu0 %v1928
      %2046 = vmatmul.mubr.bf16.gmra.mrb[0].mxu0 %v1927
      %v2047 = vpop.f32.mrb[0].mxu0
      %v2048 = vadd.f32 %v1918, %v2047
      %v2049 = vpop.f32.mrb[0].mxu0
      %v2050 = vadd.f32 %v1918, %v2049
      %v2051 = vpop.f32.mrb[0].mxu0
      %v2052 = vpop.f32.mrb[0].mxu0
      %2053 = vdwg.mxu0
      %v2055 = vlaneseq
      %v2056 = vshrl.u32 %v2055, 7
      %v2057 = vsub.s32 0, %v2056
      %v2058 = vrot.slane %v280, %v2057
      %v2059 = vlaneseq
      %v2060 = vshrl.u32 %v2059, 7
      %v2061 = vsub.s32 1, %v2060
      %v2062 = vrot.slane %v280, %v2061
      %v2063 = vlaneseq
      %v2064 = vshrl.u32 %v2063, 7
      %v2065 = vsub.s32 2, %v2064
      %v2066 = vrot.slane %v280, %v2065
      %v2067 = vlaneseq
      %v2068 = vshrl.u32 %v2067, 7
      %v2069 = vsub.s32 3, %v2068
      %v2070 = vrot.slane %v280, %v2069
      %v2071 = vlaneseq
      %v2072 = vshrl.u32 %v2071, 7
      %v2073 = vsub.s32 4, %v2072
      %v2074 = vrot.slane %v280, %v2073
      %v2075 = vlaneseq
      %v2076 = vshrl.u32 %v2075, 7
      %v2077 = vsub.s32 5, %v2076
      %v2078 = vrot.slane %v280, %v2077
      %v2085 = vmul.f32 %v1966, %v2058
      %v2086 = vmul.f32 %v1968, %v2062
      %v2087 = vmul.f32 %v2007, %v2066
      %v2088 = vmul.f32 %v2009, %v2070
      %v2089 = vmul.f32 %v2048, %v2074
      %v2090 = vmul.f32 %v2050, %v2078
      %2091 = vst [vmem:[#allocation5] sm:$0xff] 0.0
      %2092 = vst [vmem:[#allocation5 + $0x8] sm:$0xff] 0.0
      %2093 = vst [vmem:[#allocation5 + $0x10] sm:$0xff] 0.0
      %2094 = vst [vmem:[#allocation5 + $0x18] sm:$0xff] 0.0
      %v2101 = vcombine.low %v2085, %v2086
      %v2102 = vcombine.low %v2087, %v2088
      %v2103 = vcombine.low %v2089, %v2090
      %2107 = vst [vmem:[#allocation5] sm:$0xff] %v2101
      %2108 = vst [vmem:[#allocation5 + $0x8] sm:$0xff] %v2102
      %2109 = vst [vmem:[#allocation5 + $0x10] sm:$0xff] %v2103
      %v2110 = vld [vmem:[#allocation5] sm:$0xff]
      %v2111 = vld [vmem:[#allocation5 + $0x8] sm:$0xff]
      %v2112 = vld [vmem:[#allocation5 + $0x10] sm:$0xff]
      %v2116 = vcombine.high %v2110, %v2110
      %v2117 = vcombine.high %v2111, %v2111
      %v2118 = vcombine.high %v2112, %v2112
      %2122 = vst [vmem:[#allocation3] sm:$0xf] %v2110
      %2123 = vst [vmem:[#allocation3 + $0x8] sm:$0xf] %v2116
      %2124 = vst [vmem:[#allocation3 + $0x10] sm:$0xf] %v2111
      %2125 = vst [vmem:[#allocation3 + $0x18] sm:$0xf] %v2117
      %2126 = vst [vmem:[#allocation3 + $0x20] sm:$0xf] %v2112
      %2127 = vst [vmem:[#allocation3 + $0x28] sm:$0xf] %v2118
      %v2128 = vld [vmem:[#allocation5] sm:$0xff]
      %v2129 = vld [vmem:[#allocation5 + $0x8] sm:$0xff]
      %v2130 = vld [vmem:[#allocation5 + $0x10] sm:$0xff]
      %v2131 = vld [vmem:[#allocation5 + $0x18] sm:$0xf]
      %v2136 = vcombine.low %v2128, %v2128
      %v2137 = vcombine.low %v2129, %v2129
      %v2138 = vcombine.low %v2130, %v2130
      %v2139 = vcombine.low %v2131, %v2131
      %2140 = vrot.lane.b32.xlu0 %v2136, 127
      %v2141 = vpop.permute.xlu0 %2140
      %2142 = vrot.lane.b32.xlu0 %v2128, 127
      %v2143 = vpop.permute.xlu0 %2142
      %2144 = vrot.lane.b32.xlu0 %v2137, 127
      %v2145 = vpop.permute.xlu0 %2144
      %2146 = vrot.lane.b32.xlu0 %v2129, 127
      %v2147 = vpop.permute.xlu0 %2146
      %2148 = vrot.lane.b32.xlu0 %v2138, 127
      %v2149 = vpop.permute.xlu0 %2148
      %2150 = vrot.lane.b32.xlu0 %v2130, 127
      %v2151 = vpop.permute.xlu0 %2150
      %2152 = vrot.lane.b32.xlu0 %v2139, 127
      %v2153 = vpop.permute.xlu0 %2152
      %v2154 = vsel %vm442, %v2141, %v2143
      %v2155 = vsel %vm442, %v2143, %v2145
      %v2156 = vsel %vm442, %v2145, %v2147
      %v2157 = vsel %vm442, %v2147, %v2149
      %v2158 = vsel %vm442, %v2149, %v2151
      %v2159 = vsel %vm442, %v2151, %v2153
      %2166 = vst [vmem:[#allocation3] sm:$0xf0] %v2154
      %2167 = vst [vmem:[#allocation3 + $0x8] sm:$0xf0] %v2155
      %2168 = vst [vmem:[#allocation3 + $0x10] sm:$0xf0] %v2156
      %2169 = vst [vmem:[#allocation3 + $0x18] sm:$0xf0] %v2157
      %2170 = vst [vmem:[#allocation3 + $0x20] sm:$0xf0] %v2158
      %2171 = vst [vmem:[#allocation3 + $0x28] sm:$0xf0] %v2159
      %v2172 = vld [vmem:[#allocation5] sm:$0xff]
      %v2173 = vld [vmem:[#allocation5 + $0x8] sm:$0xff]
      %v2174 = vld [vmem:[#allocation5 + $0x10] sm:$0xff]
      %v2175 = vld [vmem:[#allocation5 + $0x18] sm:$0xf]
      %v2180 = vcombine.high %v2172, %v2172
      %v2181 = vcombine.high %v2173, %v2173
      %v2182 = vcombine.high %v2174, %v2174
      %2183 = vrot.lane.b32.xlu0 %v2172, 126
      %v2184 = vpop.permute.xlu0 %2183
      %2185 = vrot.lane.b32.xlu0 %v2180, 126
      %v2186 = vpop.permute.xlu0 %2185
      %2187 = vrot.lane.b32.xlu0 %v2173, 126
      %v2188 = vpop.permute.xlu0 %2187
      %2189 = vrot.lane.b32.xlu0 %v2181, 126
      %v2190 = vpop.permute.xlu0 %2189
      %2191 = vrot.lane.b32.xlu0 %v2174, 126
      %v2192 = vpop.permute.xlu0 %2191
      %2193 = vrot.lane.b32.xlu0 %v2182, 126
      %v2194 = vpop.permute.xlu0 %2193
      %2195 = vrot.lane.b32.xlu0 %v2175, 126
      %v2196 = vpop.permute.xlu0 %2195
      %vm2197 = vcmask 1031168
      %v2198 = vsel %vm2197, %v2184, %v2186
      %v2199 = vsel %vm2197, %v2186, %v2188
      %v2200 = vsel %vm2197, %v2188, %v2190
      %v2201 = vsel %vm2197, %v2190, %v2192
      %v2202 = vsel %vm2197, %v2192, %v2194
      %v2203 = vsel %vm2197, %v2194, %v2196
      %2210 = vst [vmem:[#allocation3 + $0x30] sm:$0xf] %v2198
      %2211 = vst [vmem:[#allocation3 + $0x38] sm:$0xf] %v2199
      %2212 = vst [vmem:[#allocation3 + $0x40] sm:$0xf] %v2200
      %2213 = vst [vmem:[#allocation3 + $0x48] sm:$0xf] %v2201
      %2214 = vst [vmem:[#allocation3 + $0x50] sm:$0xf] %v2202
      %2215 = vst [vmem:[#allocation3 + $0x58] sm:$0xf] %v2203
      %v2216 = vld [vmem:[#allocation5] sm:$0xff]
      %v2217 = vld [vmem:[#allocation5 + $0x8] sm:$0xff]
      %v2218 = vld [vmem:[#allocation5 + $0x10] sm:$0xff]
      %v2219 = vld [vmem:[#allocation5 + $0x18] sm:$0xf]
      %v2224 = vcombine.low %v2216, %v2216
      %v2225 = vcombine.low %v2217, %v2217
      %v2226 = vcombine.low %v2218, %v2218
      %v2227 = vcombine.low %v2219, %v2219
      %2228 = vrot.lane.b32.xlu0 %v2224, 119
      %v2229 = vpop.permute.xlu0 %2228
      %2230 = vrot.lane.b32.xlu0 %v2216, 119
      %v2231 = vpop.permute.xlu0 %2230
      %2232 = vrot.lane.b32.xlu0 %v2225, 119
      %v2233 = vpop.permute.xlu0 %2232
      %2234 = vrot.lane.b32.xlu0 %v2217, 119
      %v2235 = vpop.permute.xlu0 %2234
      %2236 = vrot.lane.b32.xlu0 %v2226, 119
      %v2237 = vpop.permute.xlu0 %2236
      %2238 = vrot.lane.b32.xlu0 %v2218, 119
      %v2239 = vpop.permute.xlu0 %2238
      %2240 = vrot.lane.b32.xlu0 %v2227, 119
      %v2241 = vpop.permute.xlu0 %2240
      %v2242 = vsel %vm627, %v2229, %v2231
      %v2243 = vsel %vm627, %v2231, %v2233
      %v2244 = vsel %vm627, %v2233, %v2235
      %v2245 = vsel %vm627, %v2235, %v2237
      %v2246 = vsel %vm627, %v2237, %v2239
      %v2247 = vsel %vm627, %v2239, %v2241
      %2254 = vst [vmem:[#allocation3 + $0x30] sm:$0xf0] %v2242
      %2255 = vst [vmem:[#allocation3 + $0x38] sm:$0xf0] %v2243
      %2256 = vst [vmem:[#allocation3 + $0x40] sm:$0xf0] %v2244
      %2257 = vst [vmem:[#allocation3 + $0x48] sm:$0xf0] %v2245
      %2258 = vst [vmem:[#allocation3 + $0x50] sm:$0xf0] %v2246
      %2259 = vst [vmem:[#allocation3 + $0x58] sm:$0xf0] %v2247
      %v2260 = vld [vmem:[#allocation5] sm:$0xff]
      %v2261 = vld [vmem:[#allocation5 + $0x8] sm:$0xff]
      %v2262 = vld [vmem:[#allocation5 + $0x10] sm:$0xff]
      %v2263 = vld [vmem:[#allocation5 + $0x18] sm:$0xf]
      %v2268 = vcombine.high %v2260, %v2260
      %v2269 = vcombine.high %v2261, %v2261
      %v2270 = vcombine.high %v2262, %v2262
      %2271 = vrot.lane.b32.xlu0 %v2260, 118
      %v2272 = vpop.permute.xlu0 %2271
      %2273 = vrot.lane.b32.xlu0 %v2268, 118
      %v2274 = vpop.permute.xlu0 %2273
      %2275 = vrot.lane.b32.xlu0 %v2261, 118
      %v2276 = vpop.permute.xlu0 %2275
      %2277 = vrot.lane.b32.xlu0 %v2269, 118
      %v2278 = vpop.permute.xlu0 %2277
      %2279 = vrot.lane.b32.xlu0 %v2262, 118
      %v2280 = vpop.permute.xlu0 %2279
      %2281 = vrot.lane.b32.xlu0 %v2270, 118
      %v2282 = vpop.permute.xlu0 %2281
      %2283 = vrot.lane.b32.xlu0 %v2263, 118
      %v2284 = vpop.permute.xlu0 %2283
      %v2285 = vsel %vm812, %v2272, %v2274
      %v2286 = vsel %vm812, %v2274, %v2276
      %v2287 = vsel %vm812, %v2276, %v2278
      %v2288 = vsel %vm812, %v2278, %v2280
      %v2289 = vsel %vm812, %v2280, %v2282
      %v2290 = vsel %vm812, %v2282, %v2284
      %2297 = vst [vmem:[#allocation3 + $0x60] sm:$0xf] %v2285
      %2298 = vst [vmem:[#allocation3 + $0x68] sm:$0xf] %v2286
      %2299 = vst [vmem:[#allocation3 + $0x70] sm:$0xf] %v2287
      %2300 = vst [vmem:[#allocation3 + $0x78] sm:$0xf] %v2288
      %2301 = vst [vmem:[#allocation3 + $0x80] sm:$0xf] %v2289
      %2302 = vst [vmem:[#allocation3 + $0x88] sm:$0xf] %v2290
      %v2303 = vld [vmem:[#allocation5] sm:$0xff]
      %v2304 = vld [vmem:[#allocation5 + $0x8] sm:$0xff]
      %v2305 = vld [vmem:[#allocation5 + $0x10] sm:$0xff]
      %v2306 = vld [vmem:[#allocation5 + $0x18] sm:$0xf]
      %v2311 = vcombine.low %v2303, %v2303
      %v2312 = vcombine.low %v2304, %v2304
      %v2313 = vcombine.low %v2305, %v2305
      %v2314 = vcombine.low %v2306, %v2306
      %2315 = vrot.lane.b32.xlu0 %v2311, 117
      %v2316 = vpop.permute.xlu0 %2315
      %2317 = vrot.lane.b32.xlu0 %v2303, 117
      %v2318 = vpop.permute.xlu0 %2317
      %2319 = vrot.lane.b32.xlu0 %v2312, 117
      %v2320 = vpop.permute.xlu0 %2319
      %2321 = vrot.lane.b32.xlu0 %v2304, 117
      %v2322 = vpop.permute.xlu0 %2321
      %2323 = vrot.lane.b32.xlu0 %v2313, 117
      %v2324 = vpop.permute.xlu0 %2323
      %2325 = vrot.lane.b32.xlu0 %v2305, 117
      %v2326 = vpop.permute.xlu0 %2325
      %2327 = vrot.lane.b32.xlu0 %v2314, 117
      %v2328 = vpop.permute.xlu0 %2327
      %vm2329 = vcmask 957440
      %v2330 = vsel %vm2329, %v2316, %v2318
      %v2331 = vsel %vm2329, %v2318, %v2320
      %v2332 = vsel %vm2329, %v2320, %v2322
      %v2333 = vsel %vm2329, %v2322, %v2324
      %v2334 = vsel %vm2329, %v2324, %v2326
      %v2335 = vsel %vm2329, %v2326, %v2328
      %2342 = vst [vmem:[#allocation3 + $0x60] sm:$0xf0] %v2330
      %2343 = vst [vmem:[#allocation3 + $0x68] sm:$0xf0] %v2331
      %2344 = vst [vmem:[#allocation3 + $0x70] sm:$0xf0] %v2332
      %2345 = vst [vmem:[#allocation3 + $0x78] sm:$0xf0] %v2333
      %2346 = vst [vmem:[#allocation3 + $0x80] sm:$0xf0] %v2334
      %2347 = vst [vmem:[#allocation3 + $0x88] sm:$0xf0] %v2335
      %v2348 = vld [vmem:[#allocation5] sm:$0xff]
      %v2349 = vld [vmem:[#allocation5 + $0x8] sm:$0xff]
      %v2350 = vld [vmem:[#allocation5 + $0x10] sm:$0xff]
      %v2351 = vld [vmem:[#allocation5 + $0x18] sm:$0xf]
      %v2356 = vcombine.high %v2348, %v2348
      %v2357 = vcombine.high %v2349, %v2349
      %v2358 = vcombine.high %v2350, %v2350
      %2359 = vrot.lane.b32.xlu0 %v2348, 110
      %v2360 = vpop.permute.xlu0 %2359
      %2361 = vrot.lane.b32.xlu0 %v2356, 110
      %v2362 = vpop.permute.xlu0 %2361
      %2363 = vrot.lane.b32.xlu0 %v2349, 110
      %v2364 = vpop.permute.xlu0 %2363
      %2365 = vrot.lane.b32.xlu0 %v2357, 110
      %v2366 = vpop.permute.xlu0 %2365
      %2367 = vrot.lane.b32.xlu0 %v2350, 110
      %v2368 = vpop.permute.xlu0 %2367
      %2369 = vrot.lane.b32.xlu0 %v2358, 110
      %v2370 = vpop.permute.xlu0 %2369
      %2371 = vrot.lane.b32.xlu0 %v2351, 110
      %v2372 = vpop.permute.xlu0 %2371
      %vm2373 = vcmask 900096
      %v2374 = vsel %vm2373, %v2360, %v2362
      %v2375 = vsel %vm2373, %v2362, %v2364
      %v2376 = vsel %vm2373, %v2364, %v2366
      %v2377 = vsel %vm2373, %v2366, %v2368
      %v2378 = vsel %vm2373, %v2368, %v2370
      %v2379 = vsel %vm2373, %v2370, %v2372
      %2386 = vst [vmem:[#allocation3 + $0x90] sm:$0xf] %v2374
      %2387 = vst [vmem:[#allocation3 + $0x98] sm:$0xf] %v2375
      %2388 = vst [vmem:[#allocation3 + $0xa0] sm:$0xf] %v2376
      %2389 = vst [vmem:[#allocation3 + $0xa8] sm:$0xf] %v2377
      %2390 = vst [vmem:[#allocation3 + $0xb0] sm:$0xf] %v2378
      %2391 = vst [vmem:[#allocation3 + $0xb8] sm:$0xf] %v2379
      %v2392 = vld [vmem:[#allocation5] sm:$0xff]
      %v2393 = vld [vmem:[#allocation5 + $0x8] sm:$0xff]
      %v2394 = vld [vmem:[#allocation5 + $0x10] sm:$0xff]
      %v2395 = vld [vmem:[#allocation5 + $0x18] sm:$0xf]
      %v2400 = vcombine.low %v2392, %v2392
      %v2401 = vcombine.low %v2393, %v2393
      %v2402 = vcombine.low %v2394, %v2394
      %v2403 = vcombine.low %v2395, %v2395
      %2404 = vrot.lane.b32.xlu0 %v2400, 109
      %v2405 = vpop.permute.xlu0 %2404
      %2406 = vrot.lane.b32.xlu0 %v2392, 109
      %v2407 = vpop.permute.xlu0 %2406
      %2408 = vrot.lane.b32.xlu0 %v2401, 109
      %v2409 = vpop.permute.xlu0 %2408
      %2410 = vrot.lane.b32.xlu0 %v2393, 109
      %v2411 = vpop.permute.xlu0 %2410
      %2412 = vrot.lane.b32.xlu0 %v2402, 109
      %v2413 = vpop.permute.xlu0 %2412
      %2414 = vrot.lane.b32.xlu0 %v2394, 109
      %v2415 = vpop.permute.xlu0 %2414
      %2416 = vrot.lane.b32.xlu0 %v2403, 109
      %v2417 = vpop.permute.xlu0 %2416
      %vm2418 = vcmask 891904
      %v2419 = vsel %vm2418, %v2405, %v2407
      %v2420 = vsel %vm2418, %v2407, %v2409
      %v2421 = vsel %vm2418, %v2409, %v2411
      %v2422 = vsel %vm2418, %v2411, %v2413
      %v2423 = vsel %vm2418, %v2413, %v2415
      %v2424 = vsel %vm2418, %v2415, %v2417
      %2431 = vst [vmem:[#allocation3 + $0x90] sm:$0xf0] %v2419
      %2432 = vst [vmem:[#allocation3 + $0x98] sm:$0xf0] %v2420
      %2433 = vst [vmem:[#allocation3 + $0xa0] sm:$0xf0] %v2421
      %2434 = vst [vmem:[#allocation3 + $0xa8] sm:$0xf0] %v2422
      %2435 = vst [vmem:[#allocation3 + $0xb0] sm:$0xf0] %v2423
      %2436 = vst [vmem:[#allocation3 + $0xb8] sm:$0xf0] %v2424
      %v2437 = vld [vmem:[#allocation5] sm:$0xff]
      %v2438 = vld [vmem:[#allocation5 + $0x8] sm:$0xff]
      %v2439 = vld [vmem:[#allocation5 + $0x10] sm:$0xff]
      %v2440 = vld [vmem:[#allocation5 + $0x18] sm:$0xf]
      %v2445 = vcombine.high %v2437, %v2437
      %v2446 = vcombine.high %v2438, %v2438
      %v2447 = vcombine.high %v2439, %v2439
      %2448 = vrot.lane.b32.xlu0 %v2437, 108
      %v2449 = vpop.permute.xlu0 %2448
      %2450 = vrot.lane.b32.xlu0 %v2445, 108
      %v2451 = vpop.permute.xlu0 %2450
      %2452 = vrot.lane.b32.xlu0 %v2438, 108
      %v2453 = vpop.permute.xlu0 %2452
      %2454 = vrot.lane.b32.xlu0 %v2446, 108
      %v2455 = vpop.permute.xlu0 %2454
      %2456 = vrot.lane.b32.xlu0 %v2439, 108
      %v2457 = vpop.permute.xlu0 %2456
      %2458 = vrot.lane.b32.xlu0 %v2447, 108
      %v2459 = vpop.permute.xlu0 %2458
      %2460 = vrot.lane.b32.xlu0 %v2440, 108
      %v2461 = vpop.permute.xlu0 %2460
      %vm2462 = vcmask 883712
      %v2463 = vsel %vm2462, %v2449, %v2451
      %v2464 = vsel %vm2462, %v2451, %v2453
      %v2465 = vsel %vm2462, %v2453, %v2455
      %v2466 = vsel %vm2462, %v2455, %v2457
      %v2467 = vsel %vm2462, %v2457, %v2459
      %v2468 = vsel %vm2462, %v2459, %v2461
      %2475 = vst [vmem:[#allocation3 + $0xc0] sm:$0xf] %v2463
      %2476 = vst [vmem:[#allocation3 + $0xc8] sm:$0xf] %v2464
      %2477 = vst [vmem:[#allocation3 + $0xd0] sm:$0xf] %v2465
      %2478 = vst [vmem:[#allocation3 + $0xd8] sm:$0xf] %v2466
      %2479 = vst [vmem:[#allocation3 + $0xe0] sm:$0xf] %v2467
      %2480 = vst [vmem:[#allocation3 + $0xe8] sm:$0xf] %v2468
      %v2481 = vld [vmem:[#allocation5] sm:$0xff]
      %v2482 = vld [vmem:[#allocation5 + $0x8] sm:$0xff]
      %v2483 = vld [vmem:[#allocation5 + $0x10] sm:$0xff]
      %v2484 = vld [vmem:[#allocation5 + $0x18] sm:$0xf]
      %v2489 = vcombine.low %v2481, %v2481
      %v2490 = vcombine.low %v2482, %v2482
      %v2491 = vcombine.low %v2483, %v2483
      %v2492 = vcombine.low %v2484, %v2484
      %2493 = vrot.lane.b32.xlu0 %v2489, 47
      %v2494 = vpop.permute.xlu0 %2493
      %2495 = vrot.lane.b32.xlu0 %v2481, 47
      %v2496 = vpop.permute.xlu0 %2495
      %2497 = vrot.lane.b32.xlu0 %v2490, 47
      %v2498 = vpop.permute.xlu0 %2497
      %2499 = vrot.lane.b32.xlu0 %v2482, 47
      %v2500 = vpop.permute.xlu0 %2499
      %2501 = vrot.lane.b32.xlu0 %v2491, 47
      %v2502 = vpop.permute.xlu0 %2501
      %2503 = vrot.lane.b32.xlu0 %v2483, 47
      %v2504 = vpop.permute.xlu0 %2503
      %2505 = vrot.lane.b32.xlu0 %v2492, 47
      %v2506 = vpop.permute.xlu0 %2505
      %v2507 = vsel %vm997, %v2494, %v2496
      %v2508 = vsel %vm997, %v2496, %v2498
      %v2509 = vsel %vm997, %v2498, %v2500
      %v2510 = vsel %vm997, %v2500, %v2502
      %v2511 = vsel %vm997, %v2502, %v2504
      %v2512 = vsel %vm997, %v2504, %v2506
      %2519 = vst [vmem:[#allocation3 + $0xc0] sm:$0xf0] %v2507
      %2520 = vst [vmem:[#allocation3 + $0xc8] sm:$0xf0] %v2508
      %2521 = vst [vmem:[#allocation3 + $0xd0] sm:$0xf0] %v2509
      %2522 = vst [vmem:[#allocation3 + $0xd8] sm:$0xf0] %v2510
      %2523 = vst [vmem:[#allocation3 + $0xe0] sm:$0xf0] %v2511
      %2524 = vst [vmem:[#allocation3 + $0xe8] sm:$0xf0] %v2512
      %v2525 = vld [vmem:[#allocation5] sm:$0xff]
      %v2526 = vld [vmem:[#allocation5 + $0x8] sm:$0xff]
      %v2527 = vld [vmem:[#allocation5 + $0x10] sm:$0xff]
      %v2528 = vld [vmem:[#allocation5 + $0x18] sm:$0xf]
      %v2533 = vcombine.high %v2525, %v2525
      %v2534 = vcombine.high %v2526, %v2526
      %v2535 = vcombine.high %v2527, %v2527
      %2536 = vrot.lane.b32.xlu0 %v2525, 46
      %v2537 = vpop.permute.xlu0 %2536
      %2538 = vrot.lane.b32.xlu0 %v2533, 46
      %v2539 = vpop.permute.xlu0 %2538
      %2540 = vrot.lane.b32.xlu0 %v2526, 46
      %v2541 = vpop.permute.xlu0 %2540
      %2542 = vrot.lane.b32.xlu0 %v2534, 46
      %v2543 = vpop.permute.xlu0 %2542
      %2544 = vrot.lane.b32.xlu0 %v2527, 46
      %v2545 = vpop.permute.xlu0 %2544
      %2546 = vrot.lane.b32.xlu0 %v2535, 46
      %v2547 = vpop.permute.xlu0 %2546
      %2548 = vrot.lane.b32.xlu0 %v2528, 46
      %v2549 = vpop.permute.xlu0 %2548
      %v2550 = vsel %vm1182, %v2537, %v2539
      %v2551 = vsel %vm1182, %v2539, %v2541
      %v2552 = vsel %vm1182, %v2541, %v2543
      %v2553 = vsel %vm1182, %v2543, %v2545
      %v2554 = vsel %vm1182, %v2545, %v2547
      %v2555 = vsel %vm1182, %v2547, %v2549
      %2562 = vst [vmem:[#allocation3 + $0xf0] sm:$0xf] %v2550
      %2563 = vst [vmem:[#allocation3 + $0xf8] sm:$0xf] %v2551
      %2564 = vst [vmem:[#allocation3 + $0x100] sm:$0xf] %v2552
      %2565 = vst [vmem:[#allocation3 + $0x108] sm:$0xf] %v2553
      %2566 = vst [vmem:[#allocation3 + $0x110] sm:$0xf] %v2554
      %2567 = vst [vmem:[#allocation3 + $0x118] sm:$0xf] %v2555
      %v2568 = vld [vmem:[#allocation5] sm:$0xff]
      %v2569 = vld [vmem:[#allocation5 + $0x8] sm:$0xff]
      %v2570 = vld [vmem:[#allocation5 + $0x10] sm:$0xff]
      %v2571 = vld [vmem:[#allocation5 + $0x18] sm:$0xf]
      %v2576 = vcombine.low %v2568, %v2568
      %v2577 = vcombine.low %v2569, %v2569
      %v2578 = vcombine.low %v2570, %v2570
      %v2579 = vcombine.low %v2571, %v2571
      %2580 = vrot.lane.b32.xlu0 %v2576, 45
      %v2581 = vpop.permute.xlu0 %2580
      %2582 = vrot.lane.b32.xlu0 %v2568, 45
      %v2583 = vpop.permute.xlu0 %2582
      %2584 = vrot.lane.b32.xlu0 %v2577, 45
      %v2585 = vpop.permute.xlu0 %2584
      %2586 = vrot.lane.b32.xlu0 %v2569, 45
      %v2587 = vpop.permute.xlu0 %2586
      %2588 = vrot.lane.b32.xlu0 %v2578, 45
      %v2589 = vpop.permute.xlu0 %2588
      %2590 = vrot.lane.b32.xlu0 %v2570, 45
      %v2591 = vpop.permute.xlu0 %2590
      %2592 = vrot.lane.b32.xlu0 %v2579, 45
      %v2593 = vpop.permute.xlu0 %2592
      %vm2594 = vcmask 367616
      %v2595 = vsel %vm2594, %v2581, %v2583
      %v2596 = vsel %vm2594, %v2583, %v2585
      %v2597 = vsel %vm2594, %v2585, %v2587
      %v2598 = vsel %vm2594, %v2587, %v2589
      %v2599 = vsel %vm2594, %v2589, %v2591
      %v2600 = vsel %vm2594, %v2591, %v2593
      %2607 = vst [vmem:[#allocation3 + $0xf0] sm:$0xf0] %v2595
      %2608 = vst [vmem:[#allocation3 + $0xf8] sm:$0xf0] %v2596
      %2609 = vst [vmem:[#allocation3 + $0x100] sm:$0xf0] %v2597
      %2610 = vst [vmem:[#allocation3 + $0x108] sm:$0xf0] %v2598
      %2611 = vst [vmem:[#allocation3 + $0x110] sm:$0xf0] %v2599
      %2612 = vst [vmem:[#allocation3 + $0x118] sm:$0xf0] %v2600
      %v2613 = vld [vmem:[#allocation5] sm:$0xff]
      %v2614 = vld [vmem:[#allocation5 + $0x8] sm:$0xff]
      %v2615 = vld [vmem:[#allocation5 + $0x10] sm:$0xff]
      %v2616 = vld [vmem:[#allocation5 + $0x18] sm:$0xf]
      %v2621 = vcombine.high %v2613, %v2613
      %v2622 = vcombine.high %v2614, %v2614
      %v2623 = vcombine.high %v2615, %v2615
      %2624 = vrot.lane.b32.xlu0 %v2613, 38
      %v2625 = vpop.permute.xlu0 %2624
      %2626 = vrot.lane.b32.xlu0 %v2621, 38
      %v2627 = vpop.permute.xlu0 %2626
      %2628 = vrot.lane.b32.xlu0 %v2614, 38
      %v2629 = vpop.permute.xlu0 %2628
      %2630 = vrot.lane.b32.xlu0 %v2622, 38
      %v2631 = vpop.permute.xlu0 %2630
      %2632 = vrot.lane.b32.xlu0 %v2615, 38
      %v2633 = vpop.permute.xlu0 %2632
      %2634 = vrot.lane.b32.xlu0 %v2623, 38
      %v2635 = vpop.permute.xlu0 %2634
      %2636 = vrot.lane.b32.xlu0 %v2616, 38
      %v2637 = vpop.permute.xlu0 %2636
      %v2638 = vsel %vm1367, %v2625, %v2627
      %v2639 = vsel %vm1367, %v2627, %v2629
      %v2640 = vsel %vm1367, %v2629, %v2631
      %v2641 = vsel %vm1367, %v2631, %v2633
      %v2642 = vsel %vm1367, %v2633, %v2635
      %v2643 = vsel %vm1367, %v2635, %v2637
      %2650 = vst [vmem:[#allocation3 + $0x120] sm:$0xf] %v2638
      %2651 = vst [vmem:[#allocation3 + $0x128] sm:$0xf] %v2639
      %2652 = vst [vmem:[#allocation3 + $0x130] sm:$0xf] %v2640
      %2653 = vst [vmem:[#allocation3 + $0x138] sm:$0xf] %v2641
      %2654 = vst [vmem:[#allocation3 + $0x140] sm:$0xf] %v2642
      %2655 = vst [vmem:[#allocation3 + $0x148] sm:$0xf] %v2643
      %v2656 = vld [vmem:[#allocation5] sm:$0xff]
      %v2657 = vld [vmem:[#allocation5 + $0x8] sm:$0xff]
      %v2658 = vld [vmem:[#allocation5 + $0x10] sm:$0xff]
      %v2659 = vld [vmem:[#allocation5 + $0x18] sm:$0xf]
      %v2664 = vcombine.low %v2656, %v2656
      %v2665 = vcombine.low %v2657, %v2657
      %v2666 = vcombine.low %v2658, %v2658
      %v2667 = vcombine.low %v2659, %v2659
      %2668 = vrot.lane.b32.xlu0 %v2664, 37
      %v2669 = vpop.permute.xlu0 %2668
      %2670 = vrot.lane.b32.xlu0 %v2656, 37
      %v2671 = vpop.permute.xlu0 %2670
      %2672 = vrot.lane.b32.xlu0 %v2665, 37
      %v2673 = vpop.permute.xlu0 %2672
      %2674 = vrot.lane.b32.xlu0 %v2657, 37
      %v2675 = vpop.permute.xlu0 %2674
      %2676 = vrot.lane.b32.xlu0 %v2666, 37
      %v2677 = vpop.permute.xlu0 %2676
      %2678 = vrot.lane.b32.xlu0 %v2658, 37
      %v2679 = vpop.permute.xlu0 %2678
      %2680 = vrot.lane.b32.xlu0 %v2667, 37
      %v2681 = vpop.permute.xlu0 %2680
      %v2682 = vsel %vm1552, %v2669, %v2671
      %v2683 = vsel %vm1552, %v2671, %v2673
      %v2684 = vsel %vm1552, %v2673, %v2675
      %v2685 = vsel %vm1552, %v2675, %v2677
      %v2686 = vsel %vm1552, %v2677, %v2679
      %v2687 = vsel %vm1552, %v2679, %v2681
      %2694 = vst [vmem:[#allocation3 + $0x120] sm:$0xf0] %v2682
      %2695 = vst [vmem:[#allocation3 + $0x128] sm:$0xf0] %v2683
      %2696 = vst [vmem:[#allocation3 + $0x130] sm:$0xf0] %v2684
      %2697 = vst [vmem:[#allocation3 + $0x138] sm:$0xf0] %v2685
      %2698 = vst [vmem:[#allocation3 + $0x140] sm:$0xf0] %v2686
      %2699 = vst [vmem:[#allocation3 + $0x148] sm:$0xf0] %v2687
      %v2700 = vld [vmem:[#allocation5] sm:$0xff]
      %v2701 = vld [vmem:[#allocation5 + $0x8] sm:$0xff]
      %v2702 = vld [vmem:[#allocation5 + $0x10] sm:$0xff]
      %v2703 = vld [vmem:[#allocation5 + $0x18] sm:$0xf]
      %v2708 = vcombine.high %v2700, %v2700
      %v2709 = vcombine.high %v2701, %v2701
      %v2710 = vcombine.high %v2702, %v2702
      %2711 = vrot.lane.b32.xlu0 %v2700, 36
      %v2712 = vpop.permute.xlu0 %2711
      %2713 = vrot.lane.b32.xlu0 %v2708, 36
      %v2714 = vpop.permute.xlu0 %2713
      %2715 = vrot.lane.b32.xlu0 %v2701, 36
      %v2716 = vpop.permute.xlu0 %2715
      %2717 = vrot.lane.b32.xlu0 %v2709, 36
      %v2718 = vpop.permute.xlu0 %2717
      %2719 = vrot.lane.b32.xlu0 %v2702, 36
      %v2720 = vpop.permute.xlu0 %2719
      %2721 = vrot.lane.b32.xlu0 %v2710, 36
      %v2722 = vpop.permute.xlu0 %2721
      %2723 = vrot.lane.b32.xlu0 %v2703, 36
      %v2724 = vpop.permute.xlu0 %2723
      %vm2725 = vcmask 293888
      %v2726 = vsel %vm2725, %v2712, %v2714
      %v2727 = vsel %vm2725, %v2714, %v2716
      %v2728 = vsel %vm2725, %v2716, %v2718
      %v2729 = vsel %vm2725, %v2718, %v2720
      %v2730 = vsel %vm2725, %v2720, %v2722
      %v2731 = vsel %vm2725, %v2722, %v2724
      %2738 = vst [vmem:[#allocation3 + $0x150] sm:$0xf] %v2726
      %2739 = vst [vmem:[#allocation3 + $0x158] sm:$0xf] %v2727
      %2740 = vst [vmem:[#allocation3 + $0x160] sm:$0xf] %v2728
      %2741 = vst [vmem:[#allocation3 + $0x168] sm:$0xf] %v2729
      %2742 = vst [vmem:[#allocation3 + $0x170] sm:$0xf] %v2730
      %2743 = vst [vmem:[#allocation3 + $0x178] sm:$0xf] %v2731
      %v2744 = vld [vmem:[#allocation5] sm:$0xff]
      %v2745 = vld [vmem:[#allocation5 + $0x8] sm:$0xff]
      %v2746 = vld [vmem:[#allocation5 + $0x10] sm:$0xff]
      %v2747 = vld [vmem:[#allocation5 + $0x18] sm:$0xf]
      %v2752 = vcombine.low %v2744, %v2744
      %v2753 = vcombine.low %v2745, %v2745
      %v2754 = vcombine.low %v2746, %v2746
      %v2755 = vcombine.low %v2747, %v2747
      %2756 = vrot.lane.b32.xlu0 %v2752, 29
      %v2757 = vpop.permute.xlu0 %2756
      %2758 = vrot.lane.b32.xlu0 %v2744, 29
      %v2759 = vpop.permute.xlu0 %2758
      %2760 = vrot.lane.b32.xlu0 %v2753, 29
      %v2761 = vpop.permute.xlu0 %2760
      %2762 = vrot.lane.b32.xlu0 %v2745, 29
      %v2763 = vpop.permute.xlu0 %2762
      %2764 = vrot.lane.b32.xlu0 %v2754, 29
      %v2765 = vpop.permute.xlu0 %2764
      %2766 = vrot.lane.b32.xlu0 %v2746, 29
      %v2767 = vpop.permute.xlu0 %2766
      %2768 = vrot.lane.b32.xlu0 %v2755, 29
      %v2769 = vpop.permute.xlu0 %2768
      %vm2770 = vcmask 236544
      %v2771 = vsel %vm2770, %v2757, %v2759
      %v2772 = vsel %vm2770, %v2759, %v2761
      %v2773 = vsel %vm2770, %v2761, %v2763
      %v2774 = vsel %vm2770, %v2763, %v2765
      %v2775 = vsel %vm2770, %v2765, %v2767
      %v2776 = vsel %vm2770, %v2767, %v2769
      %2783 = vst [vmem:[#allocation3 + $0x150] sm:$0xf0] %v2771
      %2784 = vst [vmem:[#allocation3 + $0x158] sm:$0xf0] %v2772
      %2785 = vst [vmem:[#allocation3 + $0x160] sm:$0xf0] %v2773
      %2786 = vst [vmem:[#allocation3 + $0x168] sm:$0xf0] %v2774
      %2787 = vst [vmem:[#allocation3 + $0x170] sm:$0xf0] %v2775
      %2788 = vst [vmem:[#allocation3 + $0x178] sm:$0xf0] %v2776
      %v2789 = vld [vmem:[#allocation5] sm:$0xff]
      %v2790 = vld [vmem:[#allocation5 + $0x8] sm:$0xff]
      %v2791 = vld [vmem:[#allocation5 + $0x10] sm:$0xff]
      %v2792 = vld [vmem:[#allocation5 + $0x18] sm:$0xf]
      %v2797 = vcombine.high %v2789, %v2789
      %v2798 = vcombine.high %v2790, %v2790
      %v2799 = vcombine.high %v2791, %v2791
      %2800 = vrot.lane.b32.xlu0 %v2789, 28
      %v2801 = vpop.permute.xlu0 %2800
      %2802 = vrot.lane.b32.xlu0 %v2797, 28
      %v2803 = vpop.permute.xlu0 %2802
      %2804 = vrot.lane.b32.xlu0 %v2790, 28
      %v2805 = vpop.permute.xlu0 %2804
      %2806 = vrot.lane.b32.xlu0 %v2798, 28
      %v2807 = vpop.permute.xlu0 %2806
      %2808 = vrot.lane.b32.xlu0 %v2791, 28
      %v2809 = vpop.permute.xlu0 %2808
      %2810 = vrot.lane.b32.xlu0 %v2799, 28
      %v2811 = vpop.permute.xlu0 %2810
      %2812 = vrot.lane.b32.xlu0 %v2792, 28
      %v2813 = vpop.permute.xlu0 %2812
      %vm2814 = vcmask 228352
      %v2815 = vsel %vm2814, %v2801, %v2803
      %v2816 = vsel %vm2814, %v2803, %v2805
      %v2817 = vsel %vm2814, %v2805, %v2807
      %v2818 = vsel %vm2814, %v2807, %v2809
      %v2819 = vsel %vm2814, %v2809, %v2811
      %v2820 = vsel %vm2814, %v2811, %v2813
      %2827 = vst [vmem:[#allocation3 + $0x180] sm:$0xf] %v2815
      %2828 = vst [vmem:[#allocation3 + $0x188] sm:$0xf] %v2816
      %2829 = vst [vmem:[#allocation3 + $0x190] sm:$0xf] %v2817
      %2830 = vst [vmem:[#allocation3 + $0x198] sm:$0xf] %v2818
      %2831 = vst [vmem:[#allocation3 + $0x1a0] sm:$0xf] %v2819
      %2832 = vst [vmem:[#allocation3 + $0x1a8] sm:$0xf] %v2820
      %v2833 = vld [vmem:[#allocation5] sm:$0xff]
      %v2834 = vld [vmem:[#allocation5 + $0x8] sm:$0xff]
      %v2835 = vld [vmem:[#allocation5 + $0x10] sm:$0xff]
      %v2836 = vld [vmem:[#allocation5 + $0x18] sm:$0xf]
      %v2841 = vcombine.low %v2833, %v2833
      %v2842 = vcombine.low %v2834, %v2834
      %v2843 = vcombine.low %v2835, %v2835
      %v2844 = vcombine.low %v2836, %v2836
      %2845 = vrot.lane.b32.xlu0 %v2841, 27
      %v2846 = vpop.permute.xlu0 %2845
      %2847 = vrot.lane.b32.xlu0 %v2833, 27
      %v2848 = vpop.permute.xlu0 %2847
      %2849 = vrot.lane.b32.xlu0 %v2842, 27
      %v2850 = vpop.permute.xlu0 %2849
      %2851 = vrot.lane.b32.xlu0 %v2834, 27
      %v2852 = vpop.permute.xlu0 %2851
      %2853 = vrot.lane.b32.xlu0 %v2843, 27
      %v2854 = vpop.permute.xlu0 %2853
      %2855 = vrot.lane.b32.xlu0 %v2835, 27
      %v2856 = vpop.permute.xlu0 %2855
      %2857 = vrot.lane.b32.xlu0 %v2844, 27
      %v2858 = vpop.permute.xlu0 %2857
      %vm2859 = vcmask 220160
      %v2860 = vsel %vm2859, %v2846, %v2848
      %v2861 = vsel %vm2859, %v2848, %v2850
      %v2862 = vsel %vm2859, %v2850, %v2852
      %v2863 = vsel %vm2859, %v2852, %v2854
      %v2864 = vsel %vm2859, %v2854, %v2856
      %v2865 = vsel %vm2859, %v2856, %v2858
      %2872 = vst [vmem:[#allocation3 + $0x180] sm:$0xf0] %v2860
      %2873 = vst [vmem:[#allocation3 + $0x188] sm:$0xf0] %v2861
      %2874 = vst [vmem:[#allocation3 + $0x190] sm:$0xf0] %v2862
      %2875 = vst [vmem:[#allocation3 + $0x198] sm:$0xf0] %v2863
      %2876 = vst [vmem:[#allocation3 + $0x1a0] sm:$0xf0] %v2864
      %2877 = vst [vmem:[#allocation3 + $0x1a8] sm:$0xf0] %v2865
      %v2878 = vld [vmem:[#allocation5 + $0x4] sm:$0xff]
      %v2879 = vld [vmem:[#allocation5 + $0xc] sm:$0xff]
      %v2880 = vld [vmem:[#allocation5 + $0x14] sm:$0xff]
      %v2881 = vld [vmem:[#allocation5 + $0x1c] sm:$0xf]
      %v2886 = vcombine.high %v2878, %v2878
      %v2887 = vcombine.high %v2879, %v2879
      %v2888 = vcombine.high %v2880, %v2880
      %2889 = vrot.lane.b32.xlu0 %v2878, 94
      %v2890 = vpop.permute.xlu0 %2889
      %2891 = vrot.lane.b32.xlu0 %v2886, 94
      %v2892 = vpop.permute.xlu0 %2891
      %2893 = vrot.lane.b32.xlu0 %v2879, 94
      %v2894 = vpop.permute.xlu0 %2893
      %2895 = vrot.lane.b32.xlu0 %v2887, 94
      %v2896 = vpop.permute.xlu0 %2895
      %2897 = vrot.lane.b32.xlu0 %v2880, 94
      %v2898 = vpop.permute.xlu0 %2897
      %2899 = vrot.lane.b32.xlu0 %v2888, 94
      %v2900 = vpop.permute.xlu0 %2899
      %2901 = vrot.lane.b32.xlu0 %v2881, 94
      %v2902 = vpop.permute.xlu0 %2901
      %vm2903 = vcmask 769024
      %v2904 = vsel %vm2903, %v2890, %v2892
      %v2905 = vsel %vm2903, %v2892, %v2894
      %v2906 = vsel %vm2903, %v2894, %v2896
      %v2907 = vsel %vm2903, %v2896, %v2898
      %v2908 = vsel %vm2903, %v2898, %v2900
      %v2909 = vsel %vm2903, %v2900, %v2902
      %2916 = vst [vmem:[#allocation3 + $0x1b0] sm:$0xf] %v2904
      %2917 = vst [vmem:[#allocation3 + $0x1b8] sm:$0xf] %v2905
      %2918 = vst [vmem:[#allocation3 + $0x1c0] sm:$0xf] %v2906
      %2919 = vst [vmem:[#allocation3 + $0x1c8] sm:$0xf] %v2907
      %2920 = vst [vmem:[#allocation3 + $0x1d0] sm:$0xf] %v2908
      %2921 = vst [vmem:[#allocation3 + $0x1d8] sm:$0xf] %v2909
      %v2922 = vld [vmem:[#allocation5 + $0x4] sm:$0xff]
      %v2923 = vld [vmem:[#allocation5 + $0xc] sm:$0xff]
      %v2924 = vld [vmem:[#allocation5 + $0x14] sm:$0xff]
      %v2925 = vld [vmem:[#allocation5 + $0x1c] sm:$0xf]
      %v2930 = vcombine.low %v2922, %v2922
      %v2931 = vcombine.low %v2923, %v2923
      %v2932 = vcombine.low %v2924, %v2924
      %v2933 = vcombine.low %v2925, %v2925
      %2934 = vrot.lane.b32.xlu0 %v2930, 93
      %v2935 = vpop.permute.xlu0 %2934
      %2936 = vrot.lane.b32.xlu0 %v2922, 93
      %v2937 = vpop.permute.xlu0 %2936
      %2938 = vrot.lane.b32.xlu0 %v2931, 93
      %v2939 = vpop.permute.xlu0 %2938
      %2940 = vrot.lane.b32.xlu0 %v2923, 93
      %v2941 = vpop.permute.xlu0 %2940
      %2942 = vrot.lane.b32.xlu0 %v2932, 93
      %v2943 = vpop.permute.xlu0 %2942
      %2944 = vrot.lane.b32.xlu0 %v2924, 93
      %v2945 = vpop.permute.xlu0 %2944
      %2946 = vrot.lane.b32.xlu0 %v2933, 93
      %v2947 = vpop.permute.xlu0 %2946
      %vm2948 = vcmask 760832
      %v2949 = vsel %vm2948, %v2935, %v2937
      %v2950 = vsel %vm2948, %v2937, %v2939
      %v2951 = vsel %vm2948, %v2939, %v2941
      %v2952 = vsel %vm2948, %v2941, %v2943
      %v2953 = vsel %vm2948, %v2943, %v2945
      %v2954 = vsel %vm2948, %v2945, %v2947
      %2961 = vst [vmem:[#allocation3 + $0x1b0] sm:$0xf0] %v2949
      %2962 = vst [vmem:[#allocation3 + $0x1b8] sm:$0xf0] %v2950
      %2963 = vst [vmem:[#allocation3 + $0x1c0] sm:$0xf0] %v2951
      %2964 = vst [vmem:[#allocation3 + $0x1c8] sm:$0xf0] %v2952
      %2965 = vst [vmem:[#allocation3 + $0x1d0] sm:$0xf0] %v2953
      %2966 = vst [vmem:[#allocation3 + $0x1d8] sm:$0xf0] %v2954
      %v2967 = vld [vmem:[#allocation5 + $0x4] sm:$0xff]
      %v2968 = vld [vmem:[#allocation5 + $0xc] sm:$0xff]
      %v2969 = vld [vmem:[#allocation5 + $0x14] sm:$0xff]
      %v2970 = vld [vmem:[#allocation5 + $0x1c] sm:$0xf]
      %v2975 = vcombine.high %v2967, %v2967
      %v2976 = vcombine.high %v2968, %v2968
      %v2977 = vcombine.high %v2969, %v2969
      %2978 = vrot.lane.b32.xlu0 %v2967, 92
      %v2979 = vpop.permute.xlu0 %2978
      %2980 = vrot.lane.b32.xlu0 %v2975, 92
      %v2981 = vpop.permute.xlu0 %2980
      %2982 = vrot.lane.b32.xlu0 %v2968, 92
      %v2983 = vpop.permute.xlu0 %2982
      %2984 = vrot.lane.b32.xlu0 %v2976, 92
      %v2985 = vpop.permute.xlu0 %2984
      %2986 = vrot.lane.b32.xlu0 %v2969, 92
      %v2987 = vpop.permute.xlu0 %2986
      %2988 = vrot.lane.b32.xlu0 %v2977, 92
      %v2989 = vpop.permute.xlu0 %2988
      %2990 = vrot.lane.b32.xlu0 %v2970, 92
      %v2991 = vpop.permute.xlu0 %2990
      %vm2992 = vcmask 752640
      %v2993 = vsel %vm2992, %v2979, %v2981
      %v2994 = vsel %vm2992, %v2981, %v2983
      %v2995 = vsel %vm2992, %v2983, %v2985
      %v2996 = vsel %vm2992, %v2985, %v2987
      %v2997 = vsel %vm2992, %v2987, %v2989
      %v2998 = vsel %vm2992, %v2989, %v2991
      %3005 = vst [vmem:[#allocation3 + $0x1e0] sm:$0xf] %v2993
      %3006 = vst [vmem:[#allocation3 + $0x1e8] sm:$0xf] %v2994
      %3007 = vst [vmem:[#allocation3 + $0x1f0] sm:$0xf] %v2995
      %3008 = vst [vmem:[#allocation3 + $0x1f8] sm:$0xf] %v2996
      %3009 = vst [vmem:[#allocation3 + $0x200] sm:$0xf] %v2997
      %3010 = vst [vmem:[#allocation3 + $0x208] sm:$0xf] %v2998
      %v3011 = vld [vmem:[#allocation5 + $0x4] sm:$0xff]
      %v3012 = vld [vmem:[#allocation5 + $0xc] sm:$0xff]
      %v3013 = vld [vmem:[#allocation5 + $0x14] sm:$0xff]
      %v3014 = vld [vmem:[#allocation5 + $0x1c] sm:$0xf]
      %v3019 = vcombine.low %v3011, %v3011
      %v3020 = vcombine.low %v3012, %v3012
      %v3021 = vcombine.low %v3013, %v3013
      %v3022 = vcombine.low %v3014, %v3014
      %3023 = vrot.lane.b32.xlu0 %v3019, 85
      %v3024 = vpop.permute.xlu0 %3023
      %3025 = vrot.lane.b32.xlu0 %v3011, 85
      %v3026 = vpop.permute.xlu0 %3025
      %3027 = vrot.lane.b32.xlu0 %v3020, 85
      %v3028 = vpop.permute.xlu0 %3027
      %3029 = vrot.lane.b32.xlu0 %v3012, 85
      %v3030 = vpop.permute.xlu0 %3029
      %3031 = vrot.lane.b32.xlu0 %v3021, 85
      %v3032 = vpop.permute.xlu0 %3031
      %3033 = vrot.lane.b32.xlu0 %v3013, 85
      %v3034 = vpop.permute.xlu0 %3033
      %3035 = vrot.lane.b32.xlu0 %v3022, 85
      %v3036 = vpop.permute.xlu0 %3035
      %vm3037 = vcmask 695296
      %v3038 = vsel %vm3037, %v3024, %v3026
      %v3039 = vsel %vm3037, %v3026, %v3028
      %v3040 = vsel %vm3037, %v3028, %v3030
      %v3041 = vsel %vm3037, %v3030, %v3032
      %v3042 = vsel %vm3037, %v3032, %v3034
      %v3043 = vsel %vm3037, %v3034, %v3036
      %3050 = vst [vmem:[#allocation3 + $0x1e0] sm:$0xf0] %v3038
      %3051 = vst [vmem:[#allocation3 + $0x1e8] sm:$0xf0] %v3039
      %3052 = vst [vmem:[#allocation3 + $0x1f0] sm:$0xf0] %v3040
      %3053 = vst [vmem:[#allocation3 + $0x1f8] sm:$0xf0] %v3041
      %3054 = vst [vmem:[#allocation3 + $0x200] sm:$0xf0] %v3042
      %3055 = vst [vmem:[#allocation3 + $0x208] sm:$0xf0] %v3043
      %v3056 = vld [vmem:[#allocation5 + $0x4] sm:$0xff]
      %v3057 = vld [vmem:[#allocation5 + $0xc] sm:$0xff]
      %v3058 = vld [vmem:[#allocation5 + $0x14] sm:$0xff]
      %v3059 = vld [vmem:[#allocation5 + $0x1c] sm:$0xf]
      %v3064 = vcombine.high %v3056, %v3056
      %v3065 = vcombine.high %v3057, %v3057
      %v3066 = vcombine.high %v3058, %v3058
      %3067 = vrot.lane.b32.xlu0 %v3056, 84
      %v3068 = vpop.permute.xlu0 %3067
      %3069 = vrot.lane.b32.xlu0 %v3064, 84
      %v3070 = vpop.permute.xlu0 %3069
      %3071 = vrot.lane.b32.xlu0 %v3057, 84
      %v3072 = vpop.permute.xlu0 %3071
      %3073 = vrot.lane.b32.xlu0 %v3065, 84
      %v3074 = vpop.permute.xlu0 %3073
      %3075 = vrot.lane.b32.xlu0 %v3058, 84
      %v3076 = vpop.permute.xlu0 %3075
      %3077 = vrot.lane.b32.xlu0 %v3066, 84
      %v3078 = vpop.permute.xlu0 %3077
      %3079 = vrot.lane.b32.xlu0 %v3059, 84
      %v3080 = vpop.permute.xlu0 %3079
      %vm3081 = vcmask 687104
      %v3082 = vsel %vm3081, %v3068, %v3070
      %v3083 = vsel %vm3081, %v3070, %v3072
      %v3084 = vsel %vm3081, %v3072, %v3074
      %v3085 = vsel %vm3081, %v3074, %v3076
      %v3086 = vsel %vm3081, %v3076, %v3078
      %v3087 = vsel %vm3081, %v3078, %v3080
      %3094 = vst [vmem:[#allocation3 + $0x210] sm:$0xf] %v3082
      %3095 = vst [vmem:[#allocation3 + $0x218] sm:$0xf] %v3083
      %3096 = vst [vmem:[#allocation3 + $0x220] sm:$0xf] %v3084
      %3097 = vst [vmem:[#allocation3 + $0x228] sm:$0xf] %v3085
      %3098 = vst [vmem:[#allocation3 + $0x230] sm:$0xf] %v3086
      %3099 = vst [vmem:[#allocation3 + $0x238] sm:$0xf] %v3087
      %v3100 = vld [vmem:[#allocation5 + $0x4] sm:$0xff]
      %v3101 = vld [vmem:[#allocation5 + $0xc] sm:$0xff]
      %v3102 = vld [vmem:[#allocation5 + $0x14] sm:$0xff]
      %v3103 = vld [vmem:[#allocation5 + $0x1c] sm:$0xf]
      %v3108 = vcombine.low %v3100, %v3100
      %v3109 = vcombine.low %v3101, %v3101
      %v3110 = vcombine.low %v3102, %v3102
      %v3111 = vcombine.low %v3103, %v3103
      %3112 = vrot.lane.b32.xlu0 %v3108, 83
      %v3113 = vpop.permute.xlu0 %3112
      %3114 = vrot.lane.b32.xlu0 %v3100, 83
      %v3115 = vpop.permute.xlu0 %3114
      %3116 = vrot.lane.b32.xlu0 %v3109, 83
      %v3117 = vpop.permute.xlu0 %3116
      %3118 = vrot.lane.b32.xlu0 %v3101, 83
      %v3119 = vpop.permute.xlu0 %3118
      %3120 = vrot.lane.b32.xlu0 %v3110, 83
      %v3121 = vpop.permute.xlu0 %3120
      %3122 = vrot.lane.b32.xlu0 %v3102, 83
      %v3123 = vpop.permute.xlu0 %3122
      %3124 = vrot.lane.b32.xlu0 %v3111, 83
      %v3125 = vpop.permute.xlu0 %3124
      %vm3126 = vcmask 678912
      %v3127 = vsel %vm3126, %v3113, %v3115
      %v3128 = vsel %vm3126, %v3115, %v3117
      %v3129 = vsel %vm3126, %v3117, %v3119
      %v3130 = vsel %vm3126, %v3119, %v3121
      %v3131 = vsel %vm3126, %v3121, %v3123
      %v3132 = vsel %vm3126, %v3123, %v3125
      %3139 = vst [vmem:[#allocation3 + $0x210] sm:$0xf0] %v3127
      %3140 = vst [vmem:[#allocation3 + $0x218] sm:$0xf0] %v3128
      %3141 = vst [vmem:[#allocation3 + $0x220] sm:$0xf0] %v3129
      %3142 = vst [vmem:[#allocation3 + $0x228] sm:$0xf0] %v3130
      %3143 = vst [vmem:[#allocation3 + $0x230] sm:$0xf0] %v3131
      %3144 = vst [vmem:[#allocation3 + $0x238] sm:$0xf0] %v3132
      %v3145 = vld [vmem:[#allocation5 + $0x4] sm:$0xff]
      %v3146 = vld [vmem:[#allocation5 + $0xc] sm:$0xff]
      %v3147 = vld [vmem:[#allocation5 + $0x14] sm:$0xff]
      %v3148 = vld [vmem:[#allocation5 + $0x1c] sm:$0xf]
      %v3153 = vcombine.high %v3145, %v3145
      %v3154 = vcombine.high %v3146, %v3146
      %v3155 = vcombine.high %v3147, %v3147
      %3156 = vrot.lane.b32.xlu0 %v3145, 76
      %v3157 = vpop.permute.xlu0 %3156
      %3158 = vrot.lane.b32.xlu0 %v3153, 76
      %v3159 = vpop.permute.xlu0 %3158
      %3160 = vrot.lane.b32.xlu0 %v3146, 76
      %v3161 = vpop.permute.xlu0 %3160
      %3162 = vrot.lane.b32.xlu0 %v3154, 76
      %v3163 = vpop.permute.xlu0 %3162
      %3164 = vrot.lane.b32.xlu0 %v3147, 76
      %v3165 = vpop.permute.xlu0 %3164
      %3166 = vrot.lane.b32.xlu0 %v3155, 76
      %v3167 = vpop.permute.xlu0 %3166
      %3168 = vrot.lane.b32.xlu0 %v3148, 76
      %v3169 = vpop.permute.xlu0 %3168
      %vm3170 = vcmask 621568
      %v3171 = vsel %vm3170, %v3157, %v3159
      %v3172 = vsel %vm3170, %v3159, %v3161
      %v3173 = vsel %vm3170, %v3161, %v3163
      %v3174 = vsel %vm3170, %v3163, %v3165
      %v3175 = vsel %vm3170, %v3165, %v3167
      %v3176 = vsel %vm3170, %v3167, %v3169
      %3183 = vst [vmem:[#allocation3 + $0x240] sm:$0xf] %v3171
      %3184 = vst [vmem:[#allocation3 + $0x248] sm:$0xf] %v3172
      %3185 = vst [vmem:[#allocation3 + $0x250] sm:$0xf] %v3173
      %3186 = vst [vmem:[#allocation3 + $0x258] sm:$0xf] %v3174
      %3187 = vst [vmem:[#allocation3 + $0x260] sm:$0xf] %v3175
      %3188 = vst [vmem:[#allocation3 + $0x268] sm:$0xf] %v3176
      %v3189 = vld [vmem:[#allocation5 + $0x4] sm:$0xff]
      %v3190 = vld [vmem:[#allocation5 + $0xc] sm:$0xff]
      %v3191 = vld [vmem:[#allocation5 + $0x14] sm:$0xff]
      %v3192 = vld [vmem:[#allocation5 + $0x1c] sm:$0xf]
      %v3197 = vcombine.low %v3189, %v3189
      %v3198 = vcombine.low %v3190, %v3190
      %v3199 = vcombine.low %v3191, %v3191
      %v3200 = vcombine.low %v3192, %v3192
      %3201 = vrot.lane.b32.xlu0 %v3197, 75
      %v3202 = vpop.permute.xlu0 %3201
      %3203 = vrot.lane.b32.xlu0 %v3189, 75
      %v3204 = vpop.permute.xlu0 %3203
      %3205 = vrot.lane.b32.xlu0 %v3198, 75
      %v3206 = vpop.permute.xlu0 %3205
      %3207 = vrot.lane.b32.xlu0 %v3190, 75
      %v3208 = vpop.permute.xlu0 %3207
      %3209 = vrot.lane.b32.xlu0 %v3199, 75
      %v3210 = vpop.permute.xlu0 %3209
      %3211 = vrot.lane.b32.xlu0 %v3191, 75
      %v3212 = vpop.permute.xlu0 %3211
      %3213 = vrot.lane.b32.xlu0 %v3200, 75
      %v3214 = vpop.permute.xlu0 %3213
      %vm3215 = vcmask 613376
      %v3216 = vsel %vm3215, %v3202, %v3204
      %v3217 = vsel %vm3215, %v3204, %v3206
      %v3218 = vsel %vm3215, %v3206, %v3208
      %v3219 = vsel %vm3215, %v3208, %v3210
      %v3220 = vsel %vm3215, %v3210, %v3212
      %v3221 = vsel %vm3215, %v3212, %v3214
      %3228 = vst [vmem:[#allocation3 + $0x240] sm:$0xf0] %v3216
      %3229 = vst [vmem:[#allocation3 + $0x248] sm:$0xf0] %v3217
      %3230 = vst [vmem:[#allocation3 + $0x250] sm:$0xf0] %v3218
      %3231 = vst [vmem:[#allocation3 + $0x258] sm:$0xf0] %v3219
      %3232 = vst [vmem:[#allocation3 + $0x260] sm:$0xf0] %v3220
      %3233 = vst [vmem:[#allocation3 + $0x268] sm:$0xf0] %v3221
      %v3234 = vld [vmem:[#allocation5 + $0x4] sm:$0xff]
      %v3235 = vld [vmem:[#allocation5 + $0xc] sm:$0xff]
      %v3236 = vld [vmem:[#allocation5 + $0x14] sm:$0xff]
      %v3237 = vld [vmem:[#allocation5 + $0x1c] sm:$0xf]
      %v3242 = vcombine.high %v3234, %v3234
      %v3243 = vcombine.high %v3235, %v3235
      %v3244 = vcombine.high %v3236, %v3236
      %3245 = vrot.lane.b32.xlu0 %v3234, 74
      %v3246 = vpop.permute.xlu0 %3245
      %3247 = vrot.lane.b32.xlu0 %v3242, 74
      %v3248 = vpop.permute.xlu0 %3247
      %3249 = vrot.lane.b32.xlu0 %v3235, 74
      %v3250 = vpop.permute.xlu0 %3249
      %3251 = vrot.lane.b32.xlu0 %v3243, 74
      %v3252 = vpop.permute.xlu0 %3251
      %3253 = vrot.lane.b32.xlu0 %v3236, 74
      %v3254 = vpop.permute.xlu0 %3253
      %3255 = vrot.lane.b32.xlu0 %v3244, 74
      %v3256 = vpop.permute.xlu0 %3255
      %3257 = vrot.lane.b32.xlu0 %v3237, 74
      %v3258 = vpop.permute.xlu0 %3257
      %vm3259 = vcmask 605184
      %v3260 = vsel %vm3259, %v3246, %v3248
      %v3261 = vsel %vm3259, %v3248, %v3250
      %v3262 = vsel %vm3259, %v3250, %v3252
      %v3263 = vsel %vm3259, %v3252, %v3254
      %v3264 = vsel %vm3259, %v3254, %v3256
      %v3265 = vsel %vm3259, %v3256, %v3258
      %3272 = vst [vmem:[#allocation3 + $0x270] sm:$0xf] %v3260
      %3273 = vst [vmem:[#allocation3 + $0x278] sm:$0xf] %v3261
      %3274 = vst [vmem:[#allocation3 + $0x280] sm:$0xf] %v3262
      %3275 = vst [vmem:[#allocation3 + $0x288] sm:$0xf] %v3263
      %3276 = vst [vmem:[#allocation3 + $0x290] sm:$0xf] %v3264
      %3277 = vst [vmem:[#allocation3 + $0x298] sm:$0xf] %v3265
      %v3278 = vld [vmem:[%s3] sm:$0xf]
      %v3279 = vld [vmem:[#allocation3] sm:$0xff]
      %v3280 = vld [vmem:[#allocation3 + $0x8] sm:$0xff]
      %v3281 = vld [vmem:[#allocation3 + $0x10] sm:$0xff]
      %v3282 = vld [vmem:[#allocation3 + $0x18] sm:$0xff]
      %v3283 = vld [vmem:[#allocation3 + $0x20] sm:$0xff]
      %v3284 = vld [vmem:[#allocation3 + $0x28] sm:$0xff]
      %v3285 = vld [vmem:[#allocation3 + $0x30] sm:$0xff]
      %v3286 = vld [vmem:[#allocation3 + $0x38] sm:$0xff]
      %v3287 = vld [vmem:[#allocation3 + $0x40] sm:$0xff]
      %v3288 = vld [vmem:[#allocation3 + $0x48] sm:$0xff]
      %v3289 = vld [vmem:[#allocation3 + $0x50] sm:$0xff]
      %v3290 = vld [vmem:[#allocation3 + $0x58] sm:$0xff]
      %v3291 = vld [vmem:[#allocation3 + $0x60] sm:$0xff]
      %v3292 = vld [vmem:[#allocation3 + $0x68] sm:$0xff]
      %v3293 = vld [vmem:[#allocation3 + $0x70] sm:$0xff]
      %v3294 = vld [vmem:[#allocation3 + $0x78] sm:$0xff]
      %v3295 = vld [vmem:[#allocation3 + $0x80] sm:$0xff]
      %v3296 = vld [vmem:[#allocation3 + $0x88] sm:$0xff]
      %v3297 = vld [vmem:[#allocation3 + $0x90] sm:$0xff]
      %v3298 = vld [vmem:[#allocation3 + $0x98] sm:$0xff]
      %v3299 = vld [vmem:[#allocation3 + $0xa0] sm:$0xff]
      %v3300 = vld [vmem:[#allocation3 + $0xa8] sm:$0xff]
      %v3301 = vld [vmem:[#allocation3 + $0xb0] sm:$0xff]
      %v3302 = vld [vmem:[#allocation3 + $0xb8] sm:$0xff]
      %v3303 = vld [vmem:[#allocation3 + $0xc0] sm:$0xff]
      %v3304 = vld [vmem:[#allocation3 + $0xc8] sm:$0xff]
      %v3305 = vld [vmem:[#allocation3 + $0xd0] sm:$0xff]
      %v3306 = vld [vmem:[#allocation3 + $0xd8] sm:$0xff]
      %v3307 = vld [vmem:[#allocation3 + $0xe0] sm:$0xff]
      %v3308 = vld [vmem:[#allocation3 + $0xe8] sm:$0xff]
      %v3309 = vld [vmem:[#allocation3 + $0xf0] sm:$0xff]
      %v3310 = vld [vmem:[#allocation3 + $0xf8] sm:$0xff]
      %v3311 = vld [vmem:[#allocation3 + $0x100] sm:$0xff]
      %v3312 = vld [vmem:[#allocation3 + $0x108] sm:$0xff]
      %v3313 = vld [vmem:[#allocation3 + $0x110] sm:$0xff]
      %v3314 = vld [vmem:[#allocation3 + $0x118] sm:$0xff]
      %v3315 = vld [vmem:[#allocation3 + $0x120] sm:$0xff]
      %v3316 = vld [vmem:[#allocation3 + $0x128] sm:$0xff]
      %v3317 = vld [vmem:[#allocation3 + $0x130] sm:$0xff]
      %v3318 = vld [vmem:[#allocation3 + $0x138] sm:$0xff]
      %v3319 = vld [vmem:[#allocation3 + $0x140] sm:$0xff]
      %v3320 = vld [vmem:[#allocation3 + $0x148] sm:$0xff]
      %v3321 = vld [vmem:[#allocation3 + $0x150] sm:$0xff]
      %v3322 = vld [vmem:[#allocation3 + $0x158] sm:$0xff]
      %v3323 = vld [vmem:[#allocation3 + $0x160] sm:$0xff]
      %v3324 = vld [vmem:[#allocation3 + $0x168] sm:$0xff]
      %v3325 = vld [vmem:[#allocation3 + $0x170] sm:$0xff]
      %v3326 = vld [vmem:[#allocation3 + $0x178] sm:$0xff]
      %v3327 = vld [vmem:[#allocation3 + $0x180] sm:$0xff]
      %v3328 = vld [vmem:[#allocation3 + $0x188] sm:$0xff]
      %v3329 = vld [vmem:[#allocation3 + $0x190] sm:$0xff]
      %v3330 = vld [vmem:[#allocation3 + $0x198] sm:$0xff]
      %v3331 = vld [vmem:[#allocation3 + $0x1a0] sm:$0xff]
      %v3332 = vld [vmem:[#allocation3 + $0x1a8] sm:$0xff]
      %v3333 = vld [vmem:[#allocation3 + $0x1b0] sm:$0xff]
      %v3334 = vld [vmem:[#allocation3 + $0x1b8] sm:$0xff]
      %v3335 = vld [vmem:[#allocation3 + $0x1c0] sm:$0xff]
      %v3336 = vld [vmem:[#allocation3 + $0x1c8] sm:$0xff]
      %v3337 = vld [vmem:[#allocation3 + $0x1d0] sm:$0xff]
      %v3338 = vld [vmem:[#allocation3 + $0x1d8] sm:$0xff]
      %v3339 = vld [vmem:[#allocation3 + $0x1e0] sm:$0xff]
      %v3340 = vld [vmem:[#allocation3 + $0x1e8] sm:$0xff]
      %v3341 = vld [vmem:[#allocation3 + $0x1f0] sm:$0xff]
      %v3342 = vld [vmem:[#allocation3 + $0x1f8] sm:$0xff]
      %v3343 = vld [vmem:[#allocation3 + $0x200] sm:$0xff]
      %v3344 = vld [vmem:[#allocation3 + $0x208] sm:$0xff]
      %v3345 = vld [vmem:[#allocation3 + $0x210] sm:$0xff]
      %v3346 = vld [vmem:[#allocation3 + $0x218] sm:$0xff]
      %v3347 = vld [vmem:[#allocation3 + $0x220] sm:$0xff]
      %v3348 = vld [vmem:[#allocation3 + $0x228] sm:$0xff]
      %v3349 = vld [vmem:[#allocation3 + $0x230] sm:$0xff]
      %v3350 = vld [vmem:[#allocation3 + $0x238] sm:$0xff]
      %v3351 = vld [vmem:[#allocation3 + $0x240] sm:$0xff]
      %v3352 = vld [vmem:[#allocation3 + $0x248] sm:$0xff]
      %v3353 = vld [vmem:[#allocation3 + $0x250] sm:$0xff]
      %v3354 = vld [vmem:[#allocation3 + $0x258] sm:$0xff]
      %v3355 = vld [vmem:[#allocation3 + $0x260] sm:$0xff]
      %v3356 = vld [vmem:[#allocation3 + $0x268] sm:$0xff]
      %v3357 = vld [vmem:[#allocation3 + $0x270] sm:$0xf]
      %v3358 = vld [vmem:[#allocation3 + $0x278] sm:$0xf]
      %v3359 = vld [vmem:[#allocation3 + $0x280] sm:$0xf]
      %v3360 = vld [vmem:[#allocation3 + $0x288] sm:$0xf]
      %v3361 = vld [vmem:[#allocation3 + $0x290] sm:$0xf]
      %v3362 = vld [vmem:[#allocation3 + $0x298] sm:$0xf]
      %v3363 = vpack.c.bf16 %v3285, %v3279
      %v3364 = vpack.c.bf16 %v3286, %v3280
      %v3365 = vpack.c.bf16 %v3287, %v3281
      %v3366 = vpack.c.bf16 %v3288, %v3282
      %v3367 = vpack.c.bf16 %v3289, %v3283
      %v3368 = vpack.c.bf16 %v3290, %v3284
      %v3369 = vpack.c.bf16 %v3297, %v3291
      %v3370 = vpack.c.bf16 %v3298, %v3292
      %v3371 = vpack.c.bf16 %v3299, %v3293
      %v3372 = vpack.c.bf16 %v3300, %v3294
      %v3373 = vpack.c.bf16 %v3301, %v3295
      %v3374 = vpack.c.bf16 %v3302, %v3296
      %v3375 = vpack.c.bf16 %v3309, %v3303
      %v3376 = vpack.c.bf16 %v3310, %v3304
      %v3377 = vpack.c.bf16 %v3311, %v3305
      %v3378 = vpack.c.bf16 %v3312, %v3306
      %v3379 = vpack.c.bf16 %v3313, %v3307
      %v3380 = vpack.c.bf16 %v3314, %v3308
      %v3381 = vpack.c.bf16 %v3321, %v3315
      %v3382 = vpack.c.bf16 %v3322, %v3316
      %v3383 = vpack.c.bf16 %v3323, %v3317
      %v3384 = vpack.c.bf16 %v3324, %v3318
      %v3385 = vpack.c.bf16 %v3325, %v3319
      %v3386 = vpack.c.bf16 %v3326, %v3320
      %v3387 = vpack.c.bf16 %v3333, %v3327
      %v3388 = vpack.c.bf16 %v3334, %v3328
      %v3389 = vpack.c.bf16 %v3335, %v3329
      %v3390 = vpack.c.bf16 %v3336, %v3330
      %v3391 = vpack.c.bf16 %v3337, %v3331
      %v3392 = vpack.c.bf16 %v3338, %v3332
      %v3393 = vpack.c.bf16 %v3345, %v3339
      %v3394 = vpack.c.bf16 %v3346, %v3340
      %v3395 = vpack.c.bf16 %v3347, %v3341
      %v3396 = vpack.c.bf16 %v3348, %v3342
      %v3397 = vpack.c.bf16 %v3349, %v3343
      %v3398 = vpack.c.bf16 %v3350, %v3344
      %v3399 = vpack.c.bf16 %v3357, %v3351
      %v3400 = vpack.c.bf16 %v3358, %v3352
      %v3401 = vpack.c.bf16 %v3359, %v3353
      %v3402 = vpack.c.bf16 %v3360, %v3354
      %v3403 = vpack.c.bf16 %v3361, %v3355
      %v3404 = vpack.c.bf16 %v3362, %v3356
      %v3406 = vsel %vm2462, %v3278, 0
      %vm3408 = vcmask 1045504
      %v3410 = vsel %vm3408, %v3399, 0
      %v3413 = vsel %vm3408, %v3400, 0
      %v3416 = vsel %vm3408, %v3401, 0
      %v3419 = vsel %vm3408, %v3402, 0
      %v3422 = vsel %vm3408, %v3403, 0
      %v3425 = vsel %vm3408, %v3404, 0
      %3427 = vmatprep.subr.bf16.mxu0 %v3364
      %3428 = vmatpush1.bf16.msra.mxu0 %v3363
      %3429 = vmatprep.subr.bf16.mxu0 %v3370
      %3430 = vmatpush1.bf16.msra.mxu0 %v3369
      %3431 = vmatprep.subr.bf16.mxu0 %v3376
      %3432 = vmatpush1.bf16.msra.mxu0 %v3375
      %3433 = vmatprep.subr.bf16.mxu0 %v3382
      %3434 = vmatpush1.bf16.msra.mxu0 %v3381
      %3435 = vmatprep.subr.bf16.mxu0 %v3388
      %3436 = vmatpush1.bf16.msra.mxu0 %v3387
      %3437 = vmatprep.subr.bf16.mxu0 %v3394
      %3438 = vmatpush1.bf16.msra.mxu0 %v3393
      %3439 = vmatprep.subr.bf16.mxu0 %v3413
      %3440 = vmatpush1.bf16.msra.mxu0 %v3410
      %3441 = vmatprep.subr.bf16.mxu0 0
      %3442 = vmatpush1.bf16.msra.mxu0 0
      %3443 = vmatprep.subr.bf16.mxu0 0
      %3444 = vmatpush1.bf16.msra.mxu0 0
      %3445 = vmatprep.subr.bf16.mxu0 0
      %3446 = vmatpush1.bf16.msra.mxu0 0
      %3447 = vmatprep.subr.bf16.mxu0 0
      %3448 = vmatpush1.bf16.msra.mxu0 0
      %3449 = vmatprep.subr.bf16.mxu0 0
      %3450 = vmatpush1.bf16.msra.mxu0 0
      %3451 = vmatprep.subr.bf16.mxu0 0
      %3452 = vmatpush1.bf16.msra.mxu0 0
      %3453 = vmatprep.subr.bf16.mxu0 0
      %3454 = vmatpush1.bf16.msra.mxu0 0
      %3455 = vmatprep.subr.bf16.mxu0 0
      %3456 = vmatpush1.bf16.msra.mxu0 0
      %3457 = vmatprep.subr.bf16.mxu0 0
      %3458 = vmatpush1.bf16.msra.mxu0 0
      %3459 = vmatprep.mubr.bf16.mxu0 0
      %3460 = vmatmul.mubr.bf16.gmra.mrb[0].mxu0 %v3406
      %v3461 = vpop.f32.mrb[0].mxu0
      %v3462 = vadd.f32 0.0, %v3461
      %v3463 = vpop.f32.mrb[0].mxu0
      %v3464 = vadd.f32 0.0, %v3463
      %v3465 = vpop.f32.mrb[0].mxu0
      %v3466 = vpop.f32.mrb[0].mxu0
      %3467 = vdwg.mxu0
      %3468 = vmatprep.subr.bf16.mxu0 %v3366
      %3469 = vmatpush1.bf16.msra.mxu0 %v3365
      %3470 = vmatprep.subr.bf16.mxu0 %v3372
      %3471 = vmatpush1.bf16.msra.mxu0 %v3371
      %3472 = vmatprep.subr.bf16.mxu0 %v3378
      %3473 = vmatpush1.bf16.msra.mxu0 %v3377
      %3474 = vmatprep.subr.bf16.mxu0 %v3384
      %3475 = vmatpush1.bf16.msra.mxu0 %v3383
      %3476 = vmatprep.subr.bf16.mxu0 %v3390
      %3477 = vmatpush1.bf16.msra.mxu0 %v3389
      %3478 = vmatprep.subr.bf16.mxu0 %v3396
      %3479 = vmatpush1.bf16.msra.mxu0 %v3395
      %3480 = vmatprep.subr.bf16.mxu0 %v3419
      %3481 = vmatpush1.bf16.msra.mxu0 %v3416
      %3482 = vmatprep.subr.bf16.mxu0 0
      %3483 = vmatpush1.bf16.msra.mxu0 0
      %3484 = vmatprep.subr.bf16.mxu0 0
      %3485 = vmatpush1.bf16.msra.mxu0 0
      %3486 = vmatprep.subr.bf16.mxu0 0
      %3487 = vmatpush1.bf16.msra.mxu0 0
      %3488 = vmatprep.subr.bf16.mxu0 0
      %3489 = vmatpush1.bf16.msra.mxu0 0
      %3490 = vmatprep.subr.bf16.mxu0 0
      %3491 = vmatpush1.bf16.msra.mxu0 0
      %3492 = vmatprep.subr.bf16.mxu0 0
      %3493 = vmatpush1.bf16.msra.mxu0 0
      %3494 = vmatprep.subr.bf16.mxu0 0
      %3495 = vmatpush1.bf16.msra.mxu0 0
      %3496 = vmatprep.subr.bf16.mxu0 0
      %3497 = vmatpush1.bf16.msra.mxu0 0
      %3498 = vmatprep.subr.bf16.mxu0 0
      %3499 = vmatpush1.bf16.msra.mxu0 0
      %3500 = vmatprep.mubr.bf16.mxu0 0
      %3501 = vmatmul.mubr.bf16.gmra.mrb[0].mxu0 %v3406
      %v3502 = vpop.f32.mrb[0].mxu0
      %v3503 = vadd.f32 0.0, %v3502
      %v3504 = vpop.f32.mrb[0].mxu0
      %v3505 = vadd.f32 0.0, %v3504
      %v3506 = vpop.f32.mrb[0].mxu0
      %v3507 = vpop.f32.mrb[0].mxu0
      %3508 = vdwg.mxu0
      %3509 = vmatprep.subr.bf16.mxu0 %v3368
      %3510 = vmatpush1.bf16.msra.mxu0 %v3367
      %3511 = vmatprep.subr.bf16.mxu0 %v3374
      %3512 = vmatpush1.bf16.msra.mxu0 %v3373
      %3513 = vmatprep.subr.bf16.mxu0 %v3380
      %3514 = vmatpush1.bf16.msra.mxu0 %v3379
      %3515 = vmatprep.subr.bf16.mxu0 %v3386
      %3516 = vmatpush1.bf16.msra.mxu0 %v3385
      %3517 = vmatprep.subr.bf16.mxu0 %v3392
      %3518 = vmatpush1.bf16.msra.mxu0 %v3391
      %3519 = vmatprep.subr.bf16.mxu0 %v3398
      %3520 = vmatpush1.bf16.msra.mxu0 %v3397
      %3521 = vmatprep.subr.bf16.mxu0 %v3425
      %3522 = vmatpush1.bf16.msra.mxu0 %v3422
      %3523 = vmatprep.subr.bf16.mxu0 0
      %3524 = vmatpush1.bf16.msra.mxu0 0
      %3525 = vmatprep.subr.bf16.mxu0 0
      %3526 = vmatpush1.bf16.msra.mxu0 0
      %3527 = vmatprep.subr.bf16.mxu0 0
      %3528 = vmatpush1.bf16.msra.mxu0 0
      %3529 = vmatprep.subr.bf16.mxu0 0
      %3530 = vmatpush1.bf16.msra.mxu0 0
      %3531 = vmatprep.subr.bf16.mxu0 0
      %3532 = vmatpush1.bf16.msra.mxu0 0
      %3533 = vmatprep.subr.bf16.mxu0 0
      %3534 = vmatpush1.bf16.msra.mxu0 0
      %3535 = vmatprep.subr.bf16.mxu0 0
      %3536 = vmatpush1.bf16.msra.mxu0 0
      %3537 = vmatprep.subr.bf16.mxu0 0
      %3538 = vmatpush1.bf16.msra.mxu0 0
      %3539 = vmatprep.subr.bf16.mxu0 0
      %3540 = vmatpush1.bf16.msra.mxu0 0
      %3541 = vmatprep.mubr.bf16.mxu0 0
      %3542 = vmatmul.mubr.bf16.gmra.mrb[0].mxu0 %v3406
      %v3543 = vpop.f32.mrb[0].mxu0
      %v3544 = vadd.f32 0.0, %v3543
      %v3545 = vpop.f32.mrb[0].mxu0
      %v3546 = vadd.f32 0.0, %v3545
      %v3547 = vpop.f32.mrb[0].mxu0
      %v3548 = vpop.f32.mrb[0].mxu0
      %3549 = vdwg.mxu0
      %v3551 = vlaneseq
      %v3552 = vshrl.u32 %v3551, 7
      %v3553 = vsub.s32 0, %v3552
      %v3554 = vrot.slane %v281, %v3553
      %v3555 = vlaneseq
      %v3556 = vshrl.u32 %v3555, 7
      %v3557 = vsub.s32 1, %v3556
      %v3558 = vrot.slane %v281, %v3557
      %v3559 = vlaneseq
      %v3560 = vshrl.u32 %v3559, 7
      %v3561 = vsub.s32 2, %v3560
      %v3562 = vrot.slane %v281, %v3561
      %v3563 = vlaneseq
      %v3564 = vshrl.u32 %v3563, 7
      %v3565 = vsub.s32 3, %v3564
      %v3566 = vrot.slane %v281, %v3565
      %v3567 = vlaneseq
      %v3568 = vshrl.u32 %v3567, 7
      %v3569 = vsub.s32 4, %v3568
      %v3570 = vrot.slane %v281, %v3569
      %v3571 = vlaneseq
      %v3572 = vshrl.u32 %v3571, 7
      %v3573 = vsub.s32 5, %v3572
      %v3574 = vrot.slane %v281, %v3573
      %v3581 = vmul.f32 %v3462, %v3554
      %v3582 = vmul.f32 %v3464, %v3558
      %v3583 = vmul.f32 %v3503, %v3562
      %v3584 = vmul.f32 %v3505, %v3566
      %v3585 = vmul.f32 %v3544, %v3570
      %v3586 = vmul.f32 %v3546, %v3574
      %v3587 = vadd.f32 %v3581, %v3582
      %v3588 = vadd.f32 %v3587, %v3583
      %v3589 = vadd.f32 %v3588, %v3584
      %v3590 = vadd.f32 %v3589, %v3585
      %v3591 = vadd.f32 %v3590, %v3586
      %3592 = vadd.xlane.f32.xlu0 %v3591
      %v3593 = vpop.xlane.xlu0 %3592
      %v3594 = vmul.f32 %v3593, 0.002915452
      %v3595 = vsub.f32 %v3462, %v3594
      %v3596 = vsub.f32 %v3464, %v3594
      %v3597 = vsub.f32 %v3503, %v3594
      %v3598 = vsub.f32 %v3505, %v3594
      %v3599 = vsub.f32 %v3544, %v3594
      %v3600 = vsub.f32 %v3546, %v3594
      %v3601 = vmul.f32 %v3595, %v3554
      %v3602 = vmul.f32 %v3596, %v3558
      %v3603 = vmul.f32 %v3597, %v3562
      %v3604 = vmul.f32 %v3598, %v3566
      %v3605 = vmul.f32 %v3599, %v3570
      %v3606 = vmul.f32 %v3600, %v3574
      %v3607 = vmul.f32 %v3601, %v3601
      %v3608 = vmul.f32 %v3602, %v3602
      %v3609 = vmul.f32 %v3603, %v3603
      %v3610 = vmul.f32 %v3604, %v3604
      %v3611 = vmul.f32 %v3605, %v3605
      %v3612 = vmul.f32 %v3606, %v3606
      %v3613 = vadd.f32 %v3607, %v3608
      %v3614 = vadd.f32 %v3613, %v3609
      %v3615 = vadd.f32 %v3614, %v3610
      %v3616 = vadd.f32 %v3615, %v3611
      %v3617 = vadd.f32 %v3616, %v3612
      %3618 = vadd.xlane.f32.xlu0 %v3617
      %v3619 = vpop.xlane.xlu0 %3618
      %v3620 = vmul.f32 %v3619, 0.002915452
      %v3621 = vadd.f32 %v3620, 1e-05
      %v3622 = vrsqrt.pop %v3621
      %v3623 = vmul.f32 %v3595, %v3622
      %v3624 = vmul.f32 %v3596, %v3622
      %v3625 = vmul.f32 %v3597, %v3622
      %v3626 = vmul.f32 %v3598, %v3622
      %v3627 = vmul.f32 %v3599, %v3622
      %v3628 = vmul.f32 %v3600, %v3622
      %vm3629 = vcmp.ge.f32.partialorder %v3623, 0.0
      %vm3630 = vcmp.ge.f32.partialorder %v3624, 0.0
      %vm3631 = vcmp.ge.f32.partialorder %v3625, 0.0
      %vm3632 = vcmp.ge.f32.partialorder %v3626, 0.0
      %vm3633 = vcmp.ge.f32.partialorder %v3627, 0.0
      %vm3634 = vcmp.ge.f32.partialorder %v3628, 0.0
      %v3635 = vmul.f32 %v3623, 0.01
      %v3636 = vmul.f32 %v3624, 0.01
      %v3637 = vmul.f32 %v3625, 0.01
      %v3638 = vmul.f32 %v3626, 0.01
      %v3639 = vmul.f32 %v3627, 0.01
      %v3640 = vmul.f32 %v3628, 0.01
      %v3641 = vsel %vm3629, %v3623, %v3635
      %v3642 = vsel %vm3630, %v3624, %v3636
      %v3643 = vsel %vm3631, %v3625, %v3637
      %v3644 = vsel %vm3632, %v3626, %v3638
      %v3645 = vsel %vm3633, %v3627, %v3639
      %v3646 = vsel %vm3634, %v3628, %v3640
      %v3647 = vmul.f32 %v3641, %v3554
      %v3648 = vmul.f32 %v3642, %v3558
      %v3649 = vmul.f32 %v3643, %v3562
      %v3650 = vmul.f32 %v3644, %v3566
      %v3651 = vmul.f32 %v3645, %v3570
      %v3652 = vmul.f32 %v3646, %v3574
      %3653 = vst [vmem:[#allocation6] sm:$0xff] 0.0
      %3654 = vst [vmem:[#allocation6 + $0x8] sm:$0xff] 0.0
      %3655 = vst [vmem:[#allocation6 + $0x10] sm:$0xff] 0.0
      %3656 = vst [vmem:[#allocation6 + $0x18] sm:$0xff] 0.0
      %3657 = vst [vmem:[#allocation6 + $0x20] sm:$0xff] 0.0
      %3658 = vst [vmem:[#allocation6 + $0x28] sm:$0xff] 0.0
      %3659 = vst [vmem:[#allocation6 + $0x30] sm:$0xff] 0.0
      %3660 = vst [vmem:[#allocation6 + $0x38] sm:$0xff] 0.0
      %3667 = vrot.lane.b32.xlu0 %v3647, 91
      %v3668 = vpop.permute.xlu0 %3667
      %3669 = vrot.lane.b32.xlu0 %v3648, 91
      %v3670 = vpop.permute.xlu0 %3669
      %3671 = vrot.lane.b32.xlu0 %v3649, 91
      %v3672 = vpop.permute.xlu0 %3671
      %3673 = vrot.lane.b32.xlu0 %v3650, 91
      %v3674 = vpop.permute.xlu0 %3673
      %3675 = vrot.lane.b32.xlu0 %v3651, 91
      %v3676 = vpop.permute.xlu0 %3675
      %3677 = vrot.lane.b32.xlu0 %v3652, 91
      %v3678 = vpop.permute.xlu0 %3677
      %vm3679 = vcmask 744448
      %v3680 = vsel %vm3679, %v3668, %v3670
      %v3681 = vsel %vm3679, %v3670, %v3672
      %v3682 = vsel %vm3679, %v3672, %v3674
      %v3683 = vsel %vm3679, %v3674, %v3676
      %v3684 = vsel %vm3679, %v3676, %v3678
      %vm3692 = vcmask 1048280
      %3693 = vst.msk [vmem:[#allocation6] sm:$0xff] %vm3692, %v3668
      %3694 = vst [vmem:[#allocation6 + $0x8] sm:$0xff] %v3680
      %3695 = vst [vmem:[#allocation6 + $0x10] sm:$0xff] %v3681
      %3696 = vst [vmem:[#allocation6 + $0x18] sm:$0xff] %v3682
      %3697 = vst [vmem:[#allocation6 + $0x20] sm:$0xff] %v3683
      %3698 = vst [vmem:[#allocation6 + $0x28] sm:$0xff] %v3684
      %3699 = vst.msk [vmem:[#allocation6 + $0x30] sm:$0xff] %vm3679, %v3678
      %v3700 = vld [vmem:[#allocation6] sm:$0xff]
      %v3701 = vld [vmem:[#allocation6 + $0x8] sm:$0xff]
      %v3702 = vld [vmem:[#allocation6 + $0x10] sm:$0xff]
      %v3703 = vld [vmem:[#allocation6 + $0x18] sm:$0xff]
      %v3704 = vld [vmem:[#allocation6 + $0x20] sm:$0xff]
      %v3705 = vld [vmem:[#allocation6 + $0x28] sm:$0xff]
      %3706 = vst [vmem:[#allocation4] sm:$0xff] %v3700
      %3707 = vst [vmem:[#allocation4 + $0x8] sm:$0xff] %v3701
      %3708 = vst [vmem:[#allocation4 + $0x10] sm:$0xff] %v3702
      %3709 = vst [vmem:[#allocation4 + $0x18] sm:$0xff] %v3703
      %3710 = vst [vmem:[#allocation4 + $0x20] sm:$0xff] %v3704
      %3711 = vst [vmem:[#allocation4 + $0x28] sm:$0xff] %v3705
      %v3712 = vld [vmem:[#allocation6] sm:$0xff]
      %v3713 = vld [vmem:[#allocation6 + $0x8] sm:$0xff]
      %v3714 = vld [vmem:[#allocation6 + $0x10] sm:$0xff]
      %v3715 = vld [vmem:[#allocation6 + $0x18] sm:$0xff]
      %v3716 = vld [vmem:[#allocation6 + $0x20] sm:$0xff]
      %v3717 = vld [vmem:[#allocation6 + $0x28] sm:$0xff]
      %v3718 = vld [vmem:[#allocation6 + $0x30] sm:$0xff]
      %3726 = vrot.lane.b32.xlu0 %v3712, 127
      %v3727 = vpop.permute.xlu0 %3726
      %3728 = vrot.lane.b32.xlu0 %v3713, 127
      %v3729 = vpop.permute.xlu0 %3728
      %3730 = vrot.lane.b32.xlu0 %v3714, 127
      %v3731 = vpop.permute.xlu0 %3730
      %3732 = vrot.lane.b32.xlu0 %v3715, 127
      %v3733 = vpop.permute.xlu0 %3732
      %3734 = vrot.lane.b32.xlu0 %v3716, 127
      %v3735 = vpop.permute.xlu0 %3734
      %3736 = vrot.lane.b32.xlu0 %v3717, 127
      %v3737 = vpop.permute.xlu0 %3736
      %3738 = vrot.lane.b32.xlu0 %v3718, 127
      %v3739 = vpop.permute.xlu0 %3738
      %v3740 = vsel %vm442, %v3727, %v3729
      %v3741 = vsel %vm442, %v3729, %v3731
      %v3742 = vsel %vm442, %v3731, %v3733
      %v3743 = vsel %vm442, %v3733, %v3735
      %v3744 = vsel %vm442, %v3735, %v3737
      %v3745 = vsel %vm442, %v3737, %v3739
      %3752 = vst [vmem:[#allocation4 + $0x30] sm:$0xff] %v3740
      %3753 = vst [vmem:[#allocation4 + $0x38] sm:$0xff] %v3741
      %3754 = vst [vmem:[#allocation4 + $0x40] sm:$0xff] %v3742
      %3755 = vst [vmem:[#allocation4 + $0x48] sm:$0xff] %v3743
      %3756 = vst [vmem:[#allocation4 + $0x50] sm:$0xff] %v3744
      %3757 = vst [vmem:[#allocation4 + $0x58] sm:$0xff] %v3745
      %v3758 = vld [vmem:[#allocation6] sm:$0xff]
      %v3759 = vld [vmem:[#allocation6 + $0x8] sm:$0xff]
      %v3760 = vld [vmem:[#allocation6 + $0x10] sm:$0xff]
      %v3761 = vld [vmem:[#allocation6 + $0x18] sm:$0xff]
      %v3762 = vld [vmem:[#allocation6 + $0x20] sm:$0xff]
      %v3763 = vld [vmem:[#allocation6 + $0x28] sm:$0xff]
      %v3764 = vld [vmem:[#allocation6 + $0x30] sm:$0xff]
      %3772 = vrot.lane.b32.xlu0 %v3758, 126
      %v3773 = vpop.permute.xlu0 %3772
      %3774 = vrot.lane.b32.xlu0 %v3759, 126
      %v3775 = vpop.permute.xlu0 %3774
      %3776 = vrot.lane.b32.xlu0 %v3760, 126
      %v3777 = vpop.permute.xlu0 %3776
      %3778 = vrot.lane.b32.xlu0 %v3761, 126
      %v3779 = vpop.permute.xlu0 %3778
      %3780 = vrot.lane.b32.xlu0 %v3762, 126
      %v3781 = vpop.permute.xlu0 %3780
      %3782 = vrot.lane.b32.xlu0 %v3763, 126
      %v3783 = vpop.permute.xlu0 %3782
      %3784 = vrot.lane.b32.xlu0 %v3764, 126
      %v3785 = vpop.permute.xlu0 %3784
      %v3786 = vsel %vm2197, %v3773, %v3775
      %v3787 = vsel %vm2197, %v3775, %v3777
      %v3788 = vsel %vm2197, %v3777, %v3779
      %v3789 = vsel %vm2197, %v3779, %v3781
      %v3790 = vsel %vm2197, %v3781, %v3783
      %v3791 = vsel %vm2197, %v3783, %v3785
      %3798 = vst [vmem:[#allocation4 + $0x60] sm:$0xff] %v3786
      %3799 = vst [vmem:[#allocation4 + $0x68] sm:$0xff] %v3787
      %3800 = vst [vmem:[#allocation4 + $0x70] sm:$0xff] %v3788
      %3801 = vst [vmem:[#allocation4 + $0x78] sm:$0xff] %v3789
      %3802 = vst [vmem:[#allocation4 + $0x80] sm:$0xff] %v3790
      %3803 = vst [vmem:[#allocation4 + $0x88] sm:$0xff] %v3791
      %v3804 = vld [vmem:[#allocation6] sm:$0xff]
      %v3805 = vld [vmem:[#allocation6 + $0x8] sm:$0xff]
      %v3806 = vld [vmem:[#allocation6 + $0x10] sm:$0xff]
      %v3807 = vld [vmem:[#allocation6 + $0x18] sm:$0xff]
      %v3808 = vld [vmem:[#allocation6 + $0x20] sm:$0xff]
      %v3809 = vld [vmem:[#allocation6 + $0x28] sm:$0xff]
      %v3810 = vld [vmem:[#allocation6 + $0x30] sm:$0xff]
      %3818 = vrot.lane.b32.xlu0 %v3804, 119
      %v3819 = vpop.permute.xlu0 %3818
      %3820 = vrot.lane.b32.xlu0 %v3805, 119
      %v3821 = vpop.permute.xlu0 %3820
      %3822 = vrot.lane.b32.xlu0 %v3806, 119
      %v3823 = vpop.permute.xlu0 %3822
      %3824 = vrot.lane.b32.xlu0 %v3807, 119
      %v3825 = vpop.permute.xlu0 %3824
      %3826 = vrot.lane.b32.xlu0 %v3808, 119
      %v3827 = vpop.permute.xlu0 %3826
      %3828 = vrot.lane.b32.xlu0 %v3809, 119
      %v3829 = vpop.permute.xlu0 %3828
      %3830 = vrot.lane.b32.xlu0 %v3810, 119
      %v3831 = vpop.permute.xlu0 %3830
      %v3832 = vsel %vm627, %v3819, %v3821
      %v3833 = vsel %vm627, %v3821, %v3823
      %v3834 = vsel %vm627, %v3823, %v3825
      %v3835 = vsel %vm627, %v3825, %v3827
      %v3836 = vsel %vm627, %v3827, %v3829
      %v3837 = vsel %vm627, %v3829, %v3831
      %3844 = vst [vmem:[#allocation4 + $0x90] sm:$0xff] %v3832
      %3845 = vst [vmem:[#allocation4 + $0x98] sm:$0xff] %v3833
      %3846 = vst [vmem:[#allocation4 + $0xa0] sm:$0xff] %v3834
      %3847 = vst [vmem:[#allocation4 + $0xa8] sm:$0xff] %v3835
      %3848 = vst [vmem:[#allocation4 + $0xb0] sm:$0xff] %v3836
      %3849 = vst [vmem:[#allocation4 + $0xb8] sm:$0xff] %v3837
      %v3850 = vld [vmem:[#allocation6] sm:$0xff]
      %v3851 = vld [vmem:[#allocation6 + $0x8] sm:$0xff]
      %v3852 = vld [vmem:[#allocation6 + $0x10] sm:$0xff]
      %v3853 = vld [vmem:[#allocation6 + $0x18] sm:$0xff]
      %v3854 = vld [vmem:[#allocation6 + $0x20] sm:$0xff]
      %v3855 = vld [vmem:[#allocation6 + $0x28] sm:$0xff]
      %v3856 = vld [vmem:[#allocation6 + $0x30] sm:$0xff]
      %3864 = vrot.lane.b32.xlu0 %v3850, 118
      %v3865 = vpop.permute.xlu0 %3864
      %3866 = vrot.lane.b32.xlu0 %v3851, 118
      %v3867 = vpop.permute.xlu0 %3866
      %3868 = vrot.lane.b32.xlu0 %v3852, 118
      %v3869 = vpop.permute.xlu0 %3868
      %3870 = vrot.lane.b32.xlu0 %v3853, 118
      %v3871 = vpop.permute.xlu0 %3870
      %3872 = vrot.lane.b32.xlu0 %v3854, 118
      %v3873 = vpop.permute.xlu0 %3872
      %3874 = vrot.lane.b32.xlu0 %v3855, 118
      %v3875 = vpop.permute.xlu0 %3874
      %3876 = vrot.lane.b32.xlu0 %v3856, 118
      %v3877 = vpop.permute.xlu0 %3876
      %v3878 = vsel %vm812, %v3865, %v3867
      %v3879 = vsel %vm812, %v3867, %v3869
      %v3880 = vsel %vm812, %v3869, %v3871
      %v3881 = vsel %vm812, %v3871, %v3873
      %v3882 = vsel %vm812, %v3873, %v3875
      %v3883 = vsel %vm812, %v3875, %v3877
      %3890 = vst [vmem:[#allocation4 + $0xc0] sm:$0xff] %v3878
      %3891 = vst [vmem:[#allocation4 + $0xc8] sm:$0xff] %v3879
      %3892 = vst [vmem:[#allocation4 + $0xd0] sm:$0xff] %v3880
      %3893 = vst [vmem:[#allocation4 + $0xd8] sm:$0xff] %v3881
      %3894 = vst [vmem:[#allocation4 + $0xe0] sm:$0xff] %v3882
      %3895 = vst [vmem:[#allocation4 + $0xe8] sm:$0xff] %v3883
      %v3896 = vld [vmem:[#allocation6] sm:$0xff]
      %v3897 = vld [vmem:[#allocation6 + $0x8] sm:$0xff]
      %v3898 = vld [vmem:[#allocation6 + $0x10] sm:$0xff]
      %v3899 = vld [vmem:[#allocation6 + $0x18] sm:$0xff]
      %v3900 = vld [vmem:[#allocation6 + $0x20] sm:$0xff]
      %v3901 = vld [vmem:[#allocation6 + $0x28] sm:$0xff]
      %v3902 = vld [vmem:[#allocation6 + $0x30] sm:$0xff]
      %3910 = vrot.lane.b32.xlu0 %v3896, 117
      %v3911 = vpop.permute.xlu0 %3910
      %3912 = vrot.lane.b32.xlu0 %v3897, 117
      %v3913 = vpop.permute.xlu0 %3912
      %3914 = vrot.lane.b32.xlu0 %v3898, 117
      %v3915 = vpop.permute.xlu0 %3914
      %3916 = vrot.lane.b32.xlu0 %v3899, 117
      %v3917 = vpop.permute.xlu0 %3916
      %3918 = vrot.lane.b32.xlu0 %v3900, 117
      %v3919 = vpop.permute.xlu0 %3918
      %3920 = vrot.lane.b32.xlu0 %v3901, 117
      %v3921 = vpop.permute.xlu0 %3920
      %3922 = vrot.lane.b32.xlu0 %v3902, 117
      %v3923 = vpop.permute.xlu0 %3922
      %v3924 = vsel %vm2329, %v3911, %v3913
      %v3925 = vsel %vm2329, %v3913, %v3915
      %v3926 = vsel %vm2329, %v3915, %v3917
      %v3927 = vsel %vm2329, %v3917, %v3919
      %v3928 = vsel %vm2329, %v3919, %v3921
      %v3929 = vsel %vm2329, %v3921, %v3923
      %3936 = vst [vmem:[#allocation4 + $0xf0] sm:$0xff] %v3924
      %3937 = vst [vmem:[#allocation4 + $0xf8] sm:$0xff] %v3925
      %3938 = vst [vmem:[#allocation4 + $0x100] sm:$0xff] %v3926
      %3939 = vst [vmem:[#allocation4 + $0x108] sm:$0xff] %v3927
      %3940 = vst [vmem:[#allocation4 + $0x110] sm:$0xff] %v3928
      %3941 = vst [vmem:[#allocation4 + $0x118] sm:$0xff] %v3929
      %v3942 = vld [vmem:[#allocation6] sm:$0xff]
      %v3943 = vld [vmem:[#allocation6 + $0x8] sm:$0xff]
      %v3944 = vld [vmem:[#allocation6 + $0x10] sm:$0xff]
      %v3945 = vld [vmem:[#allocation6 + $0x18] sm:$0xff]
      %v3946 = vld [vmem:[#allocation6 + $0x20] sm:$0xff]
      %v3947 = vld [vmem:[#allocation6 + $0x28] sm:$0xff]
      %v3948 = vld [vmem:[#allocation6 + $0x30] sm:$0xff]
      %3956 = vrot.lane.b32.xlu0 %v3942, 110
      %v3957 = vpop.permute.xlu0 %3956
      %3958 = vrot.lane.b32.xlu0 %v3943, 110
      %v3959 = vpop.permute.xlu0 %3958
      %3960 = vrot.lane.b32.xlu0 %v3944, 110
      %v3961 = vpop.permute.xlu0 %3960
      %3962 = vrot.lane.b32.xlu0 %v3945, 110
      %v3963 = vpop.permute.xlu0 %3962
      %3964 = vrot.lane.b32.xlu0 %v3946, 110
      %v3965 = vpop.permute.xlu0 %3964
      %3966 = vrot.lane.b32.xlu0 %v3947, 110
      %v3967 = vpop.permute.xlu0 %3966
      %3968 = vrot.lane.b32.xlu0 %v3948, 110
      %v3969 = vpop.permute.xlu0 %3968
      %v3970 = vsel %vm2373, %v3957, %v3959
      %v3971 = vsel %vm2373, %v3959, %v3961
      %v3972 = vsel %vm2373, %v3961, %v3963
      %v3973 = vsel %vm2373, %v3963, %v3965
      %v3974 = vsel %vm2373, %v3965, %v3967
      %v3975 = vsel %vm2373, %v3967, %v3969
      %3982 = vst [vmem:[#allocation4 + $0x120] sm:$0xff] %v3970
      %3983 = vst [vmem:[#allocation4 + $0x128] sm:$0xff] %v3971
      %3984 = vst [vmem:[#allocation4 + $0x130] sm:$0xff] %v3972
      %3985 = vst [vmem:[#allocation4 + $0x138] sm:$0xff] %v3973
      %3986 = vst [vmem:[#allocation4 + $0x140] sm:$0xff] %v3974
      %3987 = vst [vmem:[#allocation4 + $0x148] sm:$0xff] %v3975
      %v3988 = vld [vmem:[#allocation6] sm:$0xff]
      %v3989 = vld [vmem:[#allocation6 + $0x8] sm:$0xff]
      %v3990 = vld [vmem:[#allocation6 + $0x10] sm:$0xff]
      %v3991 = vld [vmem:[#allocation6 + $0x18] sm:$0xff]
      %v3992 = vld [vmem:[#allocation6 + $0x20] sm:$0xff]
      %v3993 = vld [vmem:[#allocation6 + $0x28] sm:$0xff]
      %v3994 = vld [vmem:[#allocation6 + $0x30] sm:$0xff]
      %4002 = vrot.lane.b32.xlu0 %v3988, 109
      %v4003 = vpop.permute.xlu0 %4002
      %4004 = vrot.lane.b32.xlu0 %v3989, 109
      %v4005 = vpop.permute.xlu0 %4004
      %4006 = vrot.lane.b32.xlu0 %v3990, 109
      %v4007 = vpop.permute.xlu0 %4006
      %4008 = vrot.lane.b32.xlu0 %v3991, 109
      %v4009 = vpop.permute.xlu0 %4008
      %4010 = vrot.lane.b32.xlu0 %v3992, 109
      %v4011 = vpop.permute.xlu0 %4010
      %4012 = vrot.lane.b32.xlu0 %v3993, 109
      %v4013 = vpop.permute.xlu0 %4012
      %4014 = vrot.lane.b32.xlu0 %v3994, 109
      %v4015 = vpop.permute.xlu0 %4014
      %v4016 = vsel %vm2418, %v4003, %v4005
      %v4017 = vsel %vm2418, %v4005, %v4007
      %v4018 = vsel %vm2418, %v4007, %v4009
      %v4019 = vsel %vm2418, %v4009, %v4011
      %v4020 = vsel %vm2418, %v4011, %v4013
      %v4021 = vsel %vm2418, %v4013, %v4015
      %4028 = vst [vmem:[#allocation4 + $0x150] sm:$0xff] %v4016
      %4029 = vst [vmem:[#allocation4 + $0x158] sm:$0xff] %v4017
      %4030 = vst [vmem:[#allocation4 + $0x160] sm:$0xff] %v4018
      %4031 = vst [vmem:[#allocation4 + $0x168] sm:$0xff] %v4019
      %4032 = vst [vmem:[#allocation4 + $0x170] sm:$0xff] %v4020
      %4033 = vst [vmem:[#allocation4 + $0x178] sm:$0xff] %v4021
      %v4034 = vld [vmem:[#allocation6] sm:$0xff]
      %v4035 = vld [vmem:[#allocation6 + $0x8] sm:$0xff]
      %v4036 = vld [vmem:[#allocation6 + $0x10] sm:$0xff]
      %v4037 = vld [vmem:[#allocation6 + $0x18] sm:$0xff]
      %v4038 = vld [vmem:[#allocation6 + $0x20] sm:$0xff]
      %v4039 = vld [vmem:[#allocation6 + $0x28] sm:$0xff]
      %v4040 = vld [vmem:[#allocation6 + $0x30] sm:$0xff]
      %4048 = vrot.lane.b32.xlu0 %v4034, 108
      %v4049 = vpop.permute.xlu0 %4048
      %4050 = vrot.lane.b32.xlu0 %v4035, 108
      %v4051 = vpop.permute.xlu0 %4050
      %4052 = vrot.lane.b32.xlu0 %v4036, 108
      %v4053 = vpop.permute.xlu0 %4052
      %4054 = vrot.lane.b32.xlu0 %v4037, 108
      %v4055 = vpop.permute.xlu0 %4054
      %4056 = vrot.lane.b32.xlu0 %v4038, 108
      %v4057 = vpop.permute.xlu0 %4056
      %4058 = vrot.lane.b32.xlu0 %v4039, 108
      %v4059 = vpop.permute.xlu0 %4058
      %4060 = vrot.lane.b32.xlu0 %v4040, 108
      %v4061 = vpop.permute.xlu0 %4060
      %v4062 = vsel %vm2462, %v4049, %v4051
      %v4063 = vsel %vm2462, %v4051, %v4053
      %v4064 = vsel %vm2462, %v4053, %v4055
      %v4065 = vsel %vm2462, %v4055, %v4057
      %v4066 = vsel %vm2462, %v4057, %v4059
      %v4067 = vsel %vm2462, %v4059, %v4061
      %4074 = vst [vmem:[#allocation4 + $0x180] sm:$0xff] %v4062
      %4075 = vst [vmem:[#allocation4 + $0x188] sm:$0xff] %v4063
      %4076 = vst [vmem:[#allocation4 + $0x190] sm:$0xff] %v4064
      %4077 = vst [vmem:[#allocation4 + $0x198] sm:$0xff] %v4065
      %4078 = vst [vmem:[#allocation4 + $0x1a0] sm:$0xff] %v4066
      %4079 = vst [vmem:[#allocation4 + $0x1a8] sm:$0xff] %v4067
      %v4080 = vld [vmem:[#allocation6] sm:$0xff]
      %v4081 = vld [vmem:[#allocation6 + $0x8] sm:$0xff]
      %v4082 = vld [vmem:[#allocation6 + $0x10] sm:$0xff]
      %v4083 = vld [vmem:[#allocation6 + $0x18] sm:$0xff]
      %v4084 = vld [vmem:[#allocation6 + $0x20] sm:$0xff]
      %v4085 = vld [vmem:[#allocation6 + $0x28] sm:$0xff]
      %v4086 = vld [vmem:[#allocation6 + $0x30] sm:$0xff]
      %4094 = vrot.lane.b32.xlu0 %v4080, 47
      %v4095 = vpop.permute.xlu0 %4094
      %4096 = vrot.lane.b32.xlu0 %v4081, 47
      %v4097 = vpop.permute.xlu0 %4096
      %4098 = vrot.lane.b32.xlu0 %v4082, 47
      %v4099 = vpop.permute.xlu0 %4098
      %4100 = vrot.lane.b32.xlu0 %v4083, 47
      %v4101 = vpop.permute.xlu0 %4100
      %4102 = vrot.lane.b32.xlu0 %v4084, 47
      %v4103 = vpop.permute.xlu0 %4102
      %4104 = vrot.lane.b32.xlu0 %v4085, 47
      %v4105 = vpop.permute.xlu0 %4104
      %4106 = vrot.lane.b32.xlu0 %v4086, 47
      %v4107 = vpop.permute.xlu0 %4106
      %v4108 = vsel %vm997, %v4095, %v4097
      %v4109 = vsel %vm997, %v4097, %v4099
      %v4110 = vsel %vm997, %v4099, %v4101
      %v4111 = vsel %vm997, %v4101, %v4103
      %v4112 = vsel %vm997, %v4103, %v4105
      %v4113 = vsel %vm997, %v4105, %v4107
      %4120 = vst [vmem:[#allocation4 + $0x1b0] sm:$0xff] %v4108
      %4121 = vst [vmem:[#allocation4 + $0x1b8] sm:$0xff] %v4109
      %4122 = vst [vmem:[#allocation4 + $0x1c0] sm:$0xff] %v4110
      %4123 = vst [vmem:[#allocation4 + $0x1c8] sm:$0xff] %v4111
      %4124 = vst [vmem:[#allocation4 + $0x1d0] sm:$0xff] %v4112
      %4125 = vst [vmem:[#allocation4 + $0x1d8] sm:$0xff] %v4113
      %v4126 = vld [vmem:[#allocation6] sm:$0xff]
      %v4127 = vld [vmem:[#allocation6 + $0x8] sm:$0xff]
      %v4128 = vld [vmem:[#allocation6 + $0x10] sm:$0xff]
      %v4129 = vld [vmem:[#allocation6 + $0x18] sm:$0xff]
      %v4130 = vld [vmem:[#allocation6 + $0x20] sm:$0xff]
      %v4131 = vld [vmem:[#allocation6 + $0x28] sm:$0xff]
      %v4132 = vld [vmem:[#allocation6 + $0x30] sm:$0xff]
      %4140 = vrot.lane.b32.xlu0 %v4126, 46
      %v4141 = vpop.permute.xlu0 %4140
      %4142 = vrot.lane.b32.xlu0 %v4127, 46
      %v4143 = vpop.permute.xlu0 %4142
      %4144 = vrot.lane.b32.xlu0 %v4128, 46
      %v4145 = vpop.permute.xlu0 %4144
      %4146 = vrot.lane.b32.xlu0 %v4129, 46
      %v4147 = vpop.permute.xlu0 %4146
      %4148 = vrot.lane.b32.xlu0 %v4130, 46
      %v4149 = vpop.permute.xlu0 %4148
      %4150 = vrot.lane.b32.xlu0 %v4131, 46
      %v4151 = vpop.permute.xlu0 %4150
      %4152 = vrot.lane.b32.xlu0 %v4132, 46
      %v4153 = vpop.permute.xlu0 %4152
      %v4154 = vsel %vm1182, %v4141, %v4143
      %v4155 = vsel %vm1182, %v4143, %v4145
      %v4156 = vsel %vm1182, %v4145, %v4147
      %v4157 = vsel %vm1182, %v4147, %v4149
      %v4158 = vsel %vm1182, %v4149, %v4151
      %v4159 = vsel %vm1182, %v4151, %v4153
      %4166 = vst [vmem:[#allocation4 + $0x1e0] sm:$0xff] %v4154
      %4167 = vst [vmem:[#allocation4 + $0x1e8] sm:$0xff] %v4155
      %4168 = vst [vmem:[#allocation4 + $0x1f0] sm:$0xff] %v4156
      %4169 = vst [vmem:[#allocation4 + $0x1f8] sm:$0xff] %v4157
      %4170 = vst [vmem:[#allocation4 + $0x200] sm:$0xff] %v4158
      %4171 = vst [vmem:[#allocation4 + $0x208] sm:$0xff] %v4159
      %v4172 = vld [vmem:[#allocation6] sm:$0xff]
      %v4173 = vld [vmem:[#allocation6 + $0x8] sm:$0xff]
      %v4174 = vld [vmem:[#allocation6 + $0x10] sm:$0xff]
      %v4175 = vld [vmem:[#allocation6 + $0x18] sm:$0xff]
      %v4176 = vld [vmem:[#allocation6 + $0x20] sm:$0xff]
      %v4177 = vld [vmem:[#allocation6 + $0x28] sm:$0xff]
      %v4178 = vld [vmem:[#allocation6 + $0x30] sm:$0xff]
      %4186 = vrot.lane.b32.xlu0 %v4172, 45
      %v4187 = vpop.permute.xlu0 %4186
      %4188 = vrot.lane.b32.xlu0 %v4173, 45
      %v4189 = vpop.permute.xlu0 %4188
      %4190 = vrot.lane.b32.xlu0 %v4174, 45
      %v4191 = vpop.permute.xlu0 %4190
      %4192 = vrot.lane.b32.xlu0 %v4175, 45
      %v4193 = vpop.permute.xlu0 %4192
      %4194 = vrot.lane.b32.xlu0 %v4176, 45
      %v4195 = vpop.permute.xlu0 %4194
      %4196 = vrot.lane.b32.xlu0 %v4177, 45
      %v4197 = vpop.permute.xlu0 %4196
      %4198 = vrot.lane.b32.xlu0 %v4178, 45
      %v4199 = vpop.permute.xlu0 %4198
      %v4200 = vsel %vm2594, %v4187, %v4189
      %v4201 = vsel %vm2594, %v4189, %v4191
      %v4202 = vsel %vm2594, %v4191, %v4193
      %v4203 = vsel %vm2594, %v4193, %v4195
      %v4204 = vsel %vm2594, %v4195, %v4197
      %v4205 = vsel %vm2594, %v4197, %v4199
      %4212 = vst [vmem:[#allocation4 + $0x210] sm:$0xff] %v4200
      %4213 = vst [vmem:[#allocation4 + $0x218] sm:$0xff] %v4201
      %4214 = vst [vmem:[#allocation4 + $0x220] sm:$0xff] %v4202
      %4215 = vst [vmem:[#allocation4 + $0x228] sm:$0xff] %v4203
      %4216 = vst [vmem:[#allocation4 + $0x230] sm:$0xff] %v4204
      %4217 = vst [vmem:[#allocation4 + $0x238] sm:$0xff] %v4205
      %v4218 = vld [vmem:[#allocation6] sm:$0xff]
      %v4219 = vld [vmem:[#allocation6 + $0x8] sm:$0xff]
      %v4220 = vld [vmem:[#allocation6 + $0x10] sm:$0xff]
      %v4221 = vld [vmem:[#allocation6 + $0x18] sm:$0xff]
      %v4222 = vld [vmem:[#allocation6 + $0x20] sm:$0xff]
      %v4223 = vld [vmem:[#allocation6 + $0x28] sm:$0xff]
      %v4224 = vld [vmem:[#allocation6 + $0x30] sm:$0xff]
      %4232 = vrot.lane.b32.xlu0 %v4218, 38
      %v4233 = vpop.permute.xlu0 %4232
      %4234 = vrot.lane.b32.xlu0 %v4219, 38
      %v4235 = vpop.permute.xlu0 %4234
      %4236 = vrot.lane.b32.xlu0 %v4220, 38
      %v4237 = vpop.permute.xlu0 %4236
      %4238 = vrot.lane.b32.xlu0 %v4221, 38
      %v4239 = vpop.permute.xlu0 %4238
      %4240 = vrot.lane.b32.xlu0 %v4222, 38
      %v4241 = vpop.permute.xlu0 %4240
      %4242 = vrot.lane.b32.xlu0 %v4223, 38
      %v4243 = vpop.permute.xlu0 %4242
      %4244 = vrot.lane.b32.xlu0 %v4224, 38
      %v4245 = vpop.permute.xlu0 %4244
      %v4246 = vsel %vm1367, %v4233, %v4235
      %v4247 = vsel %vm1367, %v4235, %v4237
      %v4248 = vsel %vm1367, %v4237, %v4239
      %v4249 = vsel %vm1367, %v4239, %v4241
      %v4250 = vsel %vm1367, %v4241, %v4243
      %v4251 = vsel %vm1367, %v4243, %v4245
      %4258 = vst [vmem:[#allocation4 + $0x240] sm:$0xff] %v4246
      %4259 = vst [vmem:[#allocation4 + $0x248] sm:$0xff] %v4247
      %4260 = vst [vmem:[#allocation4 + $0x250] sm:$0xff] %v4248
      %4261 = vst [vmem:[#allocation4 + $0x258] sm:$0xff] %v4249
      %4262 = vst [vmem:[#allocation4 + $0x260] sm:$0xff] %v4250
      %4263 = vst [vmem:[#allocation4 + $0x268] sm:$0xff] %v4251
      %v4264 = vld [vmem:[#allocation6] sm:$0xff]
      %v4265 = vld [vmem:[#allocation6 + $0x8] sm:$0xff]
      %v4266 = vld [vmem:[#allocation6 + $0x10] sm:$0xff]
      %v4267 = vld [vmem:[#allocation6 + $0x18] sm:$0xff]
      %v4268 = vld [vmem:[#allocation6 + $0x20] sm:$0xff]
      %v4269 = vld [vmem:[#allocation6 + $0x28] sm:$0xff]
      %v4270 = vld [vmem:[#allocation6 + $0x30] sm:$0xff]
      %4278 = vrot.lane.b32.xlu0 %v4264, 37
      %v4279 = vpop.permute.xlu0 %4278
      %4280 = vrot.lane.b32.xlu0 %v4265, 37
      %v4281 = vpop.permute.xlu0 %4280
      %4282 = vrot.lane.b32.xlu0 %v4266, 37
      %v4283 = vpop.permute.xlu0 %4282
      %4284 = vrot.lane.b32.xlu0 %v4267, 37
      %v4285 = vpop.permute.xlu0 %4284
      %4286 = vrot.lane.b32.xlu0 %v4268, 37
      %v4287 = vpop.permute.xlu0 %4286
      %4288 = vrot.lane.b32.xlu0 %v4269, 37
      %v4289 = vpop.permute.xlu0 %4288
      %4290 = vrot.lane.b32.xlu0 %v4270, 37
      %v4291 = vpop.permute.xlu0 %4290
      %v4292 = vsel %vm1552, %v4279, %v4281
      %v4293 = vsel %vm1552, %v4281, %v4283
      %v4294 = vsel %vm1552, %v4283, %v4285
      %v4295 = vsel %vm1552, %v4285, %v4287
      %v4296 = vsel %vm1552, %v4287, %v4289
      %v4297 = vsel %vm1552, %v4289, %v4291
      %4304 = vst [vmem:[#allocation4 + $0x270] sm:$0xff] %v4292
      %4305 = vst [vmem:[#allocation4 + $0x278] sm:$0xff] %v4293
      %4306 = vst [vmem:[#allocation4 + $0x280] sm:$0xff] %v4294
      %4307 = vst [vmem:[#allocation4 + $0x288] sm:$0xff] %v4295
      %4308 = vst [vmem:[#allocation4 + $0x290] sm:$0xff] %v4296
      %4309 = vst [vmem:[#allocation4 + $0x298] sm:$0xff] %v4297
      %v4310 = vld [vmem:[#allocation6] sm:$0xff]
      %v4311 = vld [vmem:[#allocation6 + $0x8] sm:$0xff]
      %v4312 = vld [vmem:[#allocation6 + $0x10] sm:$0xff]
      %v4313 = vld [vmem:[#allocation6 + $0x18] sm:$0xff]
      %v4314 = vld [vmem:[#allocation6 + $0x20] sm:$0xff]
      %v4315 = vld [vmem:[#allocation6 + $0x28] sm:$0xff]
      %v4316 = vld [vmem:[#allocation6 + $0x30] sm:$0xff]
      %4324 = vrot.lane.b32.xlu0 %v4310, 36
      %v4325 = vpop.permute.xlu0 %4324
      %4326 = vrot.lane.b32.xlu0 %v4311, 36
      %v4327 = vpop.permute.xlu0 %4326
      %4328 = vrot.lane.b32.xlu0 %v4312, 36
      %v4329 = vpop.permute.xlu0 %4328
      %4330 = vrot.lane.b32.xlu0 %v4313, 36
      %v4331 = vpop.permute.xlu0 %4330
      %4332 = vrot.lane.b32.xlu0 %v4314, 36
      %v4333 = vpop.permute.xlu0 %4332
      %4334 = vrot.lane.b32.xlu0 %v4315, 36
      %v4335 = vpop.permute.xlu0 %4334
      %4336 = vrot.lane.b32.xlu0 %v4316, 36
      %v4337 = vpop.permute.xlu0 %4336
      %v4338 = vsel %vm2725, %v4325, %v4327
      %v4339 = vsel %vm2725, %v4327, %v4329
      %v4340 = vsel %vm2725, %v4329, %v4331
      %v4341 = vsel %vm2725, %v4331, %v4333
      %v4342 = vsel %vm2725, %v4333, %v4335
      %v4343 = vsel %vm2725, %v4335, %v4337
      %4350 = vst [vmem:[#allocation4 + $0x2a0] sm:$0xff] %v4338
      %4351 = vst [vmem:[#allocation4 + $0x2a8] sm:$0xff] %v4339
      %4352 = vst [vmem:[#allocation4 + $0x2b0] sm:$0xff] %v4340
      %4353 = vst [vmem:[#allocation4 + $0x2b8] sm:$0xff] %v4341
      %4354 = vst [vmem:[#allocation4 + $0x2c0] sm:$0xff] %v4342
      %4355 = vst [vmem:[#allocation4 + $0x2c8] sm:$0xff] %v4343
      %v4356 = vld [vmem:[#allocation6] sm:$0xff]
      %v4357 = vld [vmem:[#allocation6 + $0x8] sm:$0xff]
      %v4358 = vld [vmem:[#allocation6 + $0x10] sm:$0xff]
      %v4359 = vld [vmem:[#allocation6 + $0x18] sm:$0xff]
      %v4360 = vld [vmem:[#allocation6 + $0x20] sm:$0xff]
      %v4361 = vld [vmem:[#allocation6 + $0x28] sm:$0xff]
      %v4362 = vld [vmem:[#allocation6 + $0x30] sm:$0xff]
      %4370 = vrot.lane.b32.xlu0 %v4356, 29
      %v4371 = vpop.permute.xlu0 %4370
      %4372 = vrot.lane.b32.xlu0 %v4357, 29
      %v4373 = vpop.permute.xlu0 %4372
      %4374 = vrot.lane.b32.xlu0 %v4358, 29
      %v4375 = vpop.permute.xlu0 %4374
      %4376 = vrot.lane.b32.xlu0 %v4359, 29
      %v4377 = vpop.permute.xlu0 %4376
      %4378 = vrot.lane.b32.xlu0 %v4360, 29
      %v4379 = vpop.permute.xlu0 %4378
      %4380 = vrot.lane.b32.xlu0 %v4361, 29
      %v4381 = vpop.permute.xlu0 %4380
      %4382 = vrot.lane.b32.xlu0 %v4362, 29
      %v4383 = vpop.permute.xlu0 %4382
      %v4384 = vsel %vm2770, %v4371, %v4373
      %v4385 = vsel %vm2770, %v4373, %v4375
      %v4386 = vsel %vm2770, %v4375, %v4377
      %v4387 = vsel %vm2770, %v4377, %v4379
      %v4388 = vsel %vm2770, %v4379, %v4381
      %v4389 = vsel %vm2770, %v4381, %v4383
      %4396 = vst [vmem:[#allocation4 + $0x2d0] sm:$0xff] %v4384
      %4397 = vst [vmem:[#allocation4 + $0x2d8] sm:$0xff] %v4385
      %4398 = vst [vmem:[#allocation4 + $0x2e0] sm:$0xff] %v4386
      %4399 = vst [vmem:[#allocation4 + $0x2e8] sm:$0xff] %v4387
      %4400 = vst [vmem:[#allocation4 + $0x2f0] sm:$0xff] %v4388
      %4401 = vst [vmem:[#allocation4 + $0x2f8] sm:$0xff] %v4389
      %v4402 = vld [vmem:[#allocation6] sm:$0xff]
      %v4403 = vld [vmem:[#allocation6 + $0x8] sm:$0xff]
      %v4404 = vld [vmem:[#allocation6 + $0x10] sm:$0xff]
      %v4405 = vld [vmem:[#allocation6 + $0x18] sm:$0xff]
      %v4406 = vld [vmem:[#allocation6 + $0x20] sm:$0xff]
      %v4407 = vld [vmem:[#allocation6 + $0x28] sm:$0xff]
      %v4408 = vld [vmem:[#allocation6 + $0x30] sm:$0xff]
      %4416 = vrot.lane.b32.xlu0 %v4402, 28
      %v4417 = vpop.permute.xlu0 %4416
      %4418 = vrot.lane.b32.xlu0 %v4403, 28
      %v4419 = vpop.permute.xlu0 %4418
      %4420 = vrot.lane.b32.xlu0 %v4404, 28
      %v4421 = vpop.permute.xlu0 %4420
      %4422 = vrot.lane.b32.xlu0 %v4405, 28
      %v4423 = vpop.permute.xlu0 %4422
      %4424 = vrot.lane.b32.xlu0 %v4406, 28
      %v4425 = vpop.permute.xlu0 %4424
      %4426 = vrot.lane.b32.xlu0 %v4407, 28
      %v4427 = vpop.permute.xlu0 %4426
      %4428 = vrot.lane.b32.xlu0 %v4408, 28
      %v4429 = vpop.permute.xlu0 %4428
      %v4430 = vsel %vm2814, %v4417, %v4419
      %v4431 = vsel %vm2814, %v4419, %v4421
      %v4432 = vsel %vm2814, %v4421, %v4423
      %v4433 = vsel %vm2814, %v4423, %v4425
      %v4434 = vsel %vm2814, %v4425, %v4427
      %v4435 = vsel %vm2814, %v4427, %v4429
      %4442 = vst [vmem:[#allocation4 + $0x300] sm:$0xff] %v4430
      %4443 = vst [vmem:[#allocation4 + $0x308] sm:$0xff] %v4431
      %4444 = vst [vmem:[#allocation4 + $0x310] sm:$0xff] %v4432
      %4445 = vst [vmem:[#allocation4 + $0x318] sm:$0xff] %v4433
      %4446 = vst [vmem:[#allocation4 + $0x320] sm:$0xff] %v4434
      %4447 = vst [vmem:[#allocation4 + $0x328] sm:$0xff] %v4435
      %v4448 = vld [vmem:[#allocation6] sm:$0xff]
      %v4449 = vld [vmem:[#allocation6 + $0x8] sm:$0xff]
      %v4450 = vld [vmem:[#allocation6 + $0x10] sm:$0xff]
      %v4451 = vld [vmem:[#allocation6 + $0x18] sm:$0xff]
      %v4452 = vld [vmem:[#allocation6 + $0x20] sm:$0xff]
      %v4453 = vld [vmem:[#allocation6 + $0x28] sm:$0xff]
      %v4454 = vld [vmem:[#allocation6 + $0x30] sm:$0xff]
      %4462 = vrot.lane.b32.xlu0 %v4448, 27
      %v4463 = vpop.permute.xlu0 %4462
      %4464 = vrot.lane.b32.xlu0 %v4449, 27
      %v4465 = vpop.permute.xlu0 %4464
      %4466 = vrot.lane.b32.xlu0 %v4450, 27
      %v4467 = vpop.permute.xlu0 %4466
      %4468 = vrot.lane.b32.xlu0 %v4451, 27
      %v4469 = vpop.permute.xlu0 %4468
      %4470 = vrot.lane.b32.xlu0 %v4452, 27
      %v4471 = vpop.permute.xlu0 %4470
      %4472 = vrot.lane.b32.xlu0 %v4453, 27
      %v4473 = vpop.permute.xlu0 %4472
      %4474 = vrot.lane.b32.xlu0 %v4454, 27
      %v4475 = vpop.permute.xlu0 %4474
      %v4476 = vsel %vm2859, %v4463, %v4465
      %v4477 = vsel %vm2859, %v4465, %v4467
      %v4478 = vsel %vm2859, %v4467, %v4469
      %v4479 = vsel %vm2859, %v4469, %v4471
      %v4480 = vsel %vm2859, %v4471, %v4473
      %v4481 = vsel %vm2859, %v4473, %v4475
      %4488 = vst [vmem:[#allocation4 + $0x330] sm:$0xff] %v4476
      %4489 = vst [vmem:[#allocation4 + $0x338] sm:$0xff] %v4477
      %4490 = vst [vmem:[#allocation4 + $0x340] sm:$0xff] %v4478
      %4491 = vst [vmem:[#allocation4 + $0x348] sm:$0xff] %v4479
      %4492 = vst [vmem:[#allocation4 + $0x350] sm:$0xff] %v4480
      %4493 = vst [vmem:[#allocation4 + $0x358] sm:$0xff] %v4481
      %v4494 = vld [vmem:[#allocation6 + $0x8] sm:$0xff]
      %v4495 = vld [vmem:[#allocation6 + $0x10] sm:$0xff]
      %v4496 = vld [vmem:[#allocation6 + $0x18] sm:$0xff]
      %v4497 = vld [vmem:[#allocation6 + $0x20] sm:$0xff]
      %v4498 = vld [vmem:[#allocation6 + $0x28] sm:$0xff]
      %v4499 = vld [vmem:[#allocation6 + $0x30] sm:$0xff]
      %v4500 = vld [vmem:[#allocation6 + $0x38] sm:$0xff]
      %4508 = vrot.lane.b32.xlu0 %v4494, 94
      %v4509 = vpop.permute.xlu0 %4508
      %4510 = vrot.lane.b32.xlu0 %v4495, 94
      %v4511 = vpop.permute.xlu0 %4510
      %4512 = vrot.lane.b32.xlu0 %v4496, 94
      %v4513 = vpop.permute.xlu0 %4512
      %4514 = vrot.lane.b32.xlu0 %v4497, 94
      %v4515 = vpop.permute.xlu0 %4514
      %4516 = vrot.lane.b32.xlu0 %v4498, 94
      %v4517 = vpop.permute.xlu0 %4516
      %4518 = vrot.lane.b32.xlu0 %v4499, 94
      %v4519 = vpop.permute.xlu0 %4518
      %4520 = vrot.lane.b32.xlu0 %v4500, 94
      %v4521 = vpop.permute.xlu0 %4520
      %v4522 = vsel %vm2903, %v4509, %v4511
      %v4523 = vsel %vm2903, %v4511, %v4513
      %v4524 = vsel %vm2903, %v4513, %v4515
      %v4525 = vsel %vm2903, %v4515, %v4517
      %v4526 = vsel %vm2903, %v4517, %v4519
      %v4527 = vsel %vm2903, %v4519, %v4521
      %4534 = vst [vmem:[#allocation4 + $0x360] sm:$0xff] %v4522
      %4535 = vst [vmem:[#allocation4 + $0x368] sm:$0xff] %v4523
      %4536 = vst [vmem:[#allocation4 + $0x370] sm:$0xff] %v4524
      %4537 = vst [vmem:[#allocation4 + $0x378] sm:$0xff] %v4525
      %4538 = vst [vmem:[#allocation4 + $0x380] sm:$0xff] %v4526
      %4539 = vst [vmem:[#allocation4 + $0x388] sm:$0xff] %v4527
      %v4540 = vld [vmem:[#allocation6 + $0x8] sm:$0xff]
      %v4541 = vld [vmem:[#allocation6 + $0x10] sm:$0xff]
      %v4542 = vld [vmem:[#allocation6 + $0x18] sm:$0xff]
      %v4543 = vld [vmem:[#allocation6 + $0x20] sm:$0xff]
      %v4544 = vld [vmem:[#allocation6 + $0x28] sm:$0xff]
      %v4545 = vld [vmem:[#allocation6 + $0x30] sm:$0xff]
      %v4546 = vld [vmem:[#allocation6 + $0x38] sm:$0xff]
      %4554 = vrot.lane.b32.xlu0 %v4540, 93
      %v4555 = vpop.permute.xlu0 %4554
      %4556 = vrot.lane.b32.xlu0 %v4541, 93
      %v4557 = vpop.permute.xlu0 %4556
      %4558 = vrot.lane.b32.xlu0 %v4542, 93
      %v4559 = vpop.permute.xlu0 %4558
      %4560 = vrot.lane.b32.xlu0 %v4543, 93
      %v4561 = vpop.permute.xlu0 %4560
      %4562 = vrot.lane.b32.xlu0 %v4544, 93
      %v4563 = vpop.permute.xlu0 %4562
      %4564 = vrot.lane.b32.xlu0 %v4545, 93
      %v4565 = vpop.permute.xlu0 %4564
      %4566 = vrot.lane.b32.xlu0 %v4546, 93
      %v4567 = vpop.permute.xlu0 %4566
      %v4568 = vsel %vm2948, %v4555, %v4557
      %v4569 = vsel %vm2948, %v4557, %v4559
      %v4570 = vsel %vm2948, %v4559, %v4561
      %v4571 = vsel %vm2948, %v4561, %v4563
      %v4572 = vsel %vm2948, %v4563, %v4565
      %v4573 = vsel %vm2948, %v4565, %v4567
      %4580 = vst [vmem:[#allocation4 + $0x390] sm:$0xff] %v4568
      %4581 = vst [vmem:[#allocation4 + $0x398] sm:$0xff] %v4569
      %4582 = vst [vmem:[#allocation4 + $0x3a0] sm:$0xff] %v4570
      %4583 = vst [vmem:[#allocation4 + $0x3a8] sm:$0xff] %v4571
      %4584 = vst [vmem:[#allocation4 + $0x3b0] sm:$0xff] %v4572
      %4585 = vst [vmem:[#allocation4 + $0x3b8] sm:$0xff] %v4573
      %v4586 = vld [vmem:[#allocation6 + $0x8] sm:$0xff]
      %v4587 = vld [vmem:[#allocation6 + $0x10] sm:$0xff]
      %v4588 = vld [vmem:[#allocation6 + $0x18] sm:$0xff]
      %v4589 = vld [vmem:[#allocation6 + $0x20] sm:$0xff]
      %v4590 = vld [vmem:[#allocation6 + $0x28] sm:$0xff]
      %v4591 = vld [vmem:[#allocation6 + $0x30] sm:$0xff]
      %v4592 = vld [vmem:[#allocation6 + $0x38] sm:$0xff]
      %4600 = vrot.lane.b32.xlu0 %v4586, 92
      %v4601 = vpop.permute.xlu0 %4600
      %4602 = vrot.lane.b32.xlu0 %v4587, 92
      %v4603 = vpop.permute.xlu0 %4602
      %4604 = vrot.lane.b32.xlu0 %v4588, 92
      %v4605 = vpop.permute.xlu0 %4604
      %4606 = vrot.lane.b32.xlu0 %v4589, 92
      %v4607 = vpop.permute.xlu0 %4606
      %4608 = vrot.lane.b32.xlu0 %v4590, 92
      %v4609 = vpop.permute.xlu0 %4608
      %4610 = vrot.lane.b32.xlu0 %v4591, 92
      %v4611 = vpop.permute.xlu0 %4610
      %4612 = vrot.lane.b32.xlu0 %v4592, 92
      %v4613 = vpop.permute.xlu0 %4612
      %v4614 = vsel %vm2992, %v4601, %v4603
      %v4615 = vsel %vm2992, %v4603, %v4605
      %v4616 = vsel %vm2992, %v4605, %v4607
      %v4617 = vsel %vm2992, %v4607, %v4609
      %v4618 = vsel %vm2992, %v4609, %v4611
      %v4619 = vsel %vm2992, %v4611, %v4613
      %4626 = vst [vmem:[#allocation4 + $0x3c0] sm:$0xff] %v4614
      %4627 = vst [vmem:[#allocation4 + $0x3c8] sm:$0xff] %v4615
      %4628 = vst [vmem:[#allocation4 + $0x3d0] sm:$0xff] %v4616
      %4629 = vst [vmem:[#allocation4 + $0x3d8] sm:$0xff] %v4617
      %4630 = vst [vmem:[#allocation4 + $0x3e0] sm:$0xff] %v4618
      %4631 = vst [vmem:[#allocation4 + $0x3e8] sm:$0xff] %v4619
      %v4632 = vld [vmem:[#allocation6 + $0x8] sm:$0xff]
      %v4633 = vld [vmem:[#allocation6 + $0x10] sm:$0xff]
      %v4634 = vld [vmem:[#allocation6 + $0x18] sm:$0xff]
      %v4635 = vld [vmem:[#allocation6 + $0x20] sm:$0xff]
      %v4636 = vld [vmem:[#allocation6 + $0x28] sm:$0xff]
      %v4637 = vld [vmem:[#allocation6 + $0x30] sm:$0xff]
      %v4638 = vld [vmem:[#allocation6 + $0x38] sm:$0xff]
      %4646 = vrot.lane.b32.xlu0 %v4632, 85
      %v4647 = vpop.permute.xlu0 %4646
      %4648 = vrot.lane.b32.xlu0 %v4633, 85
      %v4649 = vpop.permute.xlu0 %4648
      %4650 = vrot.lane.b32.xlu0 %v4634, 85
      %v4651 = vpop.permute.xlu0 %4650
      %4652 = vrot.lane.b32.xlu0 %v4635, 85
      %v4653 = vpop.permute.xlu0 %4652
      %4654 = vrot.lane.b32.xlu0 %v4636, 85
      %v4655 = vpop.permute.xlu0 %4654
      %4656 = vrot.lane.b32.xlu0 %v4637, 85
      %v4657 = vpop.permute.xlu0 %4656
      %4658 = vrot.lane.b32.xlu0 %v4638, 85
      %v4659 = vpop.permute.xlu0 %4658
      %v4660 = vsel %vm3037, %v4647, %v4649
      %v4661 = vsel %vm3037, %v4649, %v4651
      %v4662 = vsel %vm3037, %v4651, %v4653
      %v4663 = vsel %vm3037, %v4653, %v4655
      %v4664 = vsel %vm3037, %v4655, %v4657
      %v4665 = vsel %vm3037, %v4657, %v4659
      %4672 = vst [vmem:[#allocation4 + $0x3f0] sm:$0xff] %v4660
      %4673 = vst [vmem:[#allocation4 + $0x3f8] sm:$0xff] %v4661
      %4674 = vst [vmem:[#allocation4 + $0x400] sm:$0xff] %v4662
      %4675 = vst [vmem:[#allocation4 + $0x408] sm:$0xff] %v4663
      %4676 = vst [vmem:[#allocation4 + $0x410] sm:$0xff] %v4664
      %4677 = vst [vmem:[#allocation4 + $0x418] sm:$0xff] %v4665
      %v4678 = vld [vmem:[#allocation6 + $0x8] sm:$0xff]
      %v4679 = vld [vmem:[#allocation6 + $0x10] sm:$0xff]
      %v4680 = vld [vmem:[#allocation6 + $0x18] sm:$0xff]
      %v4681 = vld [vmem:[#allocation6 + $0x20] sm:$0xff]
      %v4682 = vld [vmem:[#allocation6 + $0x28] sm:$0xff]
      %v4683 = vld [vmem:[#allocation6 + $0x30] sm:$0xff]
      %v4684 = vld [vmem:[#allocation6 + $0x38] sm:$0xff]
      %4692 = vrot.lane.b32.xlu0 %v4678, 84
      %v4693 = vpop.permute.xlu0 %4692
      %4694 = vrot.lane.b32.xlu0 %v4679, 84
      %v4695 = vpop.permute.xlu0 %4694
      %4696 = vrot.lane.b32.xlu0 %v4680, 84
      %v4697 = vpop.permute.xlu0 %4696
      %4698 = vrot.lane.b32.xlu0 %v4681, 84
      %v4699 = vpop.permute.xlu0 %4698
      %4700 = vrot.lane.b32.xlu0 %v4682, 84
      %v4701 = vpop.permute.xlu0 %4700
      %4702 = vrot.lane.b32.xlu0 %v4683, 84
      %v4703 = vpop.permute.xlu0 %4702
      %4704 = vrot.lane.b32.xlu0 %v4684, 84
      %v4705 = vpop.permute.xlu0 %4704
      %v4706 = vsel %vm3081, %v4693, %v4695
      %v4707 = vsel %vm3081, %v4695, %v4697
      %v4708 = vsel %vm3081, %v4697, %v4699
      %v4709 = vsel %vm3081, %v4699, %v4701
      %v4710 = vsel %vm3081, %v4701, %v4703
      %v4711 = vsel %vm3081, %v4703, %v4705
      %4718 = vst [vmem:[#allocation4 + $0x420] sm:$0xff] %v4706
      %4719 = vst [vmem:[#allocation4 + $0x428] sm:$0xff] %v4707
      %4720 = vst [vmem:[#allocation4 + $0x430] sm:$0xff] %v4708
      %4721 = vst [vmem:[#allocation4 + $0x438] sm:$0xff] %v4709
      %4722 = vst [vmem:[#allocation4 + $0x440] sm:$0xff] %v4710
      %4723 = vst [vmem:[#allocation4 + $0x448] sm:$0xff] %v4711
      %v4724 = vld [vmem:[#allocation6 + $0x8] sm:$0xff]
      %v4725 = vld [vmem:[#allocation6 + $0x10] sm:$0xff]
      %v4726 = vld [vmem:[#allocation6 + $0x18] sm:$0xff]
      %v4727 = vld [vmem:[#allocation6 + $0x20] sm:$0xff]
      %v4728 = vld [vmem:[#allocation6 + $0x28] sm:$0xff]
      %v4729 = vld [vmem:[#allocation6 + $0x30] sm:$0xff]
      %v4730 = vld [vmem:[#allocation6 + $0x38] sm:$0xff]
      %4738 = vrot.lane.b32.xlu0 %v4724, 83
      %v4739 = vpop.permute.xlu0 %4738
      %4740 = vrot.lane.b32.xlu0 %v4725, 83
      %v4741 = vpop.permute.xlu0 %4740
      %4742 = vrot.lane.b32.xlu0 %v4726, 83
      %v4743 = vpop.permute.xlu0 %4742
      %4744 = vrot.lane.b32.xlu0 %v4727, 83
      %v4745 = vpop.permute.xlu0 %4744
      %4746 = vrot.lane.b32.xlu0 %v4728, 83
      %v4747 = vpop.permute.xlu0 %4746
      %4748 = vrot.lane.b32.xlu0 %v4729, 83
      %v4749 = vpop.permute.xlu0 %4748
      %4750 = vrot.lane.b32.xlu0 %v4730, 83
      %v4751 = vpop.permute.xlu0 %4750
      %v4752 = vsel %vm3126, %v4739, %v4741
      %v4753 = vsel %vm3126, %v4741, %v4743
      %v4754 = vsel %vm3126, %v4743, %v4745
      %v4755 = vsel %vm3126, %v4745, %v4747
      %v4756 = vsel %vm3126, %v4747, %v4749
      %v4757 = vsel %vm3126, %v4749, %v4751
      %4764 = vst [vmem:[#allocation4 + $0x450] sm:$0xff] %v4752
      %4765 = vst [vmem:[#allocation4 + $0x458] sm:$0xff] %v4753
      %4766 = vst [vmem:[#allocation4 + $0x460] sm:$0xff] %v4754
      %4767 = vst [vmem:[#allocation4 + $0x468] sm:$0xff] %v4755
      %4768 = vst [vmem:[#allocation4 + $0x470] sm:$0xff] %v4756
      %4769 = vst [vmem:[#allocation4 + $0x478] sm:$0xff] %v4757
      %v4770 = vld [vmem:[#allocation6 + $0x8] sm:$0xff]
      %v4771 = vld [vmem:[#allocation6 + $0x10] sm:$0xff]
      %v4772 = vld [vmem:[#allocation6 + $0x18] sm:$0xff]
      %v4773 = vld [vmem:[#allocation6 + $0x20] sm:$0xff]
      %v4774 = vld [vmem:[#allocation6 + $0x28] sm:$0xff]
      %v4775 = vld [vmem:[#allocation6 + $0x30] sm:$0xff]
      %v4776 = vld [vmem:[#allocation6 + $0x38] sm:$0xff]
      %4784 = vrot.lane.b32.xlu0 %v4770, 76
      %v4785 = vpop.permute.xlu0 %4784
      %4786 = vrot.lane.b32.xlu0 %v4771, 76
      %v4787 = vpop.permute.xlu0 %4786
      %4788 = vrot.lane.b32.xlu0 %v4772, 76
      %v4789 = vpop.permute.xlu0 %4788
      %4790 = vrot.lane.b32.xlu0 %v4773, 76
      %v4791 = vpop.permute.xlu0 %4790
      %4792 = vrot.lane.b32.xlu0 %v4774, 76
      %v4793 = vpop.permute.xlu0 %4792
      %4794 = vrot.lane.b32.xlu0 %v4775, 76
      %v4795 = vpop.permute.xlu0 %4794
      %4796 = vrot.lane.b32.xlu0 %v4776, 76
      %v4797 = vpop.permute.xlu0 %4796
      %v4798 = vsel %vm3170, %v4785, %v4787
      %v4799 = vsel %vm3170, %v4787, %v4789
      %v4800 = vsel %vm3170, %v4789, %v4791
      %v4801 = vsel %vm3170, %v4791, %v4793
      %v4802 = vsel %vm3170, %v4793, %v4795
      %v4803 = vsel %vm3170, %v4795, %v4797
      %4810 = vst [vmem:[#allocation4 + $0x480] sm:$0xff] %v4798
      %4811 = vst [vmem:[#allocation4 + $0x488] sm:$0xff] %v4799
      %4812 = vst [vmem:[#allocation4 + $0x490] sm:$0xff] %v4800
      %4813 = vst [vmem:[#allocation4 + $0x498] sm:$0xff] %v4801
      %4814 = vst [vmem:[#allocation4 + $0x4a0] sm:$0xff] %v4802
      %4815 = vst [vmem:[#allocation4 + $0x4a8] sm:$0xff] %v4803
      %v4816 = vld [vmem:[#allocation6 + $0x8] sm:$0xff]
      %v4817 = vld [vmem:[#allocation6 + $0x10] sm:$0xff]
      %v4818 = vld [vmem:[#allocation6 + $0x18] sm:$0xff]
      %v4819 = vld [vmem:[#allocation6 + $0x20] sm:$0xff]
      %v4820 = vld [vmem:[#allocation6 + $0x28] sm:$0xff]
      %v4821 = vld [vmem:[#allocation6 + $0x30] sm:$0xff]
      %v4822 = vld [vmem:[#allocation6 + $0x38] sm:$0xff]
      %4830 = vrot.lane.b32.xlu0 %v4816, 75
      %v4831 = vpop.permute.xlu0 %4830
      %4832 = vrot.lane.b32.xlu0 %v4817, 75
      %v4833 = vpop.permute.xlu0 %4832
      %4834 = vrot.lane.b32.xlu0 %v4818, 75
      %v4835 = vpop.permute.xlu0 %4834
      %4836 = vrot.lane.b32.xlu0 %v4819, 75
      %v4837 = vpop.permute.xlu0 %4836
      %4838 = vrot.lane.b32.xlu0 %v4820, 75
      %v4839 = vpop.permute.xlu0 %4838
      %4840 = vrot.lane.b32.xlu0 %v4821, 75
      %v4841 = vpop.permute.xlu0 %4840
      %4842 = vrot.lane.b32.xlu0 %v4822, 75
      %v4843 = vpop.permute.xlu0 %4842
      %v4844 = vsel %vm3215, %v4831, %v4833
      %v4845 = vsel %vm3215, %v4833, %v4835
      %v4846 = vsel %vm3215, %v4835, %v4837
      %v4847 = vsel %vm3215, %v4837, %v4839
      %v4848 = vsel %vm3215, %v4839, %v4841
      %v4849 = vsel %vm3215, %v4841, %v4843
      %4856 = vst [vmem:[#allocation4 + $0x4b0] sm:$0xff] %v4844
      %4857 = vst [vmem:[#allocation4 + $0x4b8] sm:$0xff] %v4845
      %4858 = vst [vmem:[#allocation4 + $0x4c0] sm:$0xff] %v4846
      %4859 = vst [vmem:[#allocation4 + $0x4c8] sm:$0xff] %v4847
      %4860 = vst [vmem:[#allocation4 + $0x4d0] sm:$0xff] %v4848
      %4861 = vst [vmem:[#allocation4 + $0x4d8] sm:$0xff] %v4849
      %v4862 = vld [vmem:[#allocation6 + $0x8] sm:$0xff]
      %v4863 = vld [vmem:[#allocation6 + $0x10] sm:$0xff]
      %v4864 = vld [vmem:[#allocation6 + $0x18] sm:$0xff]
      %v4865 = vld [vmem:[#allocation6 + $0x20] sm:$0xff]
      %v4866 = vld [vmem:[#allocation6 + $0x28] sm:$0xff]
      %v4867 = vld [vmem:[#allocation6 + $0x30] sm:$0xff]
      %v4868 = vld [vmem:[#allocation6 + $0x38] sm:$0xff]
      %4876 = vrot.lane.b32.xlu0 %v4862, 74
      %v4877 = vpop.permute.xlu0 %4876
      %4878 = vrot.lane.b32.xlu0 %v4863, 74
      %v4879 = vpop.permute.xlu0 %4878
      %4880 = vrot.lane.b32.xlu0 %v4864, 74
      %v4881 = vpop.permute.xlu0 %4880
      %4882 = vrot.lane.b32.xlu0 %v4865, 74
      %v4883 = vpop.permute.xlu0 %4882
      %4884 = vrot.lane.b32.xlu0 %v4866, 74
      %v4885 = vpop.permute.xlu0 %4884
      %4886 = vrot.lane.b32.xlu0 %v4867, 74
      %v4887 = vpop.permute.xlu0 %4886
      %4888 = vrot.lane.b32.xlu0 %v4868, 74
      %v4889 = vpop.permute.xlu0 %4888
      %v4890 = vsel %vm3259, %v4877, %v4879
      %v4891 = vsel %vm3259, %v4879, %v4881
      %v4892 = vsel %vm3259, %v4881, %v4883
      %v4893 = vsel %vm3259, %v4883, %v4885
      %v4894 = vsel %vm3259, %v4885, %v4887
      %v4895 = vsel %vm3259, %v4887, %v4889
      %4902 = vst [vmem:[#allocation4 + $0x4e0] sm:$0xff] %v4890
      %4903 = vst [vmem:[#allocation4 + $0x4e8] sm:$0xff] %v4891
      %4904 = vst [vmem:[#allocation4 + $0x4f0] sm:$0xff] %v4892
      %4905 = vst [vmem:[#allocation4 + $0x4f8] sm:$0xff] %v4893
      %4906 = vst [vmem:[#allocation4 + $0x500] sm:$0xff] %v4894
      %4907 = vst [vmem:[#allocation4 + $0x508] sm:$0xff] %v4895
      %v4908 = vld [vmem:[%s4] sm:$0xff]
      %v4909 = vld [vmem:[#allocation4] sm:$0xff]
      %v4910 = vld [vmem:[#allocation4 + $0x8] sm:$0xff]
      %v4911 = vld [vmem:[#allocation4 + $0x10] sm:$0xff]
      %v4912 = vld [vmem:[#allocation4 + $0x18] sm:$0xff]
      %v4913 = vld [vmem:[#allocation4 + $0x20] sm:$0xff]
      %v4914 = vld [vmem:[#allocation4 + $0x28] sm:$0xff]
      %v4915 = vld [vmem:[#allocation4 + $0x30] sm:$0xff]
      %v4916 = vld [vmem:[#allocation4 + $0x38] sm:$0xff]
      %v4917 = vld [vmem:[#allocation4 + $0x40] sm:$0xff]
      %v4918 = vld [vmem:[#allocation4 + $0x48] sm:$0xff]
      %v4919 = vld [vmem:[#allocation4 + $0x50] sm:$0xff]
      %v4920 = vld [vmem:[#allocation4 + $0x58] sm:$0xff]
      %v4921 = vld [vmem:[#allocation4 + $0x60] sm:$0xff]
      %v4922 = vld [vmem:[#allocation4 + $0x68] sm:$0xff]
      %v4923 = vld [vmem:[#allocation4 + $0x70] sm:$0xff]
      %v4924 = vld [vmem:[#allocation4 + $0x78] sm:$0xff]
      %v4925 = vld [vmem:[#allocation4 + $0x80] sm:$0xff]
      %v4926 = vld [vmem:[#allocation4 + $0x88] sm:$0xff]
      %v4927 = vld [vmem:[#allocation4 + $0x90] sm:$0xff]
      %v4928 = vld [vmem:[#allocation4 + $0x98] sm:$0xff]
      %v4929 = vld [vmem:[#allocation4 + $0xa0] sm:$0xff]
      %v4930 = vld [vmem:[#allocation4 + $0xa8] sm:$0xff]
      %v4931 = vld [vmem:[#allocation4 + $0xb0] sm:$0xff]
      %v4932 = vld [vmem:[#allocation4 + $0xb8] sm:$0xff]
      %v4933 = vld [vmem:[#allocation4 + $0xc0] sm:$0xff]
      %v4934 = vld [vmem:[#allocation4 + $0xc8] sm:$0xff]
      %v4935 = vld [vmem:[#allocation4 + $0xd0] sm:$0xff]
      %v4936 = vld [vmem:[#allocation4 + $0xd8] sm:$0xff]
      %v4937 = vld [vmem:[#allocation4 + $0xe0] sm:$0xff]
      %v4938 = vld [vmem:[#allocation4 + $0xe8] sm:$0xff]
      %v4939 = vld [vmem:[#allocation4 + $0xf0] sm:$0xff]
      %v4940 = vld [vmem:[#allocation4 + $0xf8] sm:$0xff]
      %v4941 = vld [vmem:[#allocation4 + $0x100] sm:$0xff]
      %v4942 = vld [vmem:[#allocation4 + $0x108] sm:$0xff]
      %v4943 = vld [vmem:[#allocation4 + $0x110] sm:$0xff]
      %v4944 = vld [vmem:[#allocation4 + $0x118] sm:$0xff]
      %v4945 = vld [vmem:[#allocation4 + $0x120] sm:$0xff]
      %v4946 = vld [vmem:[#allocation4 + $0x128] sm:$0xff]
      %v4947 = vld [vmem:[#allocation4 + $0x130] sm:$0xff]
      %v4948 = vld [vmem:[#allocation4 + $0x138] sm:$0xff]
      %v4949 = vld [vmem:[#allocation4 + $0x140] sm:$0xff]
      %v4950 = vld [vmem:[#allocation4 + $0x148] sm:$0xff]
      %v4951 = vld [vmem:[#allocation4 + $0x150] sm:$0xff]
      %v4952 = vld [vmem:[#allocation4 + $0x158] sm:$0xff]
      %v4953 = vld [vmem:[#allocation4 + $0x160] sm:$0xff]
      %v4954 = vld [vmem:[#allocation4 + $0x168] sm:$0xff]
      %v4955 = vld [vmem:[#allocation4 + $0x170] sm:$0xff]
      %v4956 = vld [vmem:[#allocation4 + $0x178] sm:$0xff]
      %v4957 = vld [vmem:[#allocation4 + $0x180] sm:$0xff]
      %v4958 = vld [vmem:[#allocation4 + $0x188] sm:$0xff]
      %v4959 = vld [vmem:[#allocation4 + $0x190] sm:$0xff]
      %v4960 = vld [vmem:[#allocation4 + $0x198] sm:$0xff]
      %v4961 = vld [vmem:[#allocation4 + $0x1a0] sm:$0xff]
      %v4962 = vld [vmem:[#allocation4 + $0x1a8] sm:$0xff]
      %v4963 = vld [vmem:[#allocation4 + $0x1b0] sm:$0xff]
      %v4964 = vld [vmem:[#allocation4 + $0x1b8] sm:$0xff]
      %v4965 = vld [vmem:[#allocation4 + $0x1c0] sm:$0xff]
      %v4966 = vld [vmem:[#allocation4 + $0x1c8] sm:$0xff]
      %v4967 = vld [vmem:[#allocation4 + $0x1d0] sm:$0xff]
      %v4968 = vld [vmem:[#allocation4 + $0x1d8] sm:$0xff]
      %v4969 = vld [vmem:[#allocation4 + $0x1e0] sm:$0xff]
      %v4970 = vld [vmem:[#allocation4 + $0x1e8] sm:$0xff]
      %v4971 = vld [vmem:[#allocation4 + $0x1f0] sm:$0xff]
      %v4972 = vld [vmem:[#allocation4 + $0x1f8] sm:$0xff]
      %v4973 = vld [vmem:[#allocation4 + $0x200] sm:$0xff]
      %v4974 = vld [vmem:[#allocation4 + $0x208] sm:$0xff]
      %v4975 = vld [vmem:[#allocation4 + $0x210] sm:$0xff]
      %v4976 = vld [vmem:[#allocation4 + $0x218] sm:$0xff]
      %v4977 = vld [vmem:[#allocation4 + $0x220] sm:$0xff]
      %v4978 = vld [vmem:[#allocation4 + $0x228] sm:$0xff]
      %v4979 = vld [vmem:[#allocation4 + $0x230] sm:$0xff]
      %v4980 = vld [vmem:[#allocation4 + $0x238] sm:$0xff]
      %v4981 = vld [vmem:[#allocation4 + $0x240] sm:$0xff]
      %v4982 = vld [vmem:[#allocation4 + $0x248] sm:$0xff]
      %v4983 = vld [vmem:[#allocation4 + $0x250] sm:$0xff]
      %v4984 = vld [vmem:[#allocation4 + $0x258] sm:$0xff]
      %v4985 = vld [vmem:[#allocation4 + $0x260] sm:$0xff]
      %v4986 = vld [vmem:[#allocation4 + $0x268] sm:$0xff]
      %v4987 = vld [vmem:[#allocation4 + $0x270] sm:$0xff]
      %v4988 = vld [vmem:[#allocation4 + $0x278] sm:$0xff]
      %v4989 = vld [vmem:[#allocation4 + $0x280] sm:$0xff]
      %v4990 = vld [vmem:[#allocation4 + $0x288] sm:$0xff]
      %v4991 = vld [vmem:[#allocation4 + $0x290] sm:$0xff]
      %v4992 = vld [vmem:[#allocation4 + $0x298] sm:$0xff]
      %v4993 = vld [vmem:[#allocation4 + $0x2a0] sm:$0xff]
      %v4994 = vld [vmem:[#allocation4 + $0x2a8] sm:$0xff]
      %v4995 = vld [vmem:[#allocation4 + $0x2b0] sm:$0xff]
      %v4996 = vld [vmem:[#allocation4 + $0x2b8] sm:$0xff]
      %v4997 = vld [vmem:[#allocation4 + $0x2c0] sm:$0xff]
      %v4998 = vld [vmem:[#allocation4 + $0x2c8] sm:$0xff]
      %v4999 = vld [vmem:[#allocation4 + $0x2d0] sm:$0xff]
      %v5000 = vld [vmem:[#allocation4 + $0x2d8] sm:$0xff]
      %v5001 = vld [vmem:[#allocation4 + $0x2e0] sm:$0xff]
      %v5002 = vld [vmem:[#allocation4 + $0x2e8] sm:$0xff]
      %v5003 = vld [vmem:[#allocation4 + $0x2f0] sm:$0xff]
      %v5004 = vld [vmem:[#allocation4 + $0x2f8] sm:$0xff]
      %v5005 = vld [vmem:[#allocation4 + $0x300] sm:$0xff]
      %v5006 = vld [vmem:[#allocation4 + $0x308] sm:$0xff]
      %v5007 = vld [vmem:[#allocation4 + $0x310] sm:$0xff]
      %v5008 = vld [vmem:[#allocation4 + $0x318] sm:$0xff]
      %v5009 = vld [vmem:[#allocation4 + $0x320] sm:$0xff]
      %v5010 = vld [vmem:[#allocation4 + $0x328] sm:$0xff]
      %v5011 = vld [vmem:[#allocation4 + $0x330] sm:$0xff]
      %v5012 = vld [vmem:[#allocation4 + $0x338] sm:$0xff]
      %v5013 = vld [vmem:[#allocation4 + $0x340] sm:$0xff]
      %v5014 = vld [vmem:[#allocation4 + $0x348] sm:$0xff]
      %v5015 = vld [vmem:[#allocation4 + $0x350] sm:$0xff]
      %v5016 = vld [vmem:[#allocation4 + $0x358] sm:$0xff]
      %v5017 = vld [vmem:[#allocation4 + $0x360] sm:$0xff]
      %v5018 = vld [vmem:[#allocation4 + $0x368] sm:$0xff]
      %v5019 = vld [vmem:[#allocation4 + $0x370] sm:$0xff]
      %v5020 = vld [vmem:[#allocation4 + $0x378] sm:$0xff]
      %v5021 = vld [vmem:[#allocation4 + $0x380] sm:$0xff]
      %v5022 = vld [vmem:[#allocation4 + $0x388] sm:$0xff]
      %v5023 = vld [vmem:[#allocation4 + $0x390] sm:$0xff]
      %v5024 = vld [vmem:[#allocation4 + $0x398] sm:$0xff]
      %v5025 = vld [vmem:[#allocation4 + $0x3a0] sm:$0xff]
      %v5026 = vld [vmem:[#allocation4 + $0x3a8] sm:$0xff]
      %v5027 = vld [vmem:[#allocation4 + $0x3b0] sm:$0xff]
      %v5028 = vld [vmem:[#allocation4 + $0x3b8] sm:$0xff]
      %v5029 = vld [vmem:[#allocation4 + $0x3c0] sm:$0xff]
      %v5030 = vld [vmem:[#allocation4 + $0x3c8] sm:$0xff]
      %v5031 = vld [vmem:[#allocation4 + $0x3d0] sm:$0xff]
      %v5032 = vld [vmem:[#allocation4 + $0x3d8] sm:$0xff]
      %v5033 = vld [vmem:[#allocation4 + $0x3e0] sm:$0xff]
      %v5034 = vld [vmem:[#allocation4 + $0x3e8] sm:$0xff]
      %v5035 = vld [vmem:[#allocation4 + $0x3f0] sm:$0xff]
      %v5036 = vld [vmem:[#allocation4 + $0x3f8] sm:$0xff]
      %v5037 = vld [vmem:[#allocation4 + $0x400] sm:$0xff]
      %v5038 = vld [vmem:[#allocation4 + $0x408] sm:$0xff]
      %v5039 = vld [vmem:[#allocation4 + $0x410] sm:$0xff]
      %v5040 = vld [vmem:[#allocation4 + $0x418] sm:$0xff]
      %v5041 = vld [vmem:[#allocation4 + $0x420] sm:$0xff]
      %v5042 = vld [vmem:[#allocation4 + $0x428] sm:$0xff]
      %v5043 = vld [vmem:[#allocation4 + $0x430] sm:$0xff]
      %v5044 = vld [vmem:[#allocation4 + $0x438] sm:$0xff]
      %v5045 = vld [vmem:[#allocation4 + $0x440] sm:$0xff]
      %v5046 = vld [vmem:[#allocation4 + $0x448] sm:$0xff]
      %v5047 = vld [vmem:[#allocation4 + $0x450] sm:$0xff]
      %v5048 = vld [vmem:[#allocation4 + $0x458] sm:$0xff]
      %v5049 = vld [vmem:[#allocation4 + $0x460] sm:$0xff]
      %v5050 = vld [vmem:[#allocation4 + $0x468] sm:$0xff]
      %v5051 = vld [vmem:[#allocation4 + $0x470] sm:$0xff]
      %v5052 = vld [vmem:[#allocation4 + $0x478] sm:$0xff]
      %v5053 = vld [vmem:[#allocation4 + $0x480] sm:$0xff]
      %v5054 = vld [vmem:[#allocation4 + $0x488] sm:$0xff]
      %v5055 = vld [vmem:[#allocation4 + $0x490] sm:$0xff]
      %v5056 = vld [vmem:[#allocation4 + $0x498] sm:$0xff]
      %v5057 = vld [vmem:[#allocation4 + $0x4a0] sm:$0xff]
      %v5058 = vld [vmem:[#allocation4 + $0x4a8] sm:$0xff]
      %v5059 = vld [vmem:[#allocation4 + $0x4b0] sm:$0xff]
      %v5060 = vld [vmem:[#allocation4 + $0x4b8] sm:$0xff]
      %v5061 = vld [vmem:[#allocation4 + $0x4c0] sm:$0xff]
      %v5062 = vld [vmem:[#allocation4 + $0x4c8] sm:$0xff]
      %v5063 = vld [vmem:[#allocation4 + $0x4d0] sm:$0xff]
      %v5064 = vld [vmem:[#allocation4 + $0x4d8] sm:$0xff]
      %v5065 = vld [vmem:[#allocation4 + $0x4e0] sm:$0xff]
      %v5066 = vld [vmem:[#allocation4 + $0x4e8] sm:$0xff]
      %v5067 = vld [vmem:[#allocation4 + $0x4f0] sm:$0xff]
      %v5068 = vld [vmem:[#allocation4 + $0x4f8] sm:$0xff]
      %v5069 = vld [vmem:[#allocation4 + $0x500] sm:$0xff]
      %v5070 = vld [vmem:[#allocation4 + $0x508] sm:$0xff]
      %v5071 = vpack.c.bf16 %v4915, %v4909
      %v5072 = vpack.c.bf16 %v4916, %v4910
      %v5073 = vpack.c.bf16 %v4917, %v4911
      %v5074 = vpack.c.bf16 %v4918, %v4912
      %v5075 = vpack.c.bf16 %v4919, %v4913
      %v5076 = vpack.c.bf16 %v4920, %v4914
      %v5077 = vpack.c.bf16 %v4927, %v4921
      %v5078 = vpack.c.bf16 %v4928, %v4922
      %v5079 = vpack.c.bf16 %v4929, %v4923
      %v5080 = vpack.c.bf16 %v4930, %v4924
      %v5081 = vpack.c.bf16 %v4931, %v4925
      %v5082 = vpack.c.bf16 %v4932, %v4926
      %v5083 = vpack.c.bf16 %v4939, %v4933
      %v5084 = vpack.c.bf16 %v4940, %v4934
      %v5085 = vpack.c.bf16 %v4941, %v4935
      %v5086 = vpack.c.bf16 %v4942, %v4936
      %v5087 = vpack.c.bf16 %v4943, %v4937
      %v5088 = vpack.c.bf16 %v4944, %v4938
      %v5089 = vpack.c.bf16 %v4951, %v4945
      %v5090 = vpack.c.bf16 %v4952, %v4946
      %v5091 = vpack.c.bf16 %v4953, %v4947
      %v5092 = vpack.c.bf16 %v4954, %v4948
      %v5093 = vpack.c.bf16 %v4955, %v4949
      %v5094 = vpack.c.bf16 %v4956, %v4950
      %v5095 = vpack.c.bf16 %v4963, %v4957
      %v5096 = vpack.c.bf16 %v4964, %v4958
      %v5097 = vpack.c.bf16 %v4965, %v4959
      %v5098 = vpack.c.bf16 %v4966, %v4960
      %v5099 = vpack.c.bf16 %v4967, %v4961
      %v5100 = vpack.c.bf16 %v4968, %v4962
      %v5101 = vpack.c.bf16 %v4975, %v4969
      %v5102 = vpack.c.bf16 %v4976, %v4970
      %v5103 = vpack.c.bf16 %v4977, %v4971
      %v5104 = vpack.c.bf16 %v4978, %v4972
      %v5105 = vpack.c.bf16 %v4979, %v4973
      %v5106 = vpack.c.bf16 %v4980, %v4974
      %v5107 = vpack.c.bf16 %v4987, %v4981
      %v5108 = vpack.c.bf16 %v4988, %v4982
      %v5109 = vpack.c.bf16 %v4989, %v4983
      %v5110 = vpack.c.bf16 %v4990, %v4984
      %v5111 = vpack.c.bf16 %v4991, %v4985
      %v5112 = vpack.c.bf16 %v4992, %v4986
      %v5113 = vpack.c.bf16 %v4999, %v4993
      %v5114 = vpack.c.bf16 %v5000, %v4994
      %v5115 = vpack.c.bf16 %v5001, %v4995
      %v5116 = vpack.c.bf16 %v5002, %v4996
      %v5117 = vpack.c.bf16 %v5003, %v4997
      %v5118 = vpack.c.bf16 %v5004, %v4998
      %v5119 = vpack.c.bf16 %v5011, %v5005
      %v5120 = vpack.c.bf16 %v5012, %v5006
      %v5121 = vpack.c.bf16 %v5013, %v5007
      %v5122 = vpack.c.bf16 %v5014, %v5008
      %v5123 = vpack.c.bf16 %v5015, %v5009
      %v5124 = vpack.c.bf16 %v5016, %v5010
      %v5125 = vpack.c.bf16 %v5023, %v5017
      %v5126 = vpack.c.bf16 %v5024, %v5018
      %v5127 = vpack.c.bf16 %v5025, %v5019
      %v5128 = vpack.c.bf16 %v5026, %v5020
      %v5129 = vpack.c.bf16 %v5027, %v5021
      %v5130 = vpack.c.bf16 %v5028, %v5022
      %v5131 = vpack.c.bf16 %v5035, %v5029
      %v5132 = vpack.c.bf16 %v5036, %v5030
      %v5133 = vpack.c.bf16 %v5037, %v5031
      %v5134 = vpack.c.bf16 %v5038, %v5032
      %v5135 = vpack.c.bf16 %v5039, %v5033
      %v5136 = vpack.c.bf16 %v5040, %v5034
      %v5137 = vpack.c.bf16 %v5047, %v5041
      %v5138 = vpack.c.bf16 %v5048, %v5042
      %v5139 = vpack.c.bf16 %v5049, %v5043
      %v5140 = vpack.c.bf16 %v5050, %v5044
      %v5141 = vpack.c.bf16 %v5051, %v5045
      %v5142 = vpack.c.bf16 %v5052, %v5046
      %v5143 = vpack.c.bf16 %v5059, %v5053
      %v5144 = vpack.c.bf16 %v5060, %v5054
      %v5145 = vpack.c.bf16 %v5061, %v5055
      %v5146 = vpack.c.bf16 %v5062, %v5056
      %v5147 = vpack.c.bf16 %v5063, %v5057
      %v5148 = vpack.c.bf16 %v5064, %v5058
      %v5149 = vpack.c.bf16 %v5065, %v5065
      %v5150 = vpack.c.bf16 %v5066, %v5066
      %v5151 = vpack.c.bf16 %v5067, %v5067
      %v5152 = vpack.c.bf16 %v5068, %v5068
      %v5153 = vpack.c.bf16 %v5069, %v5069
      %v5154 = vpack.c.bf16 %v5070, %v5070
      %v5156 = vunpack.c.l.b16 %v4908
      %v5157 = vunpack.c.h.b16 %v4908
      %v5158 = vpack.c.b16 %v5156, %v5156
      %v5159 = vpack.c.b16 %v5157, %v5157
      %vm5161 = vcmask 719872
      %v5163 = vsel %vm5161, %v5159, 0
      %vm5165 = vcmask 1043456
      %v5167 = vsel %vm5165, %v5149, 0
      %v5170 = vsel %vm5165, %v5150, 0
      %v5173 = vsel %vm5165, %v5151, 0
      %v5176 = vsel %vm5165, %v5152, 0
      %v5179 = vsel %vm5165, %v5153, 0
      %v5182 = vsel %vm5165, %v5154, 0
      %5184 = vmatprep.subr.bf16.mxu0 %v5072
      %5185 = vmatpush1.bf16.msra.mxu0 %v5071
      %5186 = vmatprep.subr.bf16.mxu0 %v5078
      %5187 = vmatpush1.bf16.msra.mxu0 %v5077
      %5188 = vmatprep.subr.bf16.mxu0 %v5084
      %5189 = vmatpush1.bf16.msra.mxu0 %v5083
      %5190 = vmatprep.subr.bf16.mxu0 %v5090
      %5191 = vmatpush1.bf16.msra.mxu0 %v5089
      %5192 = vmatprep.subr.bf16.mxu0 %v5096
      %5193 = vmatpush1.bf16.msra.mxu0 %v5095
      %5194 = vmatprep.subr.bf16.mxu0 %v5102
      %5195 = vmatpush1.bf16.msra.mxu0 %v5101
      %5196 = vmatprep.subr.bf16.mxu0 %v5108
      %5197 = vmatpush1.bf16.msra.mxu0 %v5107
      %5198 = vmatprep.subr.bf16.mxu0 %v5114
      %5199 = vmatpush1.bf16.msra.mxu0 %v5113
      %5200 = vmatprep.subr.bf16.mxu0 %v5120
      %5201 = vmatpush1.bf16.msra.mxu0 %v5119
      %5202 = vmatprep.subr.bf16.mxu0 %v5126
      %5203 = vmatpush1.bf16.msra.mxu0 %v5125
      %5204 = vmatprep.subr.bf16.mxu0 %v5132
      %5205 = vmatpush1.bf16.msra.mxu0 %v5131
      %5206 = vmatprep.subr.bf16.mxu0 %v5138
      %5207 = vmatpush1.bf16.msra.mxu0 %v5137
      %5208 = vmatprep.subr.bf16.mxu0 %v5144
      %5209 = vmatpush1.bf16.msra.mxu0 %v5143
      %5210 = vmatprep.subr.bf16.mxu0 %v5170
      %5211 = vmatpush1.bf16.msra.mxu0 %v5167
      %5212 = vmatprep.subr.bf16.mxu0 0
      %5213 = vmatpush1.bf16.msra.mxu0 0
      %5214 = vmatprep.subr.bf16.mxu0 0
      %5215 = vmatpush1.bf16.msra.mxu0 0
      %5216 = vmatprep.mubr.bf16.mxu0 %v5163
      %5217 = vmatmul.mubr.bf16.gmra.mrb[0].mxu0 %v5158
      %v5218 = vpop.f32.mrb[0].mxu0
      %v5219 = vadd.f32 0.0, %v5218
      %v5220 = vpop.f32.mrb[0].mxu0
      %v5221 = vadd.f32 0.0, %v5220
      %v5222 = vpop.f32.mrb[0].mxu0
      %v5223 = vpop.f32.mrb[0].mxu0
      %5224 = vdwg.mxu0
      %5225 = vmatprep.subr.bf16.mxu0 %v5074
      %5226 = vmatpush1.bf16.msra.mxu0 %v5073
      %5227 = vmatprep.subr.bf16.mxu0 %v5080
      %5228 = vmatpush1.bf16.msra.mxu0 %v5079
      %5229 = vmatprep.subr.bf16.mxu0 %v5086
      %5230 = vmatpush1.bf16.msra.mxu0 %v5085
      %5231 = vmatprep.subr.bf16.mxu0 %v5092
      %5232 = vmatpush1.bf16.msra.mxu0 %v5091
      %5233 = vmatprep.subr.bf16.mxu0 %v5098
      %5234 = vmatpush1.bf16.msra.mxu0 %v5097
      %5235 = vmatprep.subr.bf16.mxu0 %v5104
      %5236 = vmatpush1.bf16.msra.mxu0 %v5103
      %5237 = vmatprep.subr.bf16.mxu0 %v5110
      %5238 = vmatpush1.bf16.msra.mxu0 %v5109
      %5239 = vmatprep.subr.bf16.mxu0 %v5116
      %5240 = vmatpush1.bf16.msra.mxu0 %v5115
      %5241 = vmatprep.subr.bf16.mxu0 %v5122
      %5242 = vmatpush1.bf16.msra.mxu0 %v5121
      %5243 = vmatprep.subr.bf16.mxu0 %v5128
      %5244 = vmatpush1.bf16.msra.mxu0 %v5127
      %5245 = vmatprep.subr.bf16.mxu0 %v5134
      %5246 = vmatpush1.bf16.msra.mxu0 %v5133
      %5247 = vmatprep.subr.bf16.mxu0 %v5140
      %5248 = vmatpush1.bf16.msra.mxu0 %v5139
      %5249 = vmatprep.subr.bf16.mxu0 %v5146
      %5250 = vmatpush1.bf16.msra.mxu0 %v5145
      %5251 = vmatprep.subr.bf16.mxu0 %v5176
      %5252 = vmatpush1.bf16.msra.mxu0 %v5173
      %5253 = vmatprep.subr.bf16.mxu0 0
      %5254 = vmatpush1.bf16.msra.mxu0 0
      %5255 = vmatprep.subr.bf16.mxu0 0
      %5256 = vmatpush1.bf16.msra.mxu0 0
      %5257 = vmatprep.mubr.bf16.mxu0 %v5163
      %5258 = vmatmul.mubr.bf16.gmra.mrb[0].mxu0 %v5158
      %v5259 = vpop.f32.mrb[0].mxu0
      %v5260 = vadd.f32 0.0, %v5259
      %v5261 = vpop.f32.mrb[0].mxu0
      %v5262 = vadd.f32 0.0, %v5261
      %v5263 = vpop.f32.mrb[0].mxu0
      %v5264 = vpop.f32.mrb[0].mxu0
      %5265 = vdwg.mxu0
      %5266 = vmatprep.subr.bf16.mxu0 %v5076
      %5267 = vmatpush1.bf16.msra.mxu0 %v5075
      %5268 = vmatprep.subr.bf16.mxu0 %v5082
      %5269 = vmatpush1.bf16.msra.mxu0 %v5081
      %5270 = vmatprep.subr.bf16.mxu0 %v5088
      %5271 = vmatpush1.bf16.msra.mxu0 %v5087
      %5272 = vmatprep.subr.bf16.mxu0 %v5094
      %5273 = vmatpush1.bf16.msra.mxu0 %v5093
      %5274 = vmatprep.subr.bf16.mxu0 %v5100
      %5275 = vmatpush1.bf16.msra.mxu0 %v5099
      %5276 = vmatprep.subr.bf16.mxu0 %v5106
      %5277 = vmatpush1.bf16.msra.mxu0 %v5105
      %5278 = vmatprep.subr.bf16.mxu0 %v5112
      %5279 = vmatpush1.bf16.msra.mxu0 %v5111
      %5280 = vmatprep.subr.bf16.mxu0 %v5118
      %5281 = vmatpush1.bf16.msra.mxu0 %v5117
      %5282 = vmatprep.subr.bf16.mxu0 %v5124
      %5283 = vmatpush1.bf16.msra.mxu0 %v5123
      %5284 = vmatprep.subr.bf16.mxu0 %v5130
      %5285 = vmatpush1.bf16.msra.mxu0 %v5129
      %5286 = vmatprep.subr.bf16.mxu0 %v5136
      %5287 = vmatpush1.bf16.msra.mxu0 %v5135
      %5288 = vmatprep.subr.bf16.mxu0 %v5142
      %5289 = vmatpush1.bf16.msra.mxu0 %v5141
      %5290 = vmatprep.subr.bf16.mxu0 %v5148
      %5291 = vmatpush1.bf16.msra.mxu0 %v5147
      %5292 = vmatprep.subr.bf16.mxu0 %v5182
      %5293 = vmatpush1.bf16.msra.mxu0 %v5179
      %5294 = vmatprep.subr.bf16.mxu0 0
      %5295 = vmatpush1.bf16.msra.mxu0 0
      %5296 = vmatprep.subr.bf16.mxu0 0
      %5297 = vmatpush1.bf16.msra.mxu0 0
      %5298 = vmatprep.mubr.bf16.mxu0 %v5163
      %5299 = vmatmul.mubr.bf16.gmra.mrb[0].mxu0 %v5158
      %v5300 = vpop.f32.mrb[0].mxu0
      %v5301 = vadd.f32 0.0, %v5300
      %v5302 = vpop.f32.mrb[0].mxu0
      %v5303 = vadd.f32 0.0, %v5302
      %v5304 = vpop.f32.mrb[0].mxu0
      %v5305 = vpop.f32.mrb[0].mxu0
      %5306 = vdwg.mxu0
      %v5307 = vmul.f32 %v5219, %v3554
      %v5308 = vmul.f32 %v5221, %v3558
      %v5309 = vmul.f32 %v5260, %v3562
      %v5310 = vmul.f32 %v5262, %v3566
      %v5311 = vmul.f32 %v5301, %v3570
      %v5312 = vmul.f32 %v5303, %v3574
      %v5313 = vadd.f32 %v5307, %v5308
      %v5314 = vadd.f32 %v5313, %v5309
      %v5315 = vadd.f32 %v5314, %v5310
      %v5316 = vadd.f32 %v5315, %v5311
      %v5317 = vadd.f32 %v5316, %v5312
      %5318 = vadd.xlane.f32.xlu0 %v5317
      %v5319 = vpop.xlane.xlu0 %5318
      %v5320 = vmul.f32 %v5319, 0.002915452
      %v5321 = vsub.f32 %v5219, %v5320
      %v5322 = vsub.f32 %v5221, %v5320
      %v5323 = vsub.f32 %v5260, %v5320
      %v5324 = vsub.f32 %v5262, %v5320
      %v5325 = vsub.f32 %v5301, %v5320
      %v5326 = vsub.f32 %v5303, %v5320
      %v5327 = vmul.f32 %v5321, %v3554
      %v5328 = vmul.f32 %v5322, %v3558
      %v5329 = vmul.f32 %v5323, %v3562
      %v5330 = vmul.f32 %v5324, %v3566
      %v5331 = vmul.f32 %v5325, %v3570
      %v5332 = vmul.f32 %v5326, %v3574
      %v5333 = vmul.f32 %v5327, %v5327
      %v5334 = vmul.f32 %v5328, %v5328
      %v5335 = vmul.f32 %v5329, %v5329
      %v5336 = vmul.f32 %v5330, %v5330
      %v5337 = vmul.f32 %v5331, %v5331
      %v5338 = vmul.f32 %v5332, %v5332
      %v5339 = vadd.f32 %v5333, %v5334
      %v5340 = vadd.f32 %v5339, %v5335
      %v5341 = vadd.f32 %v5340, %v5336
      %v5342 = vadd.f32 %v5341, %v5337
      %v5343 = vadd.f32 %v5342, %v5338
      %5344 = vadd.xlane.f32.xlu0 %v5343
      %v5345 = vpop.xlane.xlu0 %5344
      %v5346 = vmul.f32 %v5345, 0.002915452
      %v5347 = vadd.f32 %v5346, 1e-05
      %v5348 = vrsqrt.pop %v5347
      %v5349 = vmul.f32 %v5321, %v5348
      %v5350 = vmul.f32 %v5322, %v5348
      %v5351 = vmul.f32 %v5323, %v5348
      %v5352 = vmul.f32 %v5324, %v5348
      %v5353 = vmul.f32 %v5325, %v5348
      %v5354 = vmul.f32 %v5326, %v5348
      %vm5355 = vcmp.ge.f32.partialorder %v5349, 0.0
      %vm5356 = vcmp.ge.f32.partialorder %v5350, 0.0
      %vm5357 = vcmp.ge.f32.partialorder %v5351, 0.0
      %vm5358 = vcmp.ge.f32.partialorder %v5352, 0.0
      %vm5359 = vcmp.ge.f32.partialorder %v5353, 0.0
      %vm5360 = vcmp.ge.f32.partialorder %v5354, 0.0
      %v5361 = vmul.f32 %v5349, 0.01
      %v5362 = vmul.f32 %v5350, 0.01
      %v5363 = vmul.f32 %v5351, 0.01
      %v5364 = vmul.f32 %v5352, 0.01
      %v5365 = vmul.f32 %v5353, 0.01
      %v5366 = vmul.f32 %v5354, 0.01
      %v5367 = vsel %vm5355, %v5349, %v5361
      %v5368 = vsel %vm5356, %v5350, %v5362
      %v5369 = vsel %vm5357, %v5351, %v5363
      %v5370 = vsel %vm5358, %v5352, %v5364
      %v5371 = vsel %vm5359, %v5353, %v5365
      %v5372 = vsel %vm5360, %v5354, %v5366
      %v5373 = vmul.f32 %v5367, %v3554
      %v5374 = vmul.f32 %v5368, %v3558
      %v5375 = vmul.f32 %v5369, %v3562
      %v5376 = vmul.f32 %v5370, %v3566
      %v5377 = vmul.f32 %v5371, %v3570
      %v5378 = vmul.f32 %v5372, %v3574
      %5379 = vst [vmem:[%s278] sm:$0xff] %v5373
      %5380 = vst [vmem:[%s278 + $0x8] sm:$0xff] %v5374
      %5381 = vst [vmem:[%s278 + $0x10] sm:$0xff] %v5375
      %5382 = vst [vmem:[%s278 + $0x18] sm:$0xff] %v5376
      %5383 = vst [vmem:[%s278 + $0x20] sm:$0xff] %v5377
      %5384 = vst [vmem:[%s278 + $0x28] sm:$0xff] %v5378
      %p5385 = scmp.lt.s32.totalorder %s18, 1
      %s5386 = scalar_select %p5385, %s18, 1
      %s5387 = smul.addr %s5386, 6
      %s5388 = smul.addr %s5387, 8
      %s5389 = scalar_lea.vmem %s7, %s5388
      // Predicated region
      $region49: #{down_forward.1} parent=47 // pred_check
        %p5390 = pneg %p188
      $region50: #{down_forward.1} parent=47 // pred_check_branch
        %5392 = sbr.rel (%p5390) target = $region52
      $region51: #{down_forward.1} parent=47 // pred_region
        _
      $region52: #{down_forward.1} parent=47 // pred_fallthru
        _
    $region48: #{down_forward.1} parent=5 // pred_fallthru
      _
    %p5393 = scmp.le.s32.totalorder 2, %s13
    // Predicated region
    $region53: #{down_forward.1} parent=5 // pred_check
      %p5394 = pneg %p5393
    $region54: #{down_forward.1} parent=5 // pred_check_branch
      %5396 = sbr.rel (%p5394) target = $region56
    $region55: #{down_forward.1} parent=5 // pred_region
      %s5397 = ssub.s32 %s13, 2
      // Predicated region
      $region57: #{down_forward.1} parent=55 // pred_check
        %p5398 = pneg %p194
      $region58: #{down_forward.1} parent=55 // pred_check_branch
        %5400 = sbr.rel (%p5398) target = $region60
      $region59: #{down_forward.1} parent=55 // pred_region
        %p5401 = scmp.lt.s32.totalorder %s19, 1
        %s5402 = scalar_select %p5401, %s19, 1
        %s5403 = smul.addr %s5402, 6
        %s5404 = smul.addr %s5403, 8
        %s5405 = scalar_lea.vmem %s7, %s5404
      $region60: #{down_forward.1} parent=55 // pred_fallthru
        _
    $region56: #{down_forward.1} parent=5 // pred_fallthru
      _
  $region6: #{down_forward.1} parent=0 // loop_footer
    %s17 = sadd.s32 1, %s13
  $region7: #{down_forward.1} parent=0 // loop_footer_branch
    %12 = sbr.rel target = $region3
  $region8: #{down_forward.1} parent=0 // loop_exit
    _

</llo_original>
